<compile_context>
chip_gen: v5e
topology: v5e:2x2
jax: 0.10.0
libtpu: 0.0.40
codegen_flags: <defaults>
</compile_context>

<pallas_src>
import functools

import jax
import jax.numpy as jnp
from jax import lax
from jax.experimental import pallas as pl
from jax.experimental.pallas import tpu as pltpu


def _round_up(x, m):
    return ((x + m - 1) // m) * m


# ----------------------------------------------------------------------------
# Kernels
# ----------------------------------------------------------------------------
def _gru_gates(gi, gh, h, H):
    """PyTorch GRU cell math; gate slices are lane-aligned because H % 128 == 0."""
    i_r, i_z, i_n = gi[:, :H], gi[:, H:2 * H], gi[:, 2 * H:]
    h_r, h_z, h_n = gh[:, :H], gh[:, H:2 * H], gh[:, 2 * H:]
    r = jax.nn.sigmoid(i_r + h_r)
    z = jax.nn.sigmoid(i_z + h_z)
    n = jnp.tanh(i_n + r * h_n)
    return (1.0 - z) * n + z * h


def encoder_gru_kernel(x_ref, wih_ref, whh_ref, bih_ref, bhh_ref,
                       hfin_ref, gi_ref):
    # x_ref:   (T, B, E)  bf16 time-major embedded encoder input
    # wih_ref: (E, 3H) bf16; whh_ref: (H, 3H) bf16; bih/bhh: (1, 3H) f32
    # hfin_ref:(B, H) f32 final hidden state (only output; per-step outputs unused)
    # gi_ref:  (T, B, 3H) f32 VMEM scratch holding the hoisted input projection
    T, B, _ = x_ref.shape
    H = whh_ref.shape[0]

    # Hoisted input->hidden projection: one MXU-shaped (T*B, E) @ (E, 3H) matmul.
    x2d = x_ref[...].reshape(T * B, x_ref.shape[2])
    gi = jnp.dot(x2d, wih_ref[...], preferred_element_type=jnp.float32)
    gi_ref[...] = (gi + bih_ref[...]).reshape(T, B, 3 * H)

    whh = whh_ref[...]
    bhh = bhh_ref[...]

    def step(t, h):
        gh = jnp.dot(h.astype(whh.dtype), whh,
                     preferred_element_type=jnp.float32) + bhh
        return _gru_gates(gi_ref[t], gh, h, H)

    h0 = jnp.zeros((B, H), jnp.float32)
    hfin_ref[...] = lax.fori_loop(0, T, step, h0, unroll=True)


def decoder_gru_kernel(x_ref, ctx_ref, wx_ref, wc_ref, whh_ref,
                       bih_ref, bhh_ref, hs_ref, hfin_ref, gi_ref):
    # x_ref:  (T, B, E) bf16; ctx_ref: (B, H) f32 encoder final state (context & h0)
    # wx_ref: (E, 3H), wc_ref: (H, 3H), whh_ref: (H, 3H)   all bf16
    #   (concat([emb, ctx]) @ W_ih  ==  emb @ wx + ctx @ wc)
    # bih/bhh: (1, 3H) f32
    # hs_ref:  (T, B, H) bf16 per-step hidden states (vocab projection is deferred)
    # hfin_ref:(B, H) f32
    # gi_ref:  (T, B, 3H) f32 scratch
    T, B, _ = x_ref.shape
    H = whh_ref.shape[0]

    ctx = ctx_ref[...]
    # Time-invariant context projection + hoisted input projection, both MXU-shaped.
    ctx_proj = jnp.dot(ctx.astype(wc_ref.dtype), wc_ref[...],
                       preferred_element_type=jnp.float32)          # (B, 3H)
    x2d = x_ref[...].reshape(T * B, x_ref.shape[2])
    gi = jnp.dot(x2d, wx_ref[...], preferred_element_type=jnp.float32)
    gi_ref[...] = gi.reshape(T, B, 3 * H) + (ctx_proj + bih_ref[...])[None]

    whh = whh_ref[...]
    bhh = bhh_ref[...]

    def step(t, h):
        gh = jnp.dot(h.astype(whh.dtype), whh,
                     preferred_element_type=jnp.float32) + bhh
        h_new = _gru_gates(gi_ref[t], gh, h, H)
        hs_ref[t] = h_new.astype(hs_ref.dtype)
        return h_new

    hfin_ref[...] = lax.fori_loop(0, T, step, ctx, unroll=True)


def logits_proj_kernel(h_ref, wout_ref, bout_ref, out_ref):
    # h_ref:    (B, T_blk, H) bf16 batch-major decoder hidden states
    # wout_ref: (H, V_blk) bf16;  bout_ref: (1, V_blk) f32
    # out_ref:  (B, T_blk, V_blk) f32 batch-major logits (lane-dense stores)
    B, Tb, H = h_ref.shape
    Vb = wout_ref.shape[1]
    h2d = h_ref[...].reshape(B * Tb, H)
    y = jnp.dot(h2d, wout_ref[...],
                preferred_element_type=jnp.float32) + bout_ref[...]
    out_ref[...] = y.reshape(B, Tb, Vb)


# ----------------------------------------------------------------------------
# pallas_call wrappers
# ----------------------------------------------------------------------------
_VMEM = pl.BlockSpec(memory_space=pltpu.MemorySpace.VMEM)


def encode(enc_emb_tbf, params):
    """enc_emb_tbf: (T, B, E) bf16 time-major.  Returns final state (B, H) f32."""
    T, B, _ = enc_emb_tbf.shape
    H = params["enc_whh"].shape[0]
    return pl.pallas_call(
        encoder_gru_kernel,
        out_shape=jax.ShapeDtypeStruct((B, H), jnp.float32),
        in_specs=[_VMEM] * 5,
        out_specs=_VMEM,
        scratch_shapes=[pltpu.VMEM((T, B, 3 * H), jnp.float32)],
    )(enc_emb_tbf, params["enc_wih"], params["enc_whh"],
      params["enc_bih"], params["enc_bhh"])


def decode_gru(dec_emb_tbf, enc_state, params):
    """Returns (hs (T, B, H) bf16, final state (B, H) f32)."""
    T, B, _ = dec_emb_tbf.shape
    H = params["dec_whh"].shape[0]
    return pl.pallas_call(
        decoder_gru_kernel,
        out_shape=(jax.ShapeDtypeStruct((T, B, H), jnp.bfloat16),
                   jax.ShapeDtypeStruct((B, H), jnp.float32)),
        in_specs=[_VMEM] * 7,
        out_specs=(_VMEM, _VMEM),
        scratch_shapes=[pltpu.VMEM((T, B, 3 * H), jnp.float32)],
    )(dec_emb_tbf, enc_state,
      params["dec_wx"], params["dec_wc"], params["dec_whh"],
      params["dec_bih"], params["dec_bhh"])


def project_logits(hs_bth, w_out, b_out):
    """Deferred vocab projection, grid-tiled over (T blocks, V blocks).

    hs_bth: (B, T, H) bf16 batch-major hidden states -> (B, T, V) f32 logits.
    """
    B, T, H = hs_bth.shape
    V = w_out.shape[1]
    # TODO(synk): for very long sequences also chunk T (t_blk a multiple of 8).
    t_blk = T
    v_blk = next(c for c in (512, 256, 128) if V % c == 0)
    grid = (pl.cdiv(T, t_blk), V // v_blk)
    return pl.pallas_call(
        logits_proj_kernel,
        out_shape=jax.ShapeDtypeStruct((B, T, V), jnp.float32),
        grid=grid,
        in_specs=[pl.BlockSpec((B, t_blk, H), lambda t, v: (0, t, 0)),
                  pl.BlockSpec((H, v_blk), lambda t, v: (0, v)),
                  pl.BlockSpec((1, v_blk), lambda t, v: (0, v))],
        out_specs=pl.BlockSpec((B, t_blk, v_blk), lambda t, v: (0, t, v)),
        compiler_params=pltpu.CompilerParams(
            dimension_semantics=("parallel", "parallel")),
    )(hs_bth, w_out, b_out)


@functools.partial(jax.jit, static_argnames=("vocab", "hidden"))
def encoder_decoder_forward(enc_X, dec_X, params, *, vocab, hidden):
    """EncoderDecoder.forward: enc_X / dec_X are int32 token ids of shape (B, T).

    Returns (logits (B, T_dec, vocab) f32, dec_state (B, hidden) f32).
    """
    B, _ = enc_X.shape
    Bp = _round_up(max(B, 8), 8)                       # sublane-pad the batch
    if Bp != B:
        enc_X = jnp.pad(enc_X, ((0, Bp - B), (0, 0)))
        dec_X = jnp.pad(dec_X, ((0, Bp - B), (0, 0)))

    # Embedding gathers + batch-major -> time-major (plain-JAX glue, bf16).
    enc_emb = jnp.transpose(jnp.take(params["enc_embed"], enc_X, axis=0), (1, 0, 2))
    dec_emb = jnp.transpose(jnp.take(params["dec_embed"], dec_X, axis=0), (1, 0, 2))

    enc_state = encode(enc_emb, params)                        # (Bp, Hp) f32
    hs_tbh, dec_state = decode_gru(dec_emb, enc_state, params)
    # Tiny (T,B,H) transpose so the big logits tensor is produced batch-major
    # directly by the projection kernel (no (T,B,V) <-> (B,T,V) HBM round trip).
    hs_bth = jnp.transpose(hs_tbh, (1, 0, 2))
    logits = project_logits(hs_bth, params["dec_wout"], params["dec_bout"])
    return logits[:B, :, :vocab], dec_state[:B, :hidden]


# ----------------------------------------------------------------------------
# Parameters (logical init + TPU-tile padding / bf16 cast)
# ----------------------------------------------------------------------------
def init_params(key, vocab, embed, hidden):
    """Logical (unpadded, f32) parameters, x @ W layout; gate order (r, z, n)."""
    ks = iter(jax.random.split(key, 40))
    s = 0.1

    def nrm(shape):
        return s * jax.random.normal(next(ks), shape, jnp.float32)

    return {
        "enc_embed": nrm((vocab, embed)),
        "dec_embed": nrm((vocab, embed)),
        "enc_wi": [nrm((embed, hidden)) for _ in range(3)],
        "enc_wh": [nrm((hidden, hidden)) for _ in range(3)],
        "enc_bi": [nrm((hidden,)) for _ in range(3)],
        "enc_bh": [nrm((hidden,)) for _ in range(3)],
        "dec_wx": [nrm((embed, hidden)) for _ in range(3)],
        "dec_wc": [nrm((hidden, hidden)) for _ in range(3)],
        "dec_wh": [nrm((hidden, hidden)) for _ in range(3)],
        "dec_bi": [nrm((hidden,)) for _ in range(3)],
        "dec_bh": [nrm((hidden,)) for _ in range(3)],
        "dec_wout": nrm((hidden, vocab)),
        "dec_bout": jnp.zeros((vocab,), jnp.float32),
    }


def prepare_params(p, vocab, embed, hidden):
    """Pad E/H/V to multiples of 128, fuse per-gate weights so each gate occupies a
    lane-aligned 128-multiple chunk, and cast matmul operands to bf16 (biases f32)."""
    Ep = _round_up(embed, 128)
    Hp = _round_up(hidden, 128)
    Vp = _round_up(vocab, 128)
    bf16 = jnp.bfloat16

    def pad_to(a, shape):
        return jnp.pad(a, [(0, s - d) for s, d in zip(shape, a.shape)])

    def fuse_w(mats, rows):          # 3 x (rows_logical, hidden) -> (rows, 3*Hp) bf16
        return jnp.concatenate([pad_to(m, (rows, Hp)) for m in mats], axis=1).astype(bf16)

    def fuse_b(bs):                  # 3 x (hidden,) -> (1, 3*Hp) f32
        return jnp.concatenate([pad_to(b, (Hp,)) for b in bs])[None, :]

    return {
        "enc_embed": pad_to(p["enc_embed"], (vocab, Ep)).astype(bf16),
        "dec_embed": pad_to(p["dec_embed"], (vocab, Ep)).astype(bf16),
        "enc_wih": fuse_w(p["enc_wi"], Ep),
        "enc_whh": fuse_w(p["enc_wh"], Hp),
        "enc_bih": fuse_b(p["enc_bi"]),
        "enc_bhh": fuse_b(p["enc_bh"]),
        "dec_wx":  fuse_w(p["dec_wx"], Ep),
        "dec_wc":  fuse_w(p["dec_wc"], Hp),
        "dec_whh": fuse_w(p["dec_wh"], Hp),
        "dec_bih": fuse_b(p["dec_bi"]),
        "dec_bhh": fuse_b(p["dec_bh"]),
        "dec_wout": pad_to(p["dec_wout"], (Hp, Vp)).astype(bf16),
        "dec_bout": pad_to(p["dec_bout"], (Vp,))[None, :],
    }


# ----------------------------------------------------------------------------
# Pure-JAX f32 reference (logical sizes) for a correctness check
# ----------------------------------------------------------------------------
def reference_forward(enc_X, dec_X, p):
    def gru_cell(h, gi, gh):
        (i_r, i_z, i_n), (h_r, h_z, h_n) = gi, gh
        r = jax.nn.sigmoid(i_r + h_r)
        z = jax.nn.sigmoid(i_z + h_z)
        n = jnp.tanh(i_n + r * h_n)
        return (1.0 - z) * n + z * h

    B, Te = enc_X.shape
    H = p["enc_wh"][0].shape[0]
    enc_emb = jnp.take(p["enc_embed"], enc_X, axis=0)
    h = jnp.zeros((B, H), jnp.float32)
    for t in range(Te):
        x = enc_emb[:, t]
        gi = [x @ p["enc_wi"][g] + p["enc_bi"][g] for g in range(3)]
        gh = [h @ p["enc_wh"][g] + p["enc_bh"][g] for g in range(3)]
        h = gru_cell(h, gi, gh)
    ctx = h

    dec_emb = jnp.take(p["dec_embed"], dec_X, axis=0)
    hd = ctx
    outs = []
    for t in range(dec_X.shape[1]):
        x = dec_emb[:, t]
        gi = [x @ p["dec_wx"][g] + ctx @ p["dec_wc"][g] + p["dec_bi"][g] for g in range(3)]
        gh = [hd @ p["dec_wh"][g] + p["dec_bh"][g] for g in range(3)]
        hd = gru_cell(hd, gi, gh)
        outs.append(hd @ p["dec_wout"] + p["dec_bout"])
    return jnp.stack(outs, axis=1), hd


# ----------------------------------------------------------------------------
if __name__ == "__main__":
    B, T, VOCAB, EMBED, HIDDEN = 2, 8, 32, 16, 32

    key = jax.random.PRNGKey(0)
    k_params, k_enc, k_dec = jax.random.split(key, 3)
    raw_params = init_params(k_params, VOCAB, EMBED, HIDDEN)
    params = prepare_params(raw_params, VOCAB, EMBED, HIDDEN)

    enc_X = jax.random.randint(k_enc, (B, T), 0, VOCAB, dtype=jnp.int32)
    dec_X = jax.random.randint(k_dec, (B, T), 0, VOCAB, dtype=jnp.int32)

    logits, dec_state = encoder_decoder_forward(
        enc_X, dec_X, params, vocab=VOCAB, hidden=HIDDEN)
    jax.block_until_ready((logits, dec_state))

    assert logits.shape == (B, T, VOCAB)
    assert dec_state.shape == (B, HIDDEN)
    assert bool(jnp.all(jnp.isfinite(logits)))

    # Correctness check vs. pure-JAX f32 reference (loose tol: bf16 matmul operands).
    ref_logits, ref_state = reference_forward(enc_X, dec_X, raw_params)
    assert jnp.allclose(logits, ref_logits, atol=2e-2, rtol=2e-2), (
        float(jnp.max(jnp.abs(logits - ref_logits))))
    assert jnp.allclose(dec_state, ref_state, atol=2e-2, rtol=2e-2)

    print("KERNEL_OK")
</pallas_src>

<mosaic_0001>
module attributes {stable_mosaic.version = 11 : i64} {
  func.func @logits_proj_kernel(%arg0: i32, %arg1: i32, %arg2: memref<8x8x128xbf16, #tpu.memory_space<vmem>>, %arg3: memref<128x128xbf16, #tpu.memory_space<vmem>>, %arg4: memref<1x128xf32, #tpu.memory_space<vmem>>, %arg5: memref<8x8x128xf32, #tpu.memory_space<vmem>>) attributes {dimension_semantics = [#tpu.dimension_semantics<parallel>, #tpu.dimension_semantics<parallel>], iteration_bounds = array<i64: 1, 1>, scalar_prefetch = 0 : i64, scratch_operands = 0 : i64, tpu.core_type = #tpu.core_type<tc>, window_params = [{transform_indices = @transform_0, window_bounds = array<i64: 8, 8, 128>}, {transform_indices = @transform_1, window_bounds = array<i64: 128, 128>}, {transform_indices = @transform_2, window_bounds = array<i64: 1, 128>}, {transform_indices = @transform_3, window_bounds = array<i64: 8, 8, 128>}]} {
    %c0 = arith.constant 0 : index
    %c0_0 = arith.constant 0 : index
    %c0_1 = arith.constant 0 : index
    %0 = vector.load %arg2[%c0, %c0_0, %c0_1] : memref<8x8x128xbf16, #tpu.memory_space<vmem>>, vector<8x8x128xbf16>
    %1 = vector.shape_cast %0 : vector<8x8x128xbf16> to vector<64x128xbf16>
    %c0_2 = arith.constant 0 : index
    %c0_3 = arith.constant 0 : index
    %2 = vector.load %arg3[%c0_2, %c0_3] : memref<128x128xbf16, #tpu.memory_space<vmem>>, vector<128x128xbf16>
    %cst = arith.constant dense<0.000000e+00> : vector<64x128xf32>
    %3 = tpu.matmul %1, %2, %cst {dimension_numbers = #tpu.dot_dimension_numbers<[1], [0], [0], [1], [0, 0, 1, 1], [], []>} : vector<64x128xbf16>, vector<128x128xbf16>, vector<64x128xf32> -> vector<64x128xf32>
    %c0_4 = arith.constant 0 : index
    %c0_5 = arith.constant 0 : index
    %4 = vector.load %arg4[%c0_4, %c0_5] : memref<1x128xf32, #tpu.memory_space<vmem>>, vector<1x128xf32>
    %5 = vector.broadcast %4 : vector<1x128xf32> to vector<64x128xf32>
    %6 = arith.addf %3, %5 : vector<64x128xf32>
    %7 = vector.shape_cast %6 : vector<64x128xf32> to vector<8x8x128xf32>
    %c0_6 = arith.constant 0 : index
    %c0_7 = arith.constant 0 : index
    %c0_8 = arith.constant 0 : index
    %8 = vector.load %arg5[%c0_6, %c0_7, %c0_8] : memref<8x8x128xf32, #tpu.memory_space<vmem>>, vector<8x8x128xf32>
    tpu.vector_store %arg5[%c0_6, %c0_7, %c0_8], %7 {strides = array<i32>} : memref<8x8x128xf32, #tpu.memory_space<vmem>>, vector<8x8x128xf32>,
    return
  }
  func.func @transform_0(%arg0: i32, %arg1: i32) -> (i32, i32, i32) {
    %c0_i32 = arith.constant 0 : i32
    %c0_i32_0 = arith.constant 0 : i32
    %c0_i32_1 = arith.constant 0 : i32
    return %c0_i32, %arg0, %c0_i32_0 : i32, i32, i32
  }
  func.func @transform_1(%arg0: i32, %arg1: i32) -> (i32, i32) {
    %c0_i32 = arith.constant 0 : i32
    %c0_i32_0 = arith.constant 0 : i32
    return %c0_i32, %arg1 : i32, i32
  }
  func.func @transform_2(%arg0: i32, %arg1: i32) -> (i32, i32) {
    %c0_i32 = arith.constant 0 : i32
    %c0_i32_0 = arith.constant 0 : i32
    return %c0_i32, %arg1 : i32, i32
  }
  func.func @transform_3(%arg0: i32, %arg1: i32) -> (i32, i32, i32) {
    %c0_i32 = arith.constant 0 : i32
    %c0_i32_0 = arith.constant 0 : i32
    return %c0_i32, %arg0, %arg1 : i32, i32, i32
  }
}

module attributes {stable_mosaic.version = 11 : i64} {
  func.func @encoder_gru_kernel(%arg0: memref<8x8x128xbf16, #tpu.memory_space<vmem>>, %arg1: memref<128x384xbf16, #tpu.memory_space<vmem>>, %arg2: memref<128x384xbf16, #tpu.memory_space<vmem>>, %arg3: memref<1x384xf32, #tpu.memory_space<vmem>>, %arg4: memref<1x384xf32, #tpu.memory_space<vmem>>, %arg5: memref<8x128xf32, #tpu.memory_space<vmem>>, %arg6: memref<8x8x384xf32, #tpu.memory_space<vmem>>) attributes {dimension_semantics = [], scalar_prefetch = 0 : i64, scratch_operands = 1 : i64, tpu.core_type = #tpu.core_type<tc>} {
    %c0 = arith.constant 0 : index
    %c0_0 = arith.constant 0 : index
    %c0_1 = arith.constant 0 : index
    %0 = vector.load %arg0[%c0, %c0_0, %c0_1] : memref<8x8x128xbf16, #tpu.memory_space<vmem>>, vector<8x8x128xbf16>
    %1 = vector.shape_cast %0 : vector<8x8x128xbf16> to vector<64x128xbf16>
    %c0_2 = arith.constant 0 : index
    %c0_3 = arith.constant 0 : index
    %2 = vector.load %arg1[%c0_2, %c0_3] : memref<128x384xbf16, #tpu.memory_space<vmem>>, vector<128x384xbf16>
    %cst = arith.constant dense<0.000000e+00> : vector<64x384xf32>
    %3 = tpu.matmul %1, %2, %cst {dimension_numbers = #tpu.dot_dimension_numbers<[1], [0], [0], [1], [0, 0, 1, 1], [], []>} : vector<64x128xbf16>, vector<128x384xbf16>, vector<64x384xf32> -> vector<64x384xf32>
    %c0_4 = arith.constant 0 : index
    %c0_5 = arith.constant 0 : index
    %4 = vector.load %arg3[%c0_4, %c0_5] : memref<1x384xf32, #tpu.memory_space<vmem>>, vector<1x384xf32>
    %5 = vector.broadcast %4 : vector<1x384xf32> to vector<64x384xf32>
    %6 = arith.addf %3, %5 : vector<64x384xf32>
    %7 = vector.shape_cast %6 : vector<64x384xf32> to vector<8x8x384xf32>
    %c0_6 = arith.constant 0 : index
    %c0_7 = arith.constant 0 : index
    %c0_8 = arith.constant 0 : index
    %8 = vector.load %arg6[%c0_6, %c0_7, %c0_8] : memref<8x8x384xf32, #tpu.memory_space<vmem>>, vector<8x8x384xf32>
    tpu.vector_store %arg6[%c0_6, %c0_7, %c0_8], %7 {strides = array<i32>} : memref<8x8x384xf32, #tpu.memory_space<vmem>>, vector<8x8x384xf32>,
    %c0_9 = arith.constant 0 : index
    %c0_10 = arith.constant 0 : index
    %9 = vector.load %arg2[%c0_9, %c0_10] : memref<128x384xbf16, #tpu.memory_space<vmem>>, vector<128x384xbf16>
    %c0_11 = arith.constant 0 : index
    %c0_12 = arith.constant 0 : index
    %10 = vector.load %arg4[%c0_11, %c0_12] : memref<1x384xf32, #tpu.memory_space<vmem>>, vector<1x384xf32>
    %cst_13 = arith.constant 0.000000e+00 : f32
    %11 = vector.broadcast %cst_13 : f32 to vector<8x128xf32>
    %c0_i32 = arith.constant 0 : i32
    %12 = arith.truncf %11 : vector<8x128xf32> to vector<8x128xbf16>
    %cst_14 = arith.constant dense<0.000000e+00> : vector<8x384xf32>
    %13 = tpu.matmul %12, %9, %cst_14 {dimension_numbers = #tpu.dot_dimension_numbers<[1], [0], [0], [1], [0, 0, 1, 1], [], []>} : vector<8x128xbf16>, vector<128x384xbf16>, vector<8x384xf32> -> vector<8x384xf32>
    %14 = vector.broadcast %10 : vector<1x384xf32> to vector<8x384xf32>
    %15 = arith.addf %13, %14 : vector<8x384xf32>
    %16 = arith.index_cast %c0_i32 : i32 to index
    %c0_15 = arith.constant 0 : index
    %c0_16 = arith.constant 0 : index
    %17 = vector.load %arg6[%16, %c0_15, %c0_16] : memref<8x8x384xf32, #tpu.memory_space<vmem>>, vector<1x8x384xf32>
    %18 = vector.shape_cast %17 : vector<1x8x384xf32> to vector<8x384xf32>
    %19 = vector.extract_strided_slice %18 {offsets = [0, 0], sizes = [8, 128], strides = [1, 1]} : vector<8x384xf32> to vector<8x128xf32>
    %20 = vector.extract_strided_slice %18 {offsets = [0, 128], sizes = [8, 128], strides = [1, 1]} : vector<8x384xf32> to vector<8x128xf32>
    %21 = vector.extract_strided_slice %18 {offsets = [0, 256], sizes = [8, 128], strides = [1, 1]} : vector<8x384xf32> to vector<8x128xf32>
    %22 = vector.extract_strided_slice %15 {offsets = [0, 0], sizes = [8, 128], strides = [1, 1]} : vector<8x384xf32> to vector<8x128xf32>
    %23 = vector.extract_strided_slice %15 {offsets = [0, 128], sizes = [8, 128], strides = [1, 1]} : vector<8x384xf32> to vector<8x128xf32>
    %24 = vector.extract_strided_slice %15 {offsets = [0, 256], sizes = [8, 128], strides = [1, 1]} : vector<8x384xf32> to vector<8x128xf32>
    %25 = arith.addf %19, %22 : vector<8x128xf32>
    %26 = arith.negf %25 : vector<8x128xf32>
    %27 = math.exp %26 : vector<8x128xf32>
    %cst_17 = arith.constant 1.000000e+00 : f32
    %28 = vector.broadcast %cst_17 : f32 to vector<8x128xf32>
    %29 = arith.addf %28, %27 : vector<8x128xf32>
    %30 = arith.divf %28, %29 : vector<8x128xf32>
    %31 = arith.addf %20, %23 : vector<8x128xf32>
    %32 = arith.negf %31 : vector<8x128xf32>
    %33 = math.exp %32 : vector<8x128xf32>
    %cst_18 = arith.constant 1.000000e+00 : f32
    %34 = vector.broadcast %cst_18 : f32 to vector<8x128xf32>
    %35 = arith.addf %34, %33 : vector<8x128xf32>
    %36 = arith.divf %34, %35 : vector<8x128xf32>
    %37 = arith.mulf %30, %24 : vector<8x128xf32>
    %38 = arith.addf %21, %37 : vector<8x128xf32>
    %39 = math.tanh %38 : vector<8x128xf32>
    %cst_19 = arith.constant 1.000000e+00 : f32
    %40 = vector.broadcast %cst_19 : f32 to vector<8x128xf32>
    %41 = arith.subf %40, %36 : vector<8x128xf32>
    %42 = arith.mulf %41, %39 : vector<8x128xf32>
    %43 = arith.mulf %36, %11 : vector<8x128xf32>
    %44 = arith.addf %42, %43 : vector<8x128xf32>
    %c1_i32 = arith.constant 1 : i32
    %45 = arith.truncf %44 : vector<8x128xf32> to vector<8x128xbf16>
    %cst_20 = arith.constant dense<0.000000e+00> : vector<8x384xf32>
    %46 = tpu.matmul %45, %9, %cst_20 {dimension_numbers = #tpu.dot_dimension_numbers<[1], [0], [0], [1], [0, 0, 1, 1], [], []>} : vector<8x128xbf16>, vector<128x384xbf16>, vector<8x384xf32> -> vector<8x384xf32>
    %47 = vector.broadcast %10 : vector<1x384xf32> to vector<8x384xf32>
    %48 = arith.addf %46, %47 : vector<8x384xf32>
    %49 = arith.index_cast %c1_i32 : i32 to index
    %c0_21 = arith.constant 0 : index
    %c0_22 = arith.constant 0 : index
    %50 = vector.load %arg6[%49, %c0_21, %c0_22] : memref<8x8x384xf32, #tpu.memory_space<vmem>>, vector<1x8x384xf32>
    %51 = vector.shape_cast %50 : vector<1x8x384xf32> to vector<8x384xf32>
    %52 = vector.extract_strided_slice %51 {offsets = [0, 0], sizes = [8, 128], strides = [1, 1]} : vector<8x384xf32> to vector<8x128xf32>
    %53 = vector.extract_strided_slice %51 {offsets = [0, 128], sizes = [8, 128], strides = [1, 1]} : vector<8x384xf32> to vector<8x128xf32>
    %54 = vector.extract_strided_slice %51 {offsets = [0, 256], sizes = [8, 128], strides = [1, 1]} : vector<8x384xf32> to vector<8x128xf32>
    %55 = vector.extract_strided_slice %48 {offsets = [0, 0], sizes = [8, 128], strides = [1, 1]} : vector<8x384xf32> to vector<8x128xf32>
    %56 = vector.extract_strided_slice %48 {offsets = [0, 128], sizes = [8, 128], strides = [1, 1]} : vector<8x384xf32> to vector<8x128xf32>
    %57 = vector.extract_strided_slice %48 {offsets = [0, 256], sizes = [8, 128], strides = [1, 1]} : vector<8x384xf32> to vector<8x128xf32>
    %58 = arith.addf %52, %55 : vector<8x128xf32>
    %59 = arith.negf %58 : vector<8x128xf32>
    %60 = math.exp %59 : vector<8x128xf32>
    %cst_23 = arith.constant 1.000000e+00 : f32
    %61 = vector.broadcast %cst_23 : f32 to vector<8x128xf32>
    %62 = arith.addf %61, %60 : vector<8x128xf32>
    %63 = arith.divf %61, %62 : vector<8x128xf32>
    %64 = arith.addf %53, %56 : vector<8x128xf32>
    %65 = arith.negf %64 : vector<8x128xf32>
    %66 = math.exp %65 : vector<8x128xf32>
    %cst_24 = arith.constant 1.000000e+00 : f32
    %67 = vector.broadcast %cst_24 : f32 to vector<8x128xf32>
    %68 = arith.addf %67, %66 : vector<8x128xf32>
    %69 = arith.divf %67, %68 : vector<8x128xf32>
    %70 = arith.mulf %63, %57 : vector<8x128xf32>
    %71 = arith.addf %54, %70 : vector<8x128xf32>
    %72 = math.tanh %71 : vector<8x128xf32>
    %cst_25 = arith.constant 1.000000e+00 : f32
    %73 = vector.broadcast %cst_25 : f32 to vector<8x128xf32>
    %74 = arith.subf %73, %69 : vector<8x128xf32>
    %75 = arith.mulf %74, %72 : vector<8x128xf32>
    %76 = arith.mulf %69, %44 : vector<8x128xf32>
    %77 = arith.addf %75, %76 : vector<8x128xf32>
    %c2_i32 = arith.constant 2 : i32
    %78 = arith.truncf %77 : vector<8x128xf32> to vector<8x128xbf16>
    %cst_26 = arith.constant dense<0.000000e+00> : vector<8x384xf32>
    %79 = tpu.matmul %78, %9, %cst_26 {dimension_numbers = #tpu.dot_dimension_numbers<[1], [0], [0], [1], [0, 0, 1, 1], [], []>} : vector<8x128xbf16>, vector<128x384xbf16>, vector<8x384xf32> -> vector<8x384xf32>
    %80 = vector.broadcast %10 : vector<1x384xf32> to vector<8x384xf32>
    %81 = arith.addf %79, %80 : vector<8x384xf32>
    %82 = arith.index_cast %c2_i32 : i32 to index
    %c0_27 = arith.constant 0 : index
    %c0_28 = arith.constant 0 : index
    %83 = vector.load %arg6[%82, %c0_27, %c0_28] : memref<8x8x384xf32, #tpu.memory_space<vmem>>, vector<1x8x384xf32>
    %84 = vector.shape_cast %83 : vector<1x8x384xf32> to vector<8x384xf32>
    %85 = vector.extract_strided_slice %84 {offsets = [0, 0], sizes = [8, 128], strides = [1, 1]} : vector<8x384xf32> to vector<8x128xf32>
    %86 = vector.extract_strided_slice %84 {offsets = [0, 128], sizes = [8, 128], strides = [1, 1]} : vector<8x384xf32> to vector<8x128xf32>
    %87 = vector.extract_strided_slice %84 {offsets = [0, 256], sizes = [8, 128], strides = [1, 1]} : vector<8x384xf32> to vector<8x128xf32>
    %88 = vector.extract_strided_slice %81 {offsets = [0, 0], sizes = [8, 128], strides = [1, 1]} : vector<8x384xf32> to vector<8x128xf32>
    %89 = vector.extract_strided_slice %81 {offsets = [0, 128], sizes = [8, 128], strides = [1, 1]} : vector<8x384xf32> to vector<8x128xf32>
    %90 = vector.extract_strided_slice %81 {offsets = [0, 256], sizes = [8, 128], strides = [1, 1]} : vector<8x384xf32> to vector<8x128xf32>
    %91 = arith.addf %85, %88 : vector<8x128xf32>
    %92 = arith.negf %91 : vector<8x128xf32>
    %93 = math.exp %92 : vector<8x128xf32>
    %cst_29 = arith.constant 1.000000e+00 : f32
    %94 = vector.broadcast %cst_29 : f32 to vector<8x128xf32>
    %95 = arith.addf %94, %93 : vector<8x128xf32>
    %96 = arith.divf %94, %95 : vector<8x128xf32>
    %97 = arith.addf %86, %89 : vector<8x128xf32>
    %98 = arith.negf %97 : vector<8x128xf32>
    %99 = math.exp %98 : vector<8x128xf32>
    %cst_30 = arith.constant 1.000000e+00 : f32
    %100 = vector.broadcast %cst_30 : f32 to vector<8x128xf32>
    %101 = arith.addf %100, %99 : vector<8x128xf32>
    %102 = arith.divf %100, %101 : vector<8x128xf32>
    %103 = arith.mulf %96, %90 : vector<8x128xf32>
    %104 = arith.addf %87, %103 : vector<8x128xf32>
    %105 = math.tanh %104 : vector<8x128xf32>
    %cst_31 = arith.constant 1.000000e+00 : f32
    %106 = vector.broadcast %cst_31 : f32 to vector<8x128xf32>
    %107 = arith.subf %106, %102 : vector<8x128xf32>
    %108 = arith.mulf %107, %105 : vector<8x128xf32>
    %109 = arith.mulf %102, %77 : vector<8x128xf32>
    %110 = arith.addf %108, %109 : vector<8x128xf32>
    %c3_i32 = arith.constant 3 : i32
    %111 = arith.truncf %110 : vector<8x128xf32> to vector<8x128xbf16>
    %cst_32 = arith.constant dense<0.000000e+00> : vector<8x384xf32>
    %112 = tpu.matmul %111, %9, %cst_32 {dimension_numbers = #tpu.dot_dimension_numbers<[1], [0], [0], [1], [0, 0, 1, 1], [], []>} : vector<8x128xbf16>, vector<128x384xbf16>, vector<8x384xf32> -> vector<8x384xf32>
    %113 = vector.broadcast %10 : vector<1x384xf32> to vector<8x384xf32>
    %114 = arith.addf %112, %113 : vector<8x384xf32>
    %115 = arith.index_cast %c3_i32 : i32 to index
    %c0_33 = arith.constant 0 : index
    %c0_34 = arith.constant 0 : index
    %116 = vector.load %arg6[%115, %c0_33, %c0_34] : memref<8x8x384xf32, #tpu.memory_space<vmem>>, vector<1x8x384xf32>
    %117 = vector.shape_cast %116 : vector<1x8x384xf32> to vector<8x384xf32>
    %118 = vector.extract_strided_slice %117 {offsets = [0, 0], sizes = [8, 128], strides = [1, 1]} : vector<8x384xf32> to vector<8x128xf32>
    %119 = vector.extract_strided_slice %117 {offsets = [0, 128], sizes = [8, 128], strides = [1, 1]} : vector<8x384xf32> to vector<8x128xf32>
    %120 = vector.extract_strided_slice %117 {offsets = [0, 256], sizes = [8, 128], strides = [1, 1]} : vector<8x384xf32> to vector<8x128xf32>
    %121 = vector.extract_strided_slice %114 {offsets = [0, 0], sizes = [8, 128], strides = [1, 1]} : vector<8x384xf32> to vector<8x128xf32>
    %122 = vector.extract_strided_slice %114 {offsets = [0, 128], sizes = [8, 128], strides = [1, 1]} : vector<8x384xf32> to vector<8x128xf32>
    %123 = vector.extract_strided_slice %114 {offsets = [0, 256], sizes = [8, 128], strides = [1, 1]} : vector<8x384xf32> to vector<8x128xf32>
    %124 = arith.addf %118, %121 : vector<8x128xf32>
    %125 = arith.negf %124 : vector<8x128xf32>
    %126 = math.exp %125 : vector<8x128xf32>
    %cst_35 = arith.constant 1.000000e+00 : f32
    %127 = vector.broadcast %cst_35 : f32 to vector<8x128xf32>
    %128 = arith.addf %127, %126 : vector<8x128xf32>
    %129 = arith.divf %127, %128 : vector<8x128xf32>
    %130 = arith.addf %119, %122 : vector<8x128xf32>
    %131 = arith.negf %130 : vector<8x128xf32>
    %132 = math.exp %131 : vector<8x128xf32>
    %cst_36 = arith.constant 1.000000e+00 : f32
    %133 = vector.broadcast %cst_36 : f32 to vector<8x128xf32>
    %134 = arith.addf %133, %132 : vector<8x128xf32>
    %135 = arith.divf %133, %134 : vector<8x128xf32>
    %136 = arith.mulf %129, %123 : vector<8x128xf32>
    %137 = arith.addf %120, %136 : vector<8x128xf32>
    %138 = math.tanh %137 : vector<8x128xf32>
    %cst_37 = arith.constant 1.000000e+00 : f32
    %139 = vector.broadcast %cst_37 : f32 to vector<8x128xf32>
    %140 = arith.subf %139, %135 : vector<8x128xf32>
    %141 = arith.mulf %140, %138 : vector<8x128xf32>
    %142 = arith.mulf %135, %110 : vector<8x128xf32>
    %143 = arith.addf %141, %142 : vector<8x128xf32>
    %c4_i32 = arith.constant 4 : i32
    %144 = arith.truncf %143 : vector<8x128xf32> to vector<8x128xbf16>
    %cst_38 = arith.constant dense<0.000000e+00> : vector<8x384xf32>
    %145 = tpu.matmul %144, %9, %cst_38 {dimension_numbers = #tpu.dot_dimension_numbers<[1], [0], [0], [1], [0, 0, 1, 1], [], []>} : vector<8x128xbf16>, vector<128x384xbf16>, vector<8x384xf32> -> vector<8x384xf32>
    %146 = vector.broadcast %10 : vector<1x384xf32> to vector<8x384xf32>
    %147 = arith.addf %145, %146 : vector<8x384xf32>
    %148 = arith.index_cast %c4_i32 : i32 to index
    %c0_39 = arith.constant 0 : index
    %c0_40 = arith.constant 0 : index
    %149 = vector.load %arg6[%148, %c0_39, %c0_40] : memref<8x8x384xf32, #tpu.memory_space<vmem>>, vector<1x8x384xf32>
    %150 = vector.shape_cast %149 : vector<1x8x384xf32> to vector<8x384xf32>
    %151 = vector.extract_strided_slice %150 {offsets = [0, 0], sizes = [8, 128], strides = [1, 1]} : vector<8x384xf32> to vector<8x128xf32>
    %152 = vector.extract_strided_slice %150 {offsets = [0, 128], sizes = [8, 128], strides = [1, 1]} : vector<8x384xf32> to vector<8x128xf32>
    %153 = vector.extract_strided_slice %150 {offsets = [0, 256], sizes = [8, 128], strides = [1, 1]} : vector<8x384xf32> to vector<8x128xf32>
    %154 = vector.extract_strided_slice %147 {offsets = [0, 0], sizes = [8, 128], strides = [1, 1]} : vector<8x384xf32> to vector<8x128xf32>
    %155 = vector.extract_strided_slice %147 {offsets = [0, 128], sizes = [8, 128], strides = [1, 1]} : vector<8x384xf32> to vector<8x128xf32>
    %156 = vector.extract_strided_slice %147 {offsets = [0, 256], sizes = [8, 128], strides = [1, 1]} : vector<8x384xf32> to vector<8x128xf32>
    %157 = arith.addf %151, %154 : vector<8x128xf32>
    %158 = arith.negf %157 : vector<8x128xf32>
    %159 = math.exp %158 : vector<8x128xf32>
    %cst_41 = arith.constant 1.000000e+00 : f32
    %160 = vector.broadcast %cst_41 : f32 to vector<8x128xf32>
    %161 = arith.addf %160, %159 : vector<8x128xf32>
    %162 = arith.divf %160, %161 : vector<8x128xf32>
    %163 = arith.addf %152, %155 : vector<8x128xf32>
    %164 = arith.negf %163 : vector<8x128xf32>
    %165 = math.exp %164 : vector<8x128xf32>
    %cst_42 = arith.constant 1.000000e+00 : f32
    %166 = vector.broadcast %cst_42 : f32 to vector<8x128xf32>
    %167 = arith.addf %166, %165 : vector<8x128xf32>
    %168 = arith.divf %166, %167 : vector<8x128xf32>
    %169 = arith.mulf %162, %156 : vector<8x128xf32>
    %170 = arith.addf %153, %169 : vector<8x128xf32>
    %171 = math.tanh %170 : vector<8x128xf32>
    %cst_43 = arith.constant 1.000000e+00 : f32
    %172 = vector.broadcast %cst_43 : f32 to vector<8x128xf32>
    %173 = arith.subf %172, %168 : vector<8x128xf32>
    %174 = arith.mulf %173, %171 : vector<8x128xf32>
    %175 = arith.mulf %168, %143 : vector<8x128xf32>
    %176 = arith.addf %174, %175 : vector<8x128xf32>
    %c5_i32 = arith.constant 5 : i32
    %177 = arith.truncf %176 : vector<8x128xf32> to vector<8x128xbf16>
    %cst_44 = arith.constant dense<0.000000e+00> : vector<8x384xf32>
    %178 = tpu.matmul %177, %9, %cst_44 {dimension_numbers = #tpu.dot_dimension_numbers<[1], [0], [0], [1], [0, 0, 1, 1], [], []>} : vector<8x128xbf16>, vector<128x384xbf16>, vector<8x384xf32> -> vector<8x384xf32>
    %179 = vector.broadcast %10 : vector<1x384xf32> to vector<8x384xf32>
    %180 = arith.addf %178, %179 : vector<8x384xf32>
    %181 = arith.index_cast %c5_i32 : i32 to index
    %c0_45 = arith.constant 0 : index
    %c0_46 = arith.constant 0 : index
    %182 = vector.load %arg6[%181, %c0_45, %c0_46] : memref<8x8x384xf32, #tpu.memory_space<vmem>>, vector<1x8x384xf32>
    %183 = vector.shape_cast %182 : vector<1x8x384xf32> to vector<8x384xf32>
    %184 = vector.extract_strided_slice %183 {offsets = [0, 0], sizes = [8, 128], strides = [1, 1]} : vector<8x384xf32> to vector<8x128xf32>
    %185 = vector.extract_strided_slice %183 {offsets = [0, 128], sizes = [8, 128], strides = [1, 1]} : vector<8x384xf32> to vector<8x128xf32>
    %186 = vector.extract_strided_slice %183 {offsets = [0, 256], sizes = [8, 128], strides = [1, 1]} : vector<8x384xf32> to vector<8x128xf32>
    %187 = vector.extract_strided_slice %180 {offsets = [0, 0], sizes = [8, 128], strides = [1, 1]} : vector<8x384xf32> to vector<8x128xf32>
    %188 = vector.extract_strided_slice %180 {offsets = [0, 128], sizes = [8, 128], strides = [1, 1]} : vector<8x384xf32> to vector<8x128xf32>
    %189 = vector.extract_strided_slice %180 {offsets = [0, 256], sizes = [8, 128], strides = [1, 1]} : vector<8x384xf32> to vector<8x128xf32>
    %190 = arith.addf %184, %187 : vector<8x128xf32>
    %191 = arith.negf %190 : vector<8x128xf32>
    %192 = math.exp %191 : vector<8x128xf32>
    %cst_47 = arith.constant 1.000000e+00 : f32
    %193 = vector.broadcast %cst_47 : f32 to vector<8x128xf32>
    %194 = arith.addf %193, %192 : vector<8x128xf32>
    %195 = arith.divf %193, %194 : vector<8x128xf32>
    %196 = arith.addf %185, %188 : vector<8x128xf32>
    %197 = arith.negf %196 : vector<8x128xf32>
    %198 = math.exp %197 : vector<8x128xf32>
    %cst_48 = arith.constant 1.000000e+00 : f32
    %199 = vector.broadcast %cst_48 : f32 to vector<8x128xf32>
    %200 = arith.addf %199, %198 : vector<8x128xf32>
    %201 = arith.divf %199, %200 : vector<8x128xf32>
    %202 = arith.mulf %195, %189 : vector<8x128xf32>
    %203 = arith.addf %186, %202 : vector<8x128xf32>
    %204 = math.tanh %203 : vector<8x128xf32>
    %cst_49 = arith.constant 1.000000e+00 : f32
    %205 = vector.broadcast %cst_49 : f32 to vector<8x128xf32>
    %206 = arith.subf %205, %201 : vector<8x128xf32>
    %207 = arith.mulf %206, %204 : vector<8x128xf32>
    %208 = arith.mulf %201, %176 : vector<8x128xf32>
    %209 = arith.addf %207, %208 : vector<8x128xf32>
    %c6_i32 = arith.constant 6 : i32
    %210 = arith.truncf %209 : vector<8x128xf32> to vector<8x128xbf16>
    %cst_50 = arith.constant dense<0.000000e+00> : vector<8x384xf32>
    %211 = tpu.matmul %210, %9, %cst_50 {dimension_numbers = #tpu.dot_dimension_numbers<[1], [0], [0], [1], [0, 0, 1, 1], [], []>} : vector<8x128xbf16>, vector<128x384xbf16>, vector<8x384xf32> -> vector<8x384xf32>
    %212 = vector.broadcast %10 : vector<1x384xf32> to vector<8x384xf32>
    %213 = arith.addf %211, %212 : vector<8x384xf32>
    %214 = arith.index_cast %c6_i32 : i32 to index
    %c0_51 = arith.constant 0 : index
    %c0_52 = arith.constant 0 : index
    %215 = vector.load %arg6[%214, %c0_51, %c0_52] : memref<8x8x384xf32, #tpu.memory_space<vmem>>, vector<1x8x384xf32>
    %216 = vector.shape_cast %215 : vector<1x8x384xf32> to vector<8x384xf32>
    %217 = vector.extract_strided_slice %216 {offsets = [0, 0], sizes = [8, 128], strides = [1, 1]} : vector<8x384xf32> to vector<8x128xf32>
    %218 = vector.extract_strided_slice %216 {offsets = [0, 128], sizes = [8, 128], strides = [1, 1]} : vector<8x384xf32> to vector<8x128xf32>
    %219 = vector.extract_strided_slice %216 {offsets = [0, 256], sizes = [8, 128], strides = [1, 1]} : vector<8x384xf32> to vector<8x128xf32>
    %220 = vector.extract_strided_slice %213 {offsets = [0, 0], sizes = [8, 128], strides = [1, 1]} : vector<8x384xf32> to vector<8x128xf32>
    %221 = vector.extract_strided_slice %213 {offsets = [0, 128], sizes = [8, 128], strides = [1, 1]} : vector<8x384xf32> to vector<8x128xf32>
    %222 = vector.extract_strided_slice %213 {offsets = [0, 256], sizes = [8, 128], strides = [1, 1]} : vector<8x384xf32> to vector<8x128xf32>
    %223 = arith.addf %217, %220 : vector<8x128xf32>
    %224 = arith.negf %223 : vector<8x128xf32>
    %225 = math.exp %224 : vector<8x128xf32>
    %cst_53 = arith.constant 1.000000e+00 : f32
    %226 = vector.broadcast %cst_53 : f32 to vector<8x128xf32>
    %227 = arith.addf %226, %225 : vector<8x128xf32>
    %228 = arith.divf %226, %227 : vector<8x128xf32>
    %229 = arith.addf %218, %221 : vector<8x128xf32>
    %230 = arith.negf %229 : vector<8x128xf32>
    %231 = math.exp %230 : vector<8x128xf32>
    %cst_54 = arith.constant 1.000000e+00 : f32
    %232 = vector.broadcast %cst_54 : f32 to vector<8x128xf32>
    %233 = arith.addf %232, %231 : vector<8x128xf32>
    %234 = arith.divf %232, %233 : vector<8x128xf32>
    %235 = arith.mulf %228, %222 : vector<8x128xf32>
    %236 = arith.addf %219, %235 : vector<8x128xf32>
    %237 = math.tanh %236 : vector<8x128xf32>
    %cst_55 = arith.constant 1.000000e+00 : f32
    %238 = vector.broadcast %cst_55 : f32 to vector<8x128xf32>
    %239 = arith.subf %238, %234 : vector<8x128xf32>
    %240 = arith.mulf %239, %237 : vector<8x128xf32>
    %241 = arith.mulf %234, %209 : vector<8x128xf32>
    %242 = arith.addf %240, %241 : vector<8x128xf32>
    %c7_i32 = arith.constant 7 : i32
    %243 = arith.truncf %242 : vector<8x128xf32> to vector<8x128xbf16>
    %cst_56 = arith.constant dense<0.000000e+00> : vector<8x384xf32>
    %244 = tpu.matmul %243, %9, %cst_56 {dimension_numbers = #tpu.dot_dimension_numbers<[1], [0], [0], [1], [0, 0, 1, 1], [], []>} : vector<8x128xbf16>, vector<128x384xbf16>, vector<8x384xf32> -> vector<8x384xf32>
    %245 = vector.broadcast %10 : vector<1x384xf32> to vector<8x384xf32>
    %246 = arith.addf %244, %245 : vector<8x384xf32>
    %247 = arith.index_cast %c7_i32 : i32 to index
    %c0_57 = arith.constant 0 : index
    %c0_58 = arith.constant 0 : index
    %248 = vector.load %arg6[%247, %c0_57, %c0_58] : memref<8x8x384xf32, #tpu.memory_space<vmem>>, vector<1x8x384xf32>
    %249 = vector.shape_cast %248 : vector<1x8x384xf32> to vector<8x384xf32>
    %250 = vector.extract_strided_slice %249 {offsets = [0, 0], sizes = [8, 128], strides = [1, 1]} : vector<8x384xf32> to vector<8x128xf32>
    %251 = vector.extract_strided_slice %249 {offsets = [0, 128], sizes = [8, 128], strides = [1, 1]} : vector<8x384xf32> to vector<8x128xf32>
    %252 = vector.extract_strided_slice %249 {offsets = [0, 256], sizes = [8, 128], strides = [1, 1]} : vector<8x384xf32> to vector<8x128xf32>
    %253 = vector.extract_strided_slice %246 {offsets = [0, 0], sizes = [8, 128], strides = [1, 1]} : vector<8x384xf32> to vector<8x128xf32>
    %254 = vector.extract_strided_slice %246 {offsets = [0, 128], sizes = [8, 128], strides = [1, 1]} : vector<8x384xf32> to vector<8x128xf32>
    %255 = vector.extract_strided_slice %246 {offsets = [0, 256], sizes = [8, 128], strides = [1, 1]} : vector<8x384xf32> to vector<8x128xf32>
    %256 = arith.addf %250, %253 : vector<8x128xf32>
    %257 = arith.negf %256 : vector<8x128xf32>
    %258 = math.exp %257 : vector<8x128xf32>
    %cst_59 = arith.constant 1.000000e+00 : f32
    %259 = vector.broadcast %cst_59 : f32 to vector<8x128xf32>
    %260 = arith.addf %259, %258 : vector<8x128xf32>
    %261 = arith.divf %259, %260 : vector<8x128xf32>
    %262 = arith.addf %251, %254 : vector<8x128xf32>
    %263 = arith.negf %262 : vector<8x128xf32>
    %264 = math.exp %263 : vector<8x128xf32>
    %cst_60 = arith.constant 1.000000e+00 : f32
    %265 = vector.broadcast %cst_60 : f32 to vector<8x128xf32>
    %266 = arith.addf %265, %264 : vector<8x128xf32>
    %267 = arith.divf %265, %266 : vector<8x128xf32>
    %268 = arith.mulf %261, %255 : vector<8x128xf32>
    %269 = arith.addf %252, %268 : vector<8x128xf32>
    %270 = math.tanh %269 : vector<8x128xf32>
    %cst_61 = arith.constant 1.000000e+00 : f32
    %271 = vector.broadcast %cst_61 : f32 to vector<8x128xf32>
    %272 = arith.subf %271, %267 : vector<8x128xf32>
    %273 = arith.mulf %272, %270 : vector<8x128xf32>
    %274 = arith.mulf %267, %242 : vector<8x128xf32>
    %275 = arith.addf %273, %274 : vector<8x128xf32>
    %c8_i32 = arith.constant 8 : i32
    %c0_62 = arith.constant 0 : index
    %c0_63 = arith.constant 0 : index
    %276 = vector.load %arg5[%c0_62, %c0_63] : memref<8x128xf32, #tpu.memory_space<vmem>>, vector<8x128xf32>
    tpu.vector_store %arg5[%c0_62, %c0_63], %275 {strides = array<i32>} : memref<8x128xf32, #tpu.memory_space<vmem>>, vector<8x128xf32>,
    return
  }
}

module attributes {stable_mosaic.version = 11 : i64} {
  func.func @decoder_gru_kernel(%arg0: memref<8x8x128xbf16, #tpu.memory_space<vmem>>, %arg1: memref<8x128xf32, #tpu.memory_space<vmem>>, %arg2: memref<128x384xbf16, #tpu.memory_space<vmem>>, %arg3: memref<128x384xbf16, #tpu.memory_space<vmem>>, %arg4: memref<128x384xbf16, #tpu.memory_space<vmem>>, %arg5: memref<1x384xf32, #tpu.memory_space<vmem>>, %arg6: memref<1x384xf32, #tpu.memory_space<vmem>>, %arg7: memref<8x8x128xbf16, #tpu.memory_space<vmem>>, %arg8: memref<8x128xf32, #tpu.memory_space<vmem>>, %arg9: memref<8x8x384xf32, #tpu.memory_space<vmem>>) attributes {dimension_semantics = [], scalar_prefetch = 0 : i64, scratch_operands = 1 : i64, tpu.core_type = #tpu.core_type<tc>} {
    %c0 = arith.constant 0 : index
    %c0_0 = arith.constant 0 : index
    %0 = vector.load %arg1[%c0, %c0_0] : memref<8x128xf32, #tpu.memory_space<vmem>>, vector<8x128xf32>
    %1 = arith.truncf %0 : vector<8x128xf32> to vector<8x128xbf16>
    %c0_1 = arith.constant 0 : index
    %c0_2 = arith.constant 0 : index
    %2 = vector.load %arg3[%c0_1, %c0_2] : memref<128x384xbf16, #tpu.memory_space<vmem>>, vector<128x384xbf16>
    %cst = arith.constant dense<0.000000e+00> : vector<8x384xf32>
    %3 = tpu.matmul %1, %2, %cst {dimension_numbers = #tpu.dot_dimension_numbers<[1], [0], [0], [1], [0, 0, 1, 1], [], []>} : vector<8x128xbf16>, vector<128x384xbf16>, vector<8x384xf32> -> vector<8x384xf32>
    %c0_3 = arith.constant 0 : index
    %c0_4 = arith.constant 0 : index
    %c0_5 = arith.constant 0 : index
    %4 = vector.load %arg0[%c0_3, %c0_4, %c0_5] : memref<8x8x128xbf16, #tpu.memory_space<vmem>>, vector<8x8x128xbf16>
    %5 = vector.shape_cast %4 : vector<8x8x128xbf16> to vector<64x128xbf16>
    %c0_6 = arith.constant 0 : index
    %c0_7 = arith.constant 0 : index
    %6 = vector.load %arg2[%c0_6, %c0_7] : memref<128x384xbf16, #tpu.memory_space<vmem>>, vector<128x384xbf16>
    %cst_8 = arith.constant dense<0.000000e+00> : vector<64x384xf32>
    %7 = tpu.matmul %5, %6, %cst_8 {dimension_numbers = #tpu.dot_dimension_numbers<[1], [0], [0], [1], [0, 0, 1, 1], [], []>} : vector<64x128xbf16>, vector<128x384xbf16>, vector<64x384xf32> -> vector<64x384xf32>
    %8 = vector.shape_cast %7 : vector<64x384xf32> to vector<8x8x384xf32>
    %c0_9 = arith.constant 0 : index
    %c0_10 = arith.constant 0 : index
    %9 = vector.load %arg5[%c0_9, %c0_10] : memref<1x384xf32, #tpu.memory_space<vmem>>, vector<1x384xf32>
    %10 = vector.broadcast %9 : vector<1x384xf32> to vector<8x384xf32>
    %11 = arith.addf %3, %10 : vector<8x384xf32>
    %12 = vector.shape_cast %11 : vector<8x384xf32> to vector<1x8x384xf32>
    %13 = vector.broadcast %12 : vector<1x8x384xf32> to vector<8x8x384xf32>
    %14 = arith.addf %8, %13 : vector<8x8x384xf32>
    %c0_11 = arith.constant 0 : index
    %c0_12 = arith.constant 0 : index
    %c0_13 = arith.constant 0 : index
    %15 = vector.load %arg9[%c0_11, %c0_12, %c0_13] : memref<8x8x384xf32, #tpu.memory_space<vmem>>, vector<8x8x384xf32>
    tpu.vector_store %arg9[%c0_11, %c0_12, %c0_13], %14 {strides = array<i32>} : memref<8x8x384xf32, #tpu.memory_space<vmem>>, vector<8x8x384xf32>,
    %c0_14 = arith.constant 0 : index
    %c0_15 = arith.constant 0 : index
    %16 = vector.load %arg4[%c0_14, %c0_15] : memref<128x384xbf16, #tpu.memory_space<vmem>>, vector<128x384xbf16>
    %c0_16 = arith.constant 0 : index
    %c0_17 = arith.constant 0 : index
    %17 = vector.load %arg6[%c0_16, %c0_17] : memref<1x384xf32, #tpu.memory_space<vmem>>, vector<1x384xf32>
    %c0_i32 = arith.constant 0 : i32
    %18 = arith.truncf %0 : vector<8x128xf32> to vector<8x128xbf16>
    %cst_18 = arith.constant dense<0.000000e+00> : vector<8x384xf32>
    %19 = tpu.matmul %18, %16, %cst_18 {dimension_numbers = #tpu.dot_dimension_numbers<[1], [0], [0], [1], [0, 0, 1, 1], [], []>} : vector<8x128xbf16>, vector<128x384xbf16>, vector<8x384xf32> -> vector<8x384xf32>
    %20 = vector.broadcast %17 : vector<1x384xf32> to vector<8x384xf32>
    %21 = arith.addf %19, %20 : vector<8x384xf32>
    %22 = arith.index_cast %c0_i32 : i32 to index
    %c0_19 = arith.constant 0 : index
    %c0_20 = arith.constant 0 : index
    %23 = vector.load %arg9[%22, %c0_19, %c0_20] : memref<8x8x384xf32, #tpu.memory_space<vmem>>, vector<1x8x384xf32>
    %24 = vector.shape_cast %23 : vector<1x8x384xf32> to vector<8x384xf32>
    %25 = vector.extract_strided_slice %24 {offsets = [0, 0], sizes = [8, 128], strides = [1, 1]} : vector<8x384xf32> to vector<8x128xf32>
    %26 = vector.extract_strided_slice %24 {offsets = [0, 128], sizes = [8, 128], strides = [1, 1]} : vector<8x384xf32> to vector<8x128xf32>
    %27 = vector.extract_strided_slice %24 {offsets = [0, 256], sizes = [8, 128], strides = [1, 1]} : vector<8x384xf32> to vector<8x128xf32>
    %28 = vector.extract_strided_slice %21 {offsets = [0, 0], sizes = [8, 128], strides = [1, 1]} : vector<8x384xf32> to vector<8x128xf32>
    %29 = vector.extract_strided_slice %21 {offsets = [0, 128], sizes = [8, 128], strides = [1, 1]} : vector<8x384xf32> to vector<8x128xf32>
    %30 = vector.extract_strided_slice %21 {offsets = [0, 256], sizes = [8, 128], strides = [1, 1]} : vector<8x384xf32> to vector<8x128xf32>
    %31 = arith.addf %25, %28 : vector<8x128xf32>
    %32 = arith.negf %31 : vector<8x128xf32>
    %33 = math.exp %32 : vector<8x128xf32>
    %cst_21 = arith.constant 1.000000e+00 : f32
    %34 = vector.broadcast %cst_21 : f32 to vector<8x128xf32>
    %35 = arith.addf %34, %33 : vector<8x128xf32>
    %36 = arith.divf %34, %35 : vector<8x128xf32>
    %37 = arith.addf %26, %29 : vector<8x128xf32>
    %38 = arith.negf %37 : vector<8x128xf32>
    %39 = math.exp %38 : vector<8x128xf32>
    %cst_22 = arith.constant 1.000000e+00 : f32
    %40 = vector.broadcast %cst_22 : f32 to vector<8x128xf32>
    %41 = arith.addf %40, %39 : vector<8x128xf32>
    %42 = arith.divf %40, %41 : vector<8x128xf32>
    %43 = arith.mulf %36, %30 : vector<8x128xf32>
    %44 = arith.addf %27, %43 : vector<8x128xf32>
    %45 = math.tanh %44 : vector<8x128xf32>
    %cst_23 = arith.constant 1.000000e+00 : f32
    %46 = vector.broadcast %cst_23 : f32 to vector<8x128xf32>
    %47 = arith.subf %46, %42 : vector<8x128xf32>
    %48 = arith.mulf %47, %45 : vector<8x128xf32>
    %49 = arith.mulf %42, %0 : vector<8x128xf32>
    %50 = arith.addf %48, %49 : vector<8x128xf32>
    %51 = arith.truncf %50 : vector<8x128xf32> to vector<8x128xbf16>
    %52 = arith.index_cast %c0_i32 : i32 to index
    %c0_24 = arith.constant 0 : index
    %c0_25 = arith.constant 0 : index
    %53 = vector.load %arg7[%52, %c0_24, %c0_25] : memref<8x8x128xbf16, #tpu.memory_space<vmem>>, vector<1x8x128xbf16>
    %54 = vector.shape_cast %53 : vector<1x8x128xbf16> to vector<8x128xbf16>
    %55 = vector.shape_cast %51 : vector<8x128xbf16> to vector<1x8x128xbf16>
    tpu.vector_store %arg7[%52, %c0_24, %c0_25], %55 {strides = array<i32>} : memref<8x8x128xbf16, #tpu.memory_space<vmem>>, vector<1x8x128xbf16>,
    %c1_i32 = arith.constant 1 : i32
    %56 = arith.truncf %50 : vector<8x128xf32> to vector<8x128xbf16>
    %cst_26 = arith.constant dense<0.000000e+00> : vector<8x384xf32>
    %57 = tpu.matmul %56, %16, %cst_26 {dimension_numbers = #tpu.dot_dimension_numbers<[1], [0], [0], [1], [0, 0, 1, 1], [], []>} : vector<8x128xbf16>, vector<128x384xbf16>, vector<8x384xf32> -> vector<8x384xf32>
    %58 = vector.broadcast %17 : vector<1x384xf32> to vector<8x384xf32>
    %59 = arith.addf %57, %58 : vector<8x384xf32>
    %60 = arith.index_cast %c1_i32 : i32 to index
    %c0_27 = arith.constant 0 : index
    %c0_28 = arith.constant 0 : index
    %61 = vector.load %arg9[%60, %c0_27, %c0_28] : memref<8x8x384xf32, #tpu.memory_space<vmem>>, vector<1x8x384xf32>
    %62 = vector.shape_cast %61 : vector<1x8x384xf32> to vector<8x384xf32>
    %63 = vector.extract_strided_slice %62 {offsets = [0, 0], sizes = [8, 128], strides = [1, 1]} : vector<8x384xf32> to vector<8x128xf32>
    %64 = vector.extract_strided_slice %62 {offsets = [0, 128], sizes = [8, 128], strides = [1, 1]} : vector<8x384xf32> to vector<8x128xf32>
    %65 = vector.extract_strided_slice %62 {offsets = [0, 256], sizes = [8, 128], strides = [1, 1]} : vector<8x384xf32> to vector<8x128xf32>
    %66 = vector.extract_strided_slice %59 {offsets = [0, 0], sizes = [8, 128], strides = [1, 1]} : vector<8x384xf32> to vector<8x128xf32>
    %67 = vector.extract_strided_slice %59 {offsets = [0, 128], sizes = [8, 128], strides = [1, 1]} : vector<8x384xf32> to vector<8x128xf32>
    %68 = vector.extract_strided_slice %59 {offsets = [0, 256], sizes = [8, 128], strides = [1, 1]} : vector<8x384xf32> to vector<8x128xf32>
    %69 = arith.addf %63, %66 : vector<8x128xf32>
    %70 = arith.negf %69 : vector<8x128xf32>
    %71 = math.exp %70 : vector<8x128xf32>
    %cst_29 = arith.constant 1.000000e+00 : f32
    %72 = vector.broadcast %cst_29 : f32 to vector<8x128xf32>
    %73 = arith.addf %72, %71 : vector<8x128xf32>
    %74 = arith.divf %72, %73 : vector<8x128xf32>
    %75 = arith.addf %64, %67 : vector<8x128xf32>
    %76 = arith.negf %75 : vector<8x128xf32>
    %77 = math.exp %76 : vector<8x128xf32>
    %cst_30 = arith.constant 1.000000e+00 : f32
    %78 = vector.broadcast %cst_30 : f32 to vector<8x128xf32>
    %79 = arith.addf %78, %77 : vector<8x128xf32>
    %80 = arith.divf %78, %79 : vector<8x128xf32>
    %81 = arith.mulf %74, %68 : vector<8x128xf32>
    %82 = arith.addf %65, %81 : vector<8x128xf32>
    %83 = math.tanh %82 : vector<8x128xf32>
    %cst_31 = arith.constant 1.000000e+00 : f32
    %84 = vector.broadcast %cst_31 : f32 to vector<8x128xf32>
    %85 = arith.subf %84, %80 : vector<8x128xf32>
    %86 = arith.mulf %85, %83 : vector<8x128xf32>
    %87 = arith.mulf %80, %50 : vector<8x128xf32>
    %88 = arith.addf %86, %87 : vector<8x128xf32>
    %89 = arith.truncf %88 : vector<8x128xf32> to vector<8x128xbf16>
    %90 = arith.index_cast %c1_i32 : i32 to index
    %c0_32 = arith.constant 0 : index
    %c0_33 = arith.constant 0 : index
    %91 = vector.load %arg7[%90, %c0_32, %c0_33] : memref<8x8x128xbf16, #tpu.memory_space<vmem>>, vector<1x8x128xbf16>
    %92 = vector.shape_cast %91 : vector<1x8x128xbf16> to vector<8x128xbf16>
    %93 = vector.shape_cast %89 : vector<8x128xbf16> to vector<1x8x128xbf16>
    tpu.vector_store %arg7[%90, %c0_32, %c0_33], %93 {strides = array<i32>} : memref<8x8x128xbf16, #tpu.memory_space<vmem>>, vector<1x8x128xbf16>,
    %c2_i32 = arith.constant 2 : i32
    %94 = arith.truncf %88 : vector<8x128xf32> to vector<8x128xbf16>
    %cst_34 = arith.constant dense<0.000000e+00> : vector<8x384xf32>
    %95 = tpu.matmul %94, %16, %cst_34 {dimension_numbers = #tpu.dot_dimension_numbers<[1], [0], [0], [1], [0, 0, 1, 1], [], []>} : vector<8x128xbf16>, vector<128x384xbf16>, vector<8x384xf32> -> vector<8x384xf32>
    %96 = vector.broadcast %17 : vector<1x384xf32> to vector<8x384xf32>
    %97 = arith.addf %95, %96 : vector<8x384xf32>
    %98 = arith.index_cast %c2_i32 : i32 to index
    %c0_35 = arith.constant 0 : index
    %c0_36 = arith.constant 0 : index
    %99 = vector.load %arg9[%98, %c0_35, %c0_36] : memref<8x8x384xf32, #tpu.memory_space<vmem>>, vector<1x8x384xf32>
    %100 = vector.shape_cast %99 : vector<1x8x384xf32> to vector<8x384xf32>
    %101 = vector.extract_strided_slice %100 {offsets = [0, 0], sizes = [8, 128], strides = [1, 1]} : vector<8x384xf32> to vector<8x128xf32>
    %102 = vector.extract_strided_slice %100 {offsets = [0, 128], sizes = [8, 128], strides = [1, 1]} : vector<8x384xf32> to vector<8x128xf32>
    %103 = vector.extract_strided_slice %100 {offsets = [0, 256], sizes = [8, 128], strides = [1, 1]} : vector<8x384xf32> to vector<8x128xf32>
    %104 = vector.extract_strided_slice %97 {offsets = [0, 0], sizes = [8, 128], strides = [1, 1]} : vector<8x384xf32> to vector<8x128xf32>
    %105 = vector.extract_strided_slice %97 {offsets = [0, 128], sizes = [8, 128], strides = [1, 1]} : vector<8x384xf32> to vector<8x128xf32>
    %106 = vector.extract_strided_slice %97 {offsets = [0, 256], sizes = [8, 128], strides = [1, 1]} : vector<8x384xf32> to vector<8x128xf32>
    %107 = arith.addf %101, %104 : vector<8x128xf32>
    %108 = arith.negf %107 : vector<8x128xf32>
    %109 = math.exp %108 : vector<8x128xf32>
    %cst_37 = arith.constant 1.000000e+00 : f32
    %110 = vector.broadcast %cst_37 : f32 to vector<8x128xf32>
    %111 = arith.addf %110, %109 : vector<8x128xf32>
    %112 = arith.divf %110, %111 : vector<8x128xf32>
    %113 = arith.addf %102, %105 : vector<8x128xf32>
    %114 = arith.negf %113 : vector<8x128xf32>
    %115 = math.exp %114 : vector<8x128xf32>
    %cst_38 = arith.constant 1.000000e+00 : f32
    %116 = vector.broadcast %cst_38 : f32 to vector<8x128xf32>
    %117 = arith.addf %116, %115 : vector<8x128xf32>
    %118 = arith.divf %116, %117 : vector<8x128xf32>
    %119 = arith.mulf %112, %106 : vector<8x128xf32>
    %120 = arith.addf %103, %119 : vector<8x128xf32>
    %121 = math.tanh %120 : vector<8x128xf32>
    %cst_39 = arith.constant 1.000000e+00 : f32
    %122 = vector.broadcast %cst_39 : f32 to vector<8x128xf32>
    %123 = arith.subf %122, %118 : vector<8x128xf32>
    %124 = arith.mulf %123, %121 : vector<8x128xf32>
    %125 = arith.mulf %118, %88 : vector<8x128xf32>
    %126 = arith.addf %124, %125 : vector<8x128xf32>
    %127 = arith.truncf %126 : vector<8x128xf32> to vector<8x128xbf16>
    %128 = arith.index_cast %c2_i32 : i32 to index
    %c0_40 = arith.constant 0 : index
    %c0_41 = arith.constant 0 : index
    %129 = vector.load %arg7[%128, %c0_40, %c0_41] : memref<8x8x128xbf16, #tpu.memory_space<vmem>>, vector<1x8x128xbf16>
    %130 = vector.shape_cast %129 : vector<1x8x128xbf16> to vector<8x128xbf16>
    %131 = vector.shape_cast %127 : vector<8x128xbf16> to vector<1x8x128xbf16>
    tpu.vector_store %arg7[%128, %c0_40, %c0_41], %131 {strides = array<i32>} : memref<8x8x128xbf16, #tpu.memory_space<vmem>>, vector<1x8x128xbf16>,
    %c3_i32 = arith.constant 3 : i32
    %132 = arith.truncf %126 : vector<8x128xf32> to vector<8x128xbf16>
    %cst_42 = arith.constant dense<0.000000e+00> : vector<8x384xf32>
    %133 = tpu.matmul %132, %16, %cst_42 {dimension_numbers = #tpu.dot_dimension_numbers<[1], [0], [0], [1], [0, 0, 1, 1], [], []>} : vector<8x128xbf16>, vector<128x384xbf16>, vector<8x384xf32> -> vector<8x384xf32>
    %134 = vector.broadcast %17 : vector<1x384xf32> to vector<8x384xf32>
    %135 = arith.addf %133, %134 : vector<8x384xf32>
    %136 = arith.index_cast %c3_i32 : i32 to index
    %c0_43 = arith.constant 0 : index
    %c0_44 = arith.constant 0 : index
    %137 = vector.load %arg9[%136, %c0_43, %c0_44] : memref<8x8x384xf32, #tpu.memory_space<vmem>>, vector<1x8x384xf32>
    %138 = vector.shape_cast %137 : vector<1x8x384xf32> to vector<8x384xf32>
    %139 = vector.extract_strided_slice %138 {offsets = [0, 0], sizes = [8, 128], strides = [1, 1]} : vector<8x384xf32> to vector<8x128xf32>
    %140 = vector.extract_strided_slice %138 {offsets = [0, 128], sizes = [8, 128], strides = [1, 1]} : vector<8x384xf32> to vector<8x128xf32>
    %141 = vector.extract_strided_slice %138 {offsets = [0, 256], sizes = [8, 128], strides = [1, 1]} : vector<8x384xf32> to vector<8x128xf32>
    %142 = vector.extract_strided_slice %135 {offsets = [0, 0], sizes = [8, 128], strides = [1, 1]} : vector<8x384xf32> to vector<8x128xf32>
    %143 = vector.extract_strided_slice %135 {offsets = [0, 128], sizes = [8, 128], strides = [1, 1]} : vector<8x384xf32> to vector<8x128xf32>
    %144 = vector.extract_strided_slice %135 {offsets = [0, 256], sizes = [8, 128], strides = [1, 1]} : vector<8x384xf32> to vector<8x128xf32>
    %145 = arith.addf %139, %142 : vector<8x128xf32>
    %146 = arith.negf %145 : vector<8x128xf32>
    %147 = math.exp %146 : vector<8x128xf32>
    %cst_45 = arith.constant 1.000000e+00 : f32
    %148 = vector.broadcast %cst_45 : f32 to vector<8x128xf32>
    %149 = arith.addf %148, %147 : vector<8x128xf32>
    %150 = arith.divf %148, %149 : vector<8x128xf32>
    %151 = arith.addf %140, %143 : vector<8x128xf32>
    %152 = arith.negf %151 : vector<8x128xf32>
    %153 = math.exp %152 : vector<8x128xf32>
    %cst_46 = arith.constant 1.000000e+00 : f32
    %154 = vector.broadcast %cst_46 : f32 to vector<8x128xf32>
    %155 = arith.addf %154, %153 : vector<8x128xf32>
    %156 = arith.divf %154, %155 : vector<8x128xf32>
    %157 = arith.mulf %150, %144 : vector<8x128xf32>
    %158 = arith.addf %141, %157 : vector<8x128xf32>
    %159 = math.tanh %158 : vector<8x128xf32>
    %cst_47 = arith.constant 1.000000e+00 : f32
    %160 = vector.broadcast %cst_47 : f32 to vector<8x128xf32>
    %161 = arith.subf %160, %156 : vector<8x128xf32>
    %162 = arith.mulf %161, %159 : vector<8x128xf32>
    %163 = arith.mulf %156, %126 : vector<8x128xf32>
    %164 = arith.addf %162, %163 : vector<8x128xf32>
    %165 = arith.truncf %164 : vector<8x128xf32> to vector<8x128xbf16>
    %166 = arith.index_cast %c3_i32 : i32 to index
    %c0_48 = arith.constant 0 : index
    %c0_49 = arith.constant 0 : index
    %167 = vector.load %arg7[%166, %c0_48, %c0_49] : memref<8x8x128xbf16, #tpu.memory_space<vmem>>, vector<1x8x128xbf16>
    %168 = vector.shape_cast %167 : vector<1x8x128xbf16> to vector<8x128xbf16>
    %169 = vector.shape_cast %165 : vector<8x128xbf16> to vector<1x8x128xbf16>
    tpu.vector_store %arg7[%166, %c0_48, %c0_49], %169 {strides = array<i32>} : memref<8x8x128xbf16, #tpu.memory_space<vmem>>, vector<1x8x128xbf16>,
    %c4_i32 = arith.constant 4 : i32
    %170 = arith.truncf %164 : vector<8x128xf32> to vector<8x128xbf16>
    %cst_50 = arith.constant dense<0.000000e+00> : vector<8x384xf32>
    %171 = tpu.matmul %170, %16, %cst_50 {dimension_numbers = #tpu.dot_dimension_numbers<[1], [0], [0], [1], [0, 0, 1, 1], [], []>} : vector<8x128xbf16>, vector<128x384xbf16>, vector<8x384xf32> -> vector<8x384xf32>
    %172 = vector.broadcast %17 : vector<1x384xf32> to vector<8x384xf32>
    %173 = arith.addf %171, %172 : vector<8x384xf32>
    %174 = arith.index_cast %c4_i32 : i32 to index
    %c0_51 = arith.constant 0 : index
    %c0_52 = arith.constant 0 : index
    %175 = vector.load %arg9[%174, %c0_51, %c0_52] : memref<8x8x384xf32, #tpu.memory_space<vmem>>, vector<1x8x384xf32>
    %176 = vector.shape_cast %175 : vector<1x8x384xf32> to vector<8x384xf32>
    %177 = vector.extract_strided_slice %176 {offsets = [0, 0], sizes = [8, 128], strides = [1, 1]} : vector<8x384xf32> to vector<8x128xf32>
    %178 = vector.extract_strided_slice %176 {offsets = [0, 128], sizes = [8, 128], strides = [1, 1]} : vector<8x384xf32> to vector<8x128xf32>
    %179 = vector.extract_strided_slice %176 {offsets = [0, 256], sizes = [8, 128], strides = [1, 1]} : vector<8x384xf32> to vector<8x128xf32>
    %180 = vector.extract_strided_slice %173 {offsets = [0, 0], sizes = [8, 128], strides = [1, 1]} : vector<8x384xf32> to vector<8x128xf32>
    %181 = vector.extract_strided_slice %173 {offsets = [0, 128], sizes = [8, 128], strides = [1, 1]} : vector<8x384xf32> to vector<8x128xf32>
    %182 = vector.extract_strided_slice %173 {offsets = [0, 256], sizes = [8, 128], strides = [1, 1]} : vector<8x384xf32> to vector<8x128xf32>
    %183 = arith.addf %177, %180 : vector<8x128xf32>
    %184 = arith.negf %183 : vector<8x128xf32>
    %185 = math.exp %184 : vector<8x128xf32>
    %cst_53 = arith.constant 1.000000e+00 : f32
    %186 = vector.broadcast %cst_53 : f32 to vector<8x128xf32>
    %187 = arith.addf %186, %185 : vector<8x128xf32>
    %188 = arith.divf %186, %187 : vector<8x128xf32>
    %189 = arith.addf %178, %181 : vector<8x128xf32>
    %190 = arith.negf %189 : vector<8x128xf32>
    %191 = math.exp %190 : vector<8x128xf32>
    %cst_54 = arith.constant 1.000000e+00 : f32
    %192 = vector.broadcast %cst_54 : f32 to vector<8x128xf32>
    %193 = arith.addf %192, %191 : vector<8x128xf32>
    %194 = arith.divf %192, %193 : vector<8x128xf32>
    %195 = arith.mulf %188, %182 : vector<8x128xf32>
    %196 = arith.addf %179, %195 : vector<8x128xf32>
    %197 = math.tanh %196 : vector<8x128xf32>
    %cst_55 = arith.constant 1.000000e+00 : f32
    %198 = vector.broadcast %cst_55 : f32 to vector<8x128xf32>
    %199 = arith.subf %198, %194 : vector<8x128xf32>
    %200 = arith.mulf %199, %197 : vector<8x128xf32>
    %201 = arith.mulf %194, %164 : vector<8x128xf32>
    %202 = arith.addf %200, %201 : vector<8x128xf32>
    %203 = arith.truncf %202 : vector<8x128xf32> to vector<8x128xbf16>
    %204 = arith.index_cast %c4_i32 : i32 to index
    %c0_56 = arith.constant 0 : index
    %c0_57 = arith.constant 0 : index
    %205 = vector.load %arg7[%204, %c0_56, %c0_57] : memref<8x8x128xbf16, #tpu.memory_space<vmem>>, vector<1x8x128xbf16>
    %206 = vector.shape_cast %205 : vector<1x8x128xbf16> to vector<8x128xbf16>
    %207 = vector.shape_cast %203 : vector<8x128xbf16> to vector<1x8x128xbf16>
    tpu.vector_store %arg7[%204, %c0_56, %c0_57], %207 {strides = array<i32>} : memref<8x8x128xbf16, #tpu.memory_space<vmem>>, vector<1x8x128xbf16>,
    %c5_i32 = arith.constant 5 : i32
    %208 = arith.truncf %202 : vector<8x128xf32> to vector<8x128xbf16>
    %cst_58 = arith.constant dense<0.000000e+00> : vector<8x384xf32>
    %209 = tpu.matmul %208, %16, %cst_58 {dimension_numbers = #tpu.dot_dimension_numbers<[1], [0], [0], [1], [0, 0, 1, 1], [], []>} : vector<8x128xbf16>, vector<128x384xbf16>, vector<8x384xf32> -> vector<8x384xf32>
    %210 = vector.broadcast %17 : vector<1x384xf32> to vector<8x384xf32>
    %211 = arith.addf %209, %210 : vector<8x384xf32>
    %212 = arith.index_cast %c5_i32 : i32 to index
    %c0_59 = arith.constant 0 : index
    %c0_60 = arith.constant 0 : index
    %213 = vector.load %arg9[%212, %c0_59, %c0_60] : memref<8x8x384xf32, #tpu.memory_space<vmem>>, vector<1x8x384xf32>
    %214 = vector.shape_cast %213 : vector<1x8x384xf32> to vector<8x384xf32>
    %215 = vector.extract_strided_slice %214 {offsets = [0, 0], sizes = [8, 128], strides = [1, 1]} : vector<8x384xf32> to vector<8x128xf32>
    %216 = vector.extract_strided_slice %214 {offsets = [0, 128], sizes = [8, 128], strides = [1, 1]} : vector<8x384xf32> to vector<8x128xf32>
    %217 = vector.extract_strided_slice %214 {offsets = [0, 256], sizes = [8, 128], strides = [1, 1]} : vector<8x384xf32> to vector<8x128xf32>
    %218 = vector.extract_strided_slice %211 {offsets = [0, 0], sizes = [8, 128], strides = [1, 1]} : vector<8x384xf32> to vector<8x128xf32>
    %219 = vector.extract_strided_slice %211 {offsets = [0, 128], sizes = [8, 128], strides = [1, 1]} : vector<8x384xf32> to vector<8x128xf32>
    %220 = vector.extract_strided_slice %211 {offsets = [0, 256], sizes = [8, 128], strides = [1, 1]} : vector<8x384xf32> to vector<8x128xf32>
    %221 = arith.addf %215, %218 : vector<8x128xf32>
    %222 = arith.negf %221 : vector<8x128xf32>
    %223 = math.exp %222 : vector<8x128xf32>
    %cst_61 = arith.constant 1.000000e+00 : f32
    %224 = vector.broadcast %cst_61 : f32 to vector<8x128xf32>
    %225 = arith.addf %224, %223 : vector<8x128xf32>
    %226 = arith.divf %224, %225 : vector<8x128xf32>
    %227 = arith.addf %216, %219 : vector<8x128xf32>
    %228 = arith.negf %227 : vector<8x128xf32>
    %229 = math.exp %228 : vector<8x128xf32>
    %cst_62 = arith.constant 1.000000e+00 : f32
    %230 = vector.broadcast %cst_62 : f32 to vector<8x128xf32>
    %231 = arith.addf %230, %229 : vector<8x128xf32>
    %232 = arith.divf %230, %231 : vector<8x128xf32>
    %233 = arith.mulf %226, %220 : vector<8x128xf32>
    %234 = arith.addf %217, %233 : vector<8x128xf32>
    %235 = math.tanh %234 : vector<8x128xf32>
    %cst_63 = arith.constant 1.000000e+00 : f32
    %236 = vector.broadcast %cst_63 : f32 to vector<8x128xf32>
    %237 = arith.subf %236, %232 : vector<8x128xf32>
    %238 = arith.mulf %237, %235 : vector<8x128xf32>
    %239 = arith.mulf %232, %202 : vector<8x128xf32>
    %240 = arith.addf %238, %239 : vector<8x128xf32>
    %241 = arith.truncf %240 : vector<8x128xf32> to vector<8x128xbf16>
    %242 = arith.index_cast %c5_i32 : i32 to index
    %c0_64 = arith.constant 0 : index
    %c0_65 = arith.constant 0 : index
    %243 = vector.load %arg7[%242, %c0_64, %c0_65] : memref<8x8x128xbf16, #tpu.memory_space<vmem>>, vector<1x8x128xbf16>
    %244 = vector.shape_cast %243 : vector<1x8x128xbf16> to vector<8x128xbf16>
    %245 = vector.shape_cast %241 : vector<8x128xbf16> to vector<1x8x128xbf16>
    tpu.vector_store %arg7[%242, %c0_64, %c0_65], %245 {strides = array<i32>} : memref<8x8x128xbf16, #tpu.memory_space<vmem>>, vector<1x8x128xbf16>,
    %c6_i32 = arith.constant 6 : i32
    %246 = arith.truncf %240 : vector<8x128xf32> to vector<8x128xbf16>
    %cst_66 = arith.constant dense<0.000000e+00> : vector<8x384xf32>
    %247 = tpu.matmul %246, %16, %cst_66 {dimension_numbers = #tpu.dot_dimension_numbers<[1], [0], [0], [1], [0, 0, 1, 1], [], []>} : vector<8x128xbf16>, vector<128x384xbf16>, vector<8x384xf32> -> vector<8x384xf32>
    %248 = vector.broadcast %17 : vector<1x384xf32> to vector<8x384xf32>
    %249 = arith.addf %247, %248 : vector<8x384xf32>
    %250 = arith.index_cast %c6_i32 : i32 to index
    %c0_67 = arith.constant 0 : index
    %c0_68 = arith.constant 0 : index
    %251 = vector.load %arg9[%250, %c0_67, %c0_68] : memref<8x8x384xf32, #tpu.memory_space<vmem>>, vector<1x8x384xf32>
    %252 = vector.shape_cast %251 : vector<1x8x384xf32> to vector<8x384xf32>
    %253 = vector.extract_strided_slice %252 {offsets = [0, 0], sizes = [8, 128], strides = [1, 1]} : vector<8x384xf32> to vector<8x128xf32>
    %254 = vector.extract_strided_slice %252 {offsets = [0, 128], sizes = [8, 128], strides = [1, 1]} : vector<8x384xf32> to vector<8x128xf32>
    %255 = vector.extract_strided_slice %252 {offsets = [0, 256], sizes = [8, 128], strides = [1, 1]} : vector<8x384xf32> to vector<8x128xf32>
    %256 = vector.extract_strided_slice %249 {offsets = [0, 0], sizes = [8, 128], strides = [1, 1]} : vector<8x384xf32> to vector<8x128xf32>
    %257 = vector.extract_strided_slice %249 {offsets = [0, 128], sizes = [8, 128], strides = [1, 1]} : vector<8x384xf32> to vector<8x128xf32>
    %258 = vector.extract_strided_slice %249 {offsets = [0, 256], sizes = [8, 128], strides = [1, 1]} : vector<8x384xf32> to vector<8x128xf32>
    %259 = arith.addf %253, %256 : vector<8x128xf32>
    %260 = arith.negf %259 : vector<8x128xf32>
    %261 = math.exp %260 : vector<8x128xf32>
    %cst_69 = arith.constant 1.000000e+00 : f32
    %262 = vector.broadcast %cst_69 : f32 to vector<8x128xf32>
    %263 = arith.addf %262, %261 : vector<8x128xf32>
    %264 = arith.divf %262, %263 : vector<8x128xf32>
    %265 = arith.addf %254, %257 : vector<8x128xf32>
    %266 = arith.negf %265 : vector<8x128xf32>
    %267 = math.exp %266 : vector<8x128xf32>
    %cst_70 = arith.constant 1.000000e+00 : f32
    %268 = vector.broadcast %cst_70 : f32 to vector<8x128xf32>
    %269 = arith.addf %268, %267 : vector<8x128xf32>
    %270 = arith.divf %268, %269 : vector<8x128xf32>
    %271 = arith.mulf %264, %258 : vector<8x128xf32>
    %272 = arith.addf %255, %271 : vector<8x128xf32>
    %273 = math.tanh %272 : vector<8x128xf32>
    %cst_71 = arith.constant 1.000000e+00 : f32
    %274 = vector.broadcast %cst_71 : f32 to vector<8x128xf32>
    %275 = arith.subf %274, %270 : vector<8x128xf32>
    %276 = arith.mulf %275, %273 : vector<8x128xf32>
    %277 = arith.mulf %270, %240 : vector<8x128xf32>
    %278 = arith.addf %276, %277 : vector<8x128xf32>
    %279 = arith.truncf %278 : vector<8x128xf32> to vector<8x128xbf16>
    %280 = arith.index_cast %c6_i32 : i32 to index
    %c0_72 = arith.constant 0 : index
    %c0_73 = arith.constant 0 : index
    %281 = vector.load %arg7[%280, %c0_72, %c0_73] : memref<8x8x128xbf16, #tpu.memory_space<vmem>>, vector<1x8x128xbf16>
    %282 = vector.shape_cast %281 : vector<1x8x128xbf16> to vector<8x128xbf16>
    %283 = vector.shape_cast %279 : vector<8x128xbf16> to vector<1x8x128xbf16>
    tpu.vector_store %arg7[%280, %c0_72, %c0_73], %283 {strides = array<i32>} : memref<8x8x128xbf16, #tpu.memory_space<vmem>>, vector<1x8x128xbf16>,
    %c7_i32 = arith.constant 7 : i32
    %284 = arith.truncf %278 : vector<8x128xf32> to vector<8x128xbf16>
    %cst_74 = arith.constant dense<0.000000e+00> : vector<8x384xf32>
    %285 = tpu.matmul %284, %16, %cst_74 {dimension_numbers = #tpu.dot_dimension_numbers<[1], [0], [0], [1], [0, 0, 1, 1], [], []>} : vector<8x128xbf16>, vector<128x384xbf16>, vector<8x384xf32> -> vector<8x384xf32>
    %286 = vector.broadcast %17 : vector<1x384xf32> to vector<8x384xf32>
    %287 = arith.addf %285, %286 : vector<8x384xf32>
    %288 = arith.index_cast %c7_i32 : i32 to index
    %c0_75 = arith.constant 0 : index
    %c0_76 = arith.constant 0 : index
    %289 = vector.load %arg9[%288, %c0_75, %c0_76] : memref<8x8x384xf32, #tpu.memory_space<vmem>>, vector<1x8x384xf32>
    %290 = vector.shape_cast %289 : vector<1x8x384xf32> to vector<8x384xf32>
    %291 = vector.extract_strided_slice %290 {offsets = [0, 0], sizes = [8, 128], strides = [1, 1]} : vector<8x384xf32> to vector<8x128xf32>
    %292 = vector.extract_strided_slice %290 {offsets = [0, 128], sizes = [8, 128], strides = [1, 1]} : vector<8x384xf32> to vector<8x128xf32>
    %293 = vector.extract_strided_slice %290 {offsets = [0, 256], sizes = [8, 128], strides = [1, 1]} : vector<8x384xf32> to vector<8x128xf32>
    %294 = vector.extract_strided_slice %287 {offsets = [0, 0], sizes = [8, 128], strides = [1, 1]} : vector<8x384xf32> to vector<8x128xf32>
    %295 = vector.extract_strided_slice %287 {offsets = [0, 128], sizes = [8, 128], strides = [1, 1]} : vector<8x384xf32> to vector<8x128xf32>
    %296 = vector.extract_strided_slice %287 {offsets = [0, 256], sizes = [8, 128], strides = [1, 1]} : vector<8x384xf32> to vector<8x128xf32>
    %297 = arith.addf %291, %294 : vector<8x128xf32>
    %298 = arith.negf %297 : vector<8x128xf32>
    %299 = math.exp %298 : vector<8x128xf32>
    %cst_77 = arith.constant 1.000000e+00 : f32
    %300 = vector.broadcast %cst_77 : f32 to vector<8x128xf32>
    %301 = arith.addf %300, %299 : vector<8x128xf32>
    %302 = arith.divf %300, %301 : vector<8x128xf32>
    %303 = arith.addf %292, %295 : vector<8x128xf32>
    %304 = arith.negf %303 : vector<8x128xf32>
    %305 = math.exp %304 : vector<8x128xf32>
    %cst_78 = arith.constant 1.000000e+00 : f32
    %306 = vector.broadcast %cst_78 : f32 to vector<8x128xf32>
    %307 = arith.addf %306, %305 : vector<8x128xf32>
    %308 = arith.divf %306, %307 : vector<8x128xf32>
    %309 = arith.mulf %302, %296 : vector<8x128xf32>
    %310 = arith.addf %293, %309 : vector<8x128xf32>
    %311 = math.tanh %310 : vector<8x128xf32>
    %cst_79 = arith.constant 1.000000e+00 : f32
    %312 = vector.broadcast %cst_79 : f32 to vector<8x128xf32>
    %313 = arith.subf %312, %308 : vector<8x128xf32>
    %314 = arith.mulf %313, %311 : vector<8x128xf32>
    %315 = arith.mulf %308, %278 : vector<8x128xf32>
    %316 = arith.addf %314, %315 : vector<8x128xf32>
    %317 = arith.truncf %316 : vector<8x128xf32> to vector<8x128xbf16>
    %318 = arith.index_cast %c7_i32 : i32 to index
    %c0_80 = arith.constant 0 : index
    %c0_81 = arith.constant 0 : index
    %319 = vector.load %arg7[%318, %c0_80, %c0_81] : memref<8x8x128xbf16, #tpu.memory_space<vmem>>, vector<1x8x128xbf16>
    %320 = vector.shape_cast %319 : vector<1x8x128xbf16> to vector<8x128xbf16>
    %321 = vector.shape_cast %317 : vector<8x128xbf16> to vector<1x8x128xbf16>
    tpu.vector_store %arg7[%318, %c0_80, %c0_81], %321 {strides = array<i32>} : memref<8x8x128xbf16, #tpu.memory_space<vmem>>, vector<1x8x128xbf16>,
    %c8_i32 = arith.constant 8 : i32
    %c0_82 = arith.constant 0 : index
    %c0_83 = arith.constant 0 : index
    %322 = vector.load %arg8[%c0_82, %c0_83] : memref<8x128xf32, #tpu.memory_space<vmem>>, vector<8x128xf32>
    tpu.vector_store %arg8[%c0_82, %c0_83], %316 {strides = array<i32>} : memref<8x128xf32, #tpu.memory_space<vmem>>, vector<8x128xf32>,
    return
  }
}

</mosaic_0001>

<llo_original>
// kernel: encoder_decoder_forward.5
$region0: #{encoder_decoder_forward.5}
  #allocation0 [shape = 'u32[]', space=smem, size = 0x4, offset = 0x4, fixed_abs, tag = 'smem constant byte address 0x4 - core index']
  #allocation1 [shape = 'u32[72,128]{1,0:T(1,128)}', space=vmem, size = 0x9000, scoped, tag = 'internal scratch']
  %s0 = inlined_call_operand.vmem [shape: bf16[8,8,128], index: 0, kind: input, shape index: {}]
  %s1 = inlined_call_operand.vmem [shape: bf16[128,128], index: 1, kind: input, shape index: {}]
  %s2 = inlined_call_operand.vmem [shape: f32[1,128], index: 2, kind: input, shape index: {}]
  %s3 = inlined_call_operand.vmem [shape: f32[8,8,128], index: 3, kind: output, shape index: {}]
  %s4 = sld [smem:[#allocation0]]
  $region22: #{encoder_decoder_forward.5} parent=0
    _
  %s6 = ssub.s32 1, %s4
  %s7 = scalar_select 0, %s6, %s4
  // Predicated region
  $region2: #{encoder_decoder_forward.5} parent=0 // pred_check
    _
  $region3: #{encoder_decoder_forward.5} parent=0 // pred_check_branch
    %9 = sbr.rel (0) target = $region5
  $region4: #{encoder_decoder_forward.5} parent=0 // pred_region
    _
  $region5: #{encoder_decoder_forward.5} parent=0 // pred_fallthru
    _
  // Predicated region
  $region6: #{encoder_decoder_forward.5} parent=0 // pred_check
    _
  $region7: #{encoder_decoder_forward.5} parent=0 // pred_check_branch
    %11 = sbr.rel (0) target = $region9
  $region8: #{encoder_decoder_forward.5} parent=0 // pred_region
    _
  $region9: #{encoder_decoder_forward.5} parent=0 // pred_fallthru
    _
  // Predicated region
  $region10: #{encoder_decoder_forward.5} parent=0 // pred_check
    _
  $region11: #{encoder_decoder_forward.5} parent=0 // pred_check_branch
    %13 = sbr.rel (0) target = $region13
  $region12: #{encoder_decoder_forward.5} parent=0 // pred_region
    _
  $region13: #{encoder_decoder_forward.5} parent=0 // pred_fallthru
    _
  %v14 = vld [vmem:[%s0] sm:$0xf]
  %v15 = vld [vmem:[%s0 + $0x4] sm:$0xf]
  %v16 = vld [vmem:[%s0 + $0x8] sm:$0xf]
  %v17 = vld [vmem:[%s0 + $0xc] sm:$0xf]
  %v18 = vld [vmem:[%s0 + $0x10] sm:$0xf]
  %v19 = vld [vmem:[%s0 + $0x14] sm:$0xf]
  %v20 = vld [vmem:[%s0 + $0x18] sm:$0xf]
  %v21 = vld [vmem:[%s0 + $0x1c] sm:$0xf]
  %v22 = vld [vmem:[%s1] sm:$0xf]
  %v23 = vld [vmem:[%s1 + $0x4] sm:$0xf]
  %v24 = vld [vmem:[%s1 + $0x8] sm:$0xf]
  %v25 = vld [vmem:[%s1 + $0xc] sm:$0xf]
  %v26 = vld [vmem:[%s1 + $0x10] sm:$0xf]
  %v27 = vld [vmem:[%s1 + $0x14] sm:$0xf]
  %v28 = vld [vmem:[%s1 + $0x18] sm:$0xf]
  %v29 = vld [vmem:[%s1 + $0x1c] sm:$0xf]
  %v30 = vld [vmem:[%s1 + $0x20] sm:$0xf]
  %v31 = vld [vmem:[%s1 + $0x24] sm:$0xf]
  %v32 = vld [vmem:[%s1 + $0x28] sm:$0xf]
  %v33 = vld [vmem:[%s1 + $0x2c] sm:$0xf]
  %v34 = vld [vmem:[%s1 + $0x30] sm:$0xf]
  %v35 = vld [vmem:[%s1 + $0x34] sm:$0xf]
  %v36 = vld [vmem:[%s1 + $0x38] sm:$0xf]
  %v37 = vld [vmem:[%s1 + $0x3c] sm:$0xf]
  %v38 = vld [vmem:[%s2] sm:$0x1]
  %v40 = vperm.slane %v38, 0
  %v50 = vunpack.c.l.b16 %v14
  %v51 = vunpack.c.l.b16 %v15
  %v52 = vunpack.c.l.b16 %v16
  %v53 = vunpack.c.l.b16 %v17
  %v54 = vunpack.c.l.b16 %v18
  %v55 = vunpack.c.l.b16 %v19
  %v56 = vunpack.c.l.b16 %v20
  %v57 = vunpack.c.l.b16 %v21
  %v58 = vpack.c.b16 %v51, %v50
  %v59 = vpack.c.b16 %v53, %v52
  %v60 = vpack.c.b16 %v55, %v54
  %v61 = vpack.c.b16 %v57, %v56
  %v82 = vunpack.c.l.b16 %v22
  %v83 = vunpack.c.l.b16 %v23
  %v84 = vunpack.c.l.b16 %v24
  %v85 = vunpack.c.l.b16 %v25
  %v86 = vunpack.c.l.b16 %v26
  %v87 = vunpack.c.l.b16 %v27
  %v88 = vunpack.c.l.b16 %v28
  %v89 = vunpack.c.l.b16 %v29
  %v90 = vunpack.c.l.b16 %v30
  %v91 = vunpack.c.l.b16 %v31
  %v92 = vunpack.c.l.b16 %v32
  %v93 = vunpack.c.l.b16 %v33
  %v94 = vunpack.c.l.b16 %v34
  %v95 = vunpack.c.l.b16 %v35
  %v96 = vunpack.c.l.b16 %v36
  %v97 = vunpack.c.l.b16 %v37
  %v98 = vpack.c.b16 %v83, %v82
  %v99 = vpack.c.b16 %v85, %v84
  %v100 = vpack.c.b16 %v87, %v86
  %v101 = vpack.c.b16 %v89, %v88
  %v102 = vpack.c.b16 %v91, %v90
  %v103 = vpack.c.b16 %v93, %v92
  %v104 = vpack.c.b16 %v95, %v94
  %v105 = vpack.c.b16 %v97, %v96
  %114 = vmatpush.bf16.msra.mxu0 %v105
  %115 = vmatpush.bf16.msra.mxu0 %v104
  %116 = vmatpush.bf16.msra.mxu0 %v103
  %117 = vmatpush.bf16.msra.mxu0 %v102
  %118 = vmatpush.bf16.msra.mxu0 %v101
  %119 = vmatpush.bf16.msra.mxu0 %v100
  %120 = vmatpush.bf16.msra.mxu0 %v99
  %121 = vmatpush.bf16.msra.mxu0 %v98
  %122 = vmatmul.bf16.gmra.mxu0 %v58
  %v123 = vpop.f32.mrf.mxu0
  %v124 = vadd.f32 %v40, %v123
  %v125 = vpop.f32.mrf.mxu0
  %v126 = vadd.f32 %v40, %v125
  %127 = vmatmul.bf16.gmra.mxu0 %v59
  %v128 = vpop.f32.mrf.mxu0
  %v129 = vadd.f32 %v40, %v128
  %v130 = vpop.f32.mrf.mxu0
  %v131 = vadd.f32 %v40, %v130
  %132 = vmatmul.bf16.gmra.mxu0 %v60
  %v133 = vpop.f32.mrf.mxu0
  %v134 = vadd.f32 %v40, %v133
  %v135 = vpop.f32.mrf.mxu0
  %v136 = vadd.f32 %v40, %v135
  %137 = vmatmul.bf16.gmra.mxu0 %v61
  %v138 = vpop.f32.mrf.mxu0
  %v139 = vadd.f32 %v40, %v138
  %v140 = vpop.f32.mrf.mxu0
  %v141 = vadd.f32 %v40, %v140
  %142 = vdwg.mxu0
  %143 = vst [vmem:[%s3] sm:$0xff] %v124
  %144 = vst [vmem:[%s3 + $0x8] sm:$0xff] %v126
  %145 = vst [vmem:[%s3 + $0x10] sm:$0xff] %v129
  %146 = vst [vmem:[%s3 + $0x18] sm:$0xff] %v131
  %147 = vst [vmem:[%s3 + $0x20] sm:$0xff] %v134
  %148 = vst [vmem:[%s3 + $0x28] sm:$0xff] %v136
  %149 = vst [vmem:[%s3 + $0x30] sm:$0xff] %v139
  %150 = vst [vmem:[%s3 + $0x38] sm:$0xff] %v141
  // Predicated region
  $region14: #{encoder_decoder_forward.5} parent=0 // pred_check
    _
  $region15: #{encoder_decoder_forward.5} parent=0 // pred_check_branch
    %152 = sbr.rel (0) target = $region17
  $region16: #{encoder_decoder_forward.5} parent=0 // pred_region
    _
  $region17: #{encoder_decoder_forward.5} parent=0 // pred_fallthru
    _
  // Predicated region
  $region18: #{encoder_decoder_forward.5} parent=0 // pred_check
    _
  $region19: #{encoder_decoder_forward.5} parent=0 // pred_check_branch
    %154 = sbr.rel (0) target = $region21
  $region20: #{encoder_decoder_forward.5} parent=0 // pred_region
    _
  $region21: #{encoder_decoder_forward.5} parent=0 // pred_fallthru
    _

// kernel: encoder_decoder_forward.3
$region0: #{encoder_decoder_forward.3}
  #allocation0 [shape = 'u32[]', space=smem, size = 0x4, offset = 0x4, fixed_abs, tag = 'smem constant byte address 0x4 - core index']
  #allocation1 [shape = 'u32[72,128]{1,0:T(1,128)}', space=vmem, size = 0x9000, scoped, tag = 'internal scratch']
  #allocation2 [shape = 'f32[8,8,384]{2,1,0:T(8,128)}', space=vmem, size = 0x18000, scoped, tag = 'scratch operand']
  %s0 = inlined_call_operand.vmem [shape: bf16[8,8,128], index: 0, kind: input, shape index: {}]
  %s1 = inlined_call_operand.vmem [shape: bf16[128,384], index: 1, kind: input, shape index: {}]
  %s2 = inlined_call_operand.vmem [shape: bf16[128,384], index: 2, kind: input, shape index: {}]
  %s3 = inlined_call_operand.vmem [shape: f32[1,384], index: 3, kind: input, shape index: {}]
  %s4 = inlined_call_operand.vmem [shape: f32[1,384], index: 4, kind: input, shape index: {}]
  %s5 = inlined_call_operand.vmem [shape: f32[8,128], index: 5, kind: output, shape index: {}]
  %s6 = sld [smem:[#allocation0]]
  $region30: #{encoder_decoder_forward.3} parent=0
    _
  %s8 = ssub.s32 1, %s6
  %s9 = scalar_select 0, %s8, %s6
  // Predicated region
  $region2: #{encoder_decoder_forward.3} parent=0 // pred_check
    _
  $region3: #{encoder_decoder_forward.3} parent=0 // pred_check_branch
    %11 = sbr.rel (0) target = $region5
  $region4: #{encoder_decoder_forward.3} parent=0 // pred_region
    _
  $region5: #{encoder_decoder_forward.3} parent=0 // pred_fallthru
    _
  // Predicated region
  $region6: #{encoder_decoder_forward.3} parent=0 // pred_check
    _
  $region7: #{encoder_decoder_forward.3} parent=0 // pred_check_branch
    %13 = sbr.rel (0) target = $region9
  $region8: #{encoder_decoder_forward.3} parent=0 // pred_region
    _
  $region9: #{encoder_decoder_forward.3} parent=0 // pred_fallthru
    _
  // Predicated region
  $region10: #{encoder_decoder_forward.3} parent=0 // pred_check
    _
  $region11: #{encoder_decoder_forward.3} parent=0 // pred_check_branch
    %15 = sbr.rel (0) target = $region13
  $region12: #{encoder_decoder_forward.3} parent=0 // pred_region
    _
  $region13: #{encoder_decoder_forward.3} parent=0 // pred_fallthru
    _
  // Predicated region
  $region14: #{encoder_decoder_forward.3} parent=0 // pred_check
    _
  $region15: #{encoder_decoder_forward.3} parent=0 // pred_check_branch
    %17 = sbr.rel (0) target = $region17
  $region16: #{encoder_decoder_forward.3} parent=0 // pred_region
    _
  $region17: #{encoder_decoder_forward.3} parent=0 // pred_fallthru
    _
  // Predicated region
  $region18: #{encoder_decoder_forward.3} parent=0 // pred_check
    _
  $region19: #{encoder_decoder_forward.3} parent=0 // pred_check_branch
    %19 = sbr.rel (0) target = $region21
  $region20: #{encoder_decoder_forward.3} parent=0 // pred_region
    _
  $region21: #{encoder_decoder_forward.3} parent=0 // pred_fallthru
    _
  %v21 = vld [vmem:[%s0] sm:$0xf]
  %v22 = vld [vmem:[%s0 + $0x4] sm:$0xf]
  %v23 = vld [vmem:[%s0 + $0x8] sm:$0xf]
  %v24 = vld [vmem:[%s0 + $0xc] sm:$0xf]
  %v25 = vld [vmem:[%s0 + $0x10] sm:$0xf]
  %v26 = vld [vmem:[%s0 + $0x14] sm:$0xf]
  %v27 = vld [vmem:[%s0 + $0x18] sm:$0xf]
  %v28 = vld [vmem:[%s0 + $0x1c] sm:$0xf]
  %v29 = vld [vmem:[%s1] sm:$0xff]
  %v30 = vld [vmem:[%s1 + $0x8] sm:$0xf]
  %v31 = vld [vmem:[%s1 + $0xc] sm:$0xff]
  %v32 = vld [vmem:[%s1 + $0x14] sm:$0xf]
  %v33 = vld [vmem:[%s1 + $0x18] sm:$0xff]
  %v34 = vld [vmem:[%s1 + $0x20] sm:$0xf]
  %v35 = vld [vmem:[%s1 + $0x24] sm:$0xff]
  %v36 = vld [vmem:[%s1 + $0x2c] sm:$0xf]
  %v37 = vld [vmem:[%s1 + $0x30] sm:$0xff]
  %v38 = vld [vmem:[%s1 + $0x38] sm:$0xf]
  %v39 = vld [vmem:[%s1 + $0x3c] sm:$0xff]
  %v40 = vld [vmem:[%s1 + $0x44] sm:$0xf]
  %v41 = vld [vmem:[%s1 + $0x48] sm:$0xff]
  %v42 = vld [vmem:[%s1 + $0x50] sm:$0xf]
  %v43 = vld [vmem:[%s1 + $0x54] sm:$0xff]
  %v44 = vld [vmem:[%s1 + $0x5c] sm:$0xf]
  %v45 = vld [vmem:[%s1 + $0x60] sm:$0xff]
  %v46 = vld [vmem:[%s1 + $0x68] sm:$0xf]
  %v47 = vld [vmem:[%s1 + $0x6c] sm:$0xff]
  %v48 = vld [vmem:[%s1 + $0x74] sm:$0xf]
  %v49 = vld [vmem:[%s1 + $0x78] sm:$0xff]
  %v50 = vld [vmem:[%s1 + $0x80] sm:$0xf]
  %v51 = vld [vmem:[%s1 + $0x84] sm:$0xff]
  %v52 = vld [vmem:[%s1 + $0x8c] sm:$0xf]
  %v53 = vld [vmem:[%s1 + $0x90] sm:$0xff]
  %v54 = vld [vmem:[%s1 + $0x98] sm:$0xf]
  %v55 = vld [vmem:[%s1 + $0x9c] sm:$0xff]
  %v56 = vld [vmem:[%s1 + $0xa4] sm:$0xf]
  %v57 = vld [vmem:[%s1 + $0xa8] sm:$0xff]
  %v58 = vld [vmem:[%s1 + $0xb0] sm:$0xf]
  %v59 = vld [vmem:[%s1 + $0xb4] sm:$0xff]
  %v60 = vld [vmem:[%s1 + $0xbc] sm:$0xf]
  %v61 = vld [vmem:[%s3] sm:$0x7]
  %v63 = vperm.slane %v61, 0
  %v64 = vperm.slane %v61, 1
  %v65 = vperm.slane %v61, 2
  %v77 = vunpack.c.l.b16 %v21
  %v78 = vunpack.c.l.b16 %v22
  %v79 = vunpack.c.l.b16 %v23
  %v80 = vunpack.c.l.b16 %v24
  %v81 = vunpack.c.l.b16 %v25
  %v82 = vunpack.c.l.b16 %v26
  %v83 = vunpack.c.l.b16 %v27
  %v84 = vunpack.c.l.b16 %v28
  %v85 = vpack.c.b16 %v78, %v77
  %v86 = vpack.c.b16 %v80, %v79
  %v87 = vpack.c.b16 %v82, %v81
  %v88 = vpack.c.b16 %v84, %v83
  %v125 = vunpack.c.l.b16 %v29
  %v126 = vunpack.c.h.b16 %v29
  %v127 = vunpack.c.l.b16 %v30
  %v128 = vunpack.c.l.b16 %v31
  %v129 = vunpack.c.h.b16 %v31
  %v130 = vunpack.c.l.b16 %v32
  %v131 = vunpack.c.l.b16 %v33
  %v132 = vunpack.c.h.b16 %v33
  %v133 = vunpack.c.l.b16 %v34
  %v134 = vunpack.c.l.b16 %v35
  %v135 = vunpack.c.h.b16 %v35
  %v136 = vunpack.c.l.b16 %v36
  %v137 = vunpack.c.l.b16 %v37
  %v138 = vunpack.c.h.b16 %v37
  %v139 = vunpack.c.l.b16 %v38
  %v140 = vunpack.c.l.b16 %v39
  %v141 = vunpack.c.h.b16 %v39
  %v142 = vunpack.c.l.b16 %v40
  %v143 = vunpack.c.l.b16 %v41
  %v144 = vunpack.c.h.b16 %v41
  %v145 = vunpack.c.l.b16 %v42
  %v146 = vunpack.c.l.b16 %v43
  %v147 = vunpack.c.h.b16 %v43
  %v148 = vunpack.c.l.b16 %v44
  %v149 = vunpack.c.l.b16 %v45
  %v150 = vunpack.c.h.b16 %v45
  %v151 = vunpack.c.l.b16 %v46
  %v152 = vunpack.c.l.b16 %v47
  %v153 = vunpack.c.h.b16 %v47
  %v154 = vunpack.c.l.b16 %v48
  %v155 = vunpack.c.l.b16 %v49
  %v156 = vunpack.c.h.b16 %v49
  %v157 = vunpack.c.l.b16 %v50
  %v158 = vunpack.c.l.b16 %v51
  %v159 = vunpack.c.h.b16 %v51
  %v160 = vunpack.c.l.b16 %v52
  %v161 = vunpack.c.l.b16 %v53
  %v162 = vunpack.c.h.b16 %v53
  %v163 = vunpack.c.l.b16 %v54
  %v164 = vunpack.c.l.b16 %v55
  %v165 = vunpack.c.h.b16 %v55
  %v166 = vunpack.c.l.b16 %v56
  %v167 = vunpack.c.l.b16 %v57
  %v168 = vunpack.c.h.b16 %v57
  %v169 = vunpack.c.l.b16 %v58
  %v170 = vunpack.c.l.b16 %v59
  %v171 = vunpack.c.h.b16 %v59
  %v172 = vunpack.c.l.b16 %v60
  %v173 = vpack.c.b16 %v128, %v125
  %v174 = vpack.c.b16 %v129, %v126
  %v175 = vpack.c.b16 %v130, %v127
  %v176 = vpack.c.b16 %v134, %v131
  %v177 = vpack.c.b16 %v135, %v132
  %v178 = vpack.c.b16 %v136, %v133
  %v179 = vpack.c.b16 %v140, %v137
  %v180 = vpack.c.b16 %v141, %v138
  %v181 = vpack.c.b16 %v142, %v139
  %v182 = vpack.c.b16 %v146, %v143
  %v183 = vpack.c.b16 %v147, %v144
  %v184 = vpack.c.b16 %v148, %v145
  %v185 = vpack.c.b16 %v152, %v149
  %v186 = vpack.c.b16 %v153, %v150
  %v187 = vpack.c.b16 %v154, %v151
  %v188 = vpack.c.b16 %v158, %v155
  %v189 = vpack.c.b16 %v159, %v156
  %v190 = vpack.c.b16 %v160, %v157
  %v191 = vpack.c.b16 %v164, %v161
  %v192 = vpack.c.b16 %v165, %v162
  %v193 = vpack.c.b16 %v166, %v163
  %v194 = vpack.c.b16 %v170, %v167
  %v195 = vpack.c.b16 %v171, %v168
  %v196 = vpack.c.b16 %v172, %v169
  %221 = vmatpush.bf16.msra.mxu0 %v194
  %222 = vmatpush.bf16.msra.mxu0 %v191
  %223 = vmatpush.bf16.msra.mxu0 %v188
  %224 = vmatpush.bf16.msra.mxu0 %v185
  %225 = vmatpush.bf16.msra.mxu0 %v182
  %226 = vmatpush.bf16.msra.mxu0 %v179
  %227 = vmatpush.bf16.msra.mxu0 %v176
  %228 = vmatpush.bf16.msra.mxu0 %v173
  %229 = vmatmul.bf16.gmra.mxu0 %v85
  %v230 = vpop.f32.mrf.mxu0
  %v231 = vadd.f32 %v63, %v230
  %v232 = vpop.f32.mrf.mxu0
  %v233 = vadd.f32 %v63, %v232
  %234 = vmatmul.bf16.gmra.mxu0 %v86
  %v235 = vpop.f32.mrf.mxu0
  %v236 = vadd.f32 %v63, %v235
  %v237 = vpop.f32.mrf.mxu0
  %v238 = vadd.f32 %v63, %v237
  %239 = vmatmul.bf16.gmra.mxu0 %v87
  %v240 = vpop.f32.mrf.mxu0
  %v241 = vadd.f32 %v63, %v240
  %v242 = vpop.f32.mrf.mxu0
  %v243 = vadd.f32 %v63, %v242
  %244 = vmatmul.bf16.gmra.mxu0 %v88
  %v245 = vpop.f32.mrf.mxu0
  %v246 = vadd.f32 %v63, %v245
  %v247 = vpop.f32.mrf.mxu0
  %v248 = vadd.f32 %v63, %v247
  %249 = vdwg.mxu0
  %250 = vmatpush.bf16.msra.mxu0 %v195
  %251 = vmatpush.bf16.msra.mxu0 %v192
  %252 = vmatpush.bf16.msra.mxu0 %v189
  %253 = vmatpush.bf16.msra.mxu0 %v186
  %254 = vmatpush.bf16.msra.mxu0 %v183
  %255 = vmatpush.bf16.msra.mxu0 %v180
  %256 = vmatpush.bf16.msra.mxu0 %v177
  %257 = vmatpush.bf16.msra.mxu0 %v174
  %258 = vmatmul.bf16.gmra.mxu0 %v85
  %v259 = vpop.f32.mrf.mxu0
  %v260 = vadd.f32 %v64, %v259
  %v261 = vpop.f32.mrf.mxu0
  %v262 = vadd.f32 %v64, %v261
  %263 = vmatmul.bf16.gmra.mxu0 %v86
  %v264 = vpop.f32.mrf.mxu0
  %v265 = vadd.f32 %v64, %v264
  %v266 = vpop.f32.mrf.mxu0
  %v267 = vadd.f32 %v64, %v266
  %268 = vmatmul.bf16.gmra.mxu0 %v87
  %v269 = vpop.f32.mrf.mxu0
  %v270 = vadd.f32 %v64, %v269
  %v271 = vpop.f32.mrf.mxu0
  %v272 = vadd.f32 %v64, %v271
  %273 = vmatmul.bf16.gmra.mxu0 %v88
  %v274 = vpop.f32.mrf.mxu0
  %v275 = vadd.f32 %v64, %v274
  %v276 = vpop.f32.mrf.mxu0
  %v277 = vadd.f32 %v64, %v276
  %278 = vdwg.mxu0
  %279 = vmatpush.bf16.msra.mxu0 %v196
  %280 = vmatpush.bf16.msra.mxu0 %v193
  %281 = vmatpush.bf16.msra.mxu0 %v190
  %282 = vmatpush.bf16.msra.mxu0 %v187
  %283 = vmatpush.bf16.msra.mxu0 %v184
  %284 = vmatpush.bf16.msra.mxu0 %v181
  %285 = vmatpush.bf16.msra.mxu0 %v178
  %286 = vmatpush.bf16.msra.mxu0 %v175
  %287 = vmatmul.bf16.gmra.mxu0 %v85
  %v288 = vpop.f32.mrf.mxu0
  %v289 = vadd.f32 %v65, %v288
  %v290 = vpop.f32.mrf.mxu0
  %v291 = vadd.f32 %v65, %v290
  %292 = vmatmul.bf16.gmra.mxu0 %v86
  %v293 = vpop.f32.mrf.mxu0
  %v294 = vadd.f32 %v65, %v293
  %v295 = vpop.f32.mrf.mxu0
  %v296 = vadd.f32 %v65, %v295
  %297 = vmatmul.bf16.gmra.mxu0 %v87
  %v298 = vpop.f32.mrf.mxu0
  %v299 = vadd.f32 %v65, %v298
  %v300 = vpop.f32.mrf.mxu0
  %v301 = vadd.f32 %v65, %v300
  %302 = vmatmul.bf16.gmra.mxu0 %v88
  %v303 = vpop.f32.mrf.mxu0
  %v304 = vadd.f32 %v65, %v303
  %v305 = vpop.f32.mrf.mxu0
  %v306 = vadd.f32 %v65, %v305
  %307 = vdwg.mxu0
  %308 = vst [vmem:[#allocation2] sm:$0xff] %v231
  %309 = vst [vmem:[#allocation2 + $0x8] sm:$0xff] %v260
  %310 = vst [vmem:[#allocation2 + $0x10] sm:$0xff] %v289
  %311 = vst [vmem:[#allocation2 + $0x18] sm:$0xff] %v233
  %312 = vst [vmem:[#allocation2 + $0x20] sm:$0xff] %v262
  %313 = vst [vmem:[#allocation2 + $0x28] sm:$0xff] %v291
  %314 = vst [vmem:[#allocation2 + $0x30] sm:$0xff] %v236
  %315 = vst [vmem:[#allocation2 + $0x38] sm:$0xff] %v265
  %316 = vst [vmem:[#allocation2 + $0x40] sm:$0xff] %v294
  %317 = vst [vmem:[#allocation2 + $0x48] sm:$0xff] %v238
  %318 = vst [vmem:[#allocation2 + $0x50] sm:$0xff] %v267
  %319 = vst [vmem:[#allocation2 + $0x58] sm:$0xff] %v296
  %320 = vst [vmem:[#allocation2 + $0x60] sm:$0xff] %v241
  %321 = vst [vmem:[#allocation2 + $0x68] sm:$0xff] %v270
  %322 = vst [vmem:[#allocation2 + $0x70] sm:$0xff] %v299
  %323 = vst [vmem:[#allocation2 + $0x78] sm:$0xff] %v243
  %324 = vst [vmem:[#allocation2 + $0x80] sm:$0xff] %v272
  %325 = vst [vmem:[#allocation2 + $0x88] sm:$0xff] %v301
  %326 = vst [vmem:[#allocation2 + $0x90] sm:$0xff] %v246
  %327 = vst [vmem:[#allocation2 + $0x98] sm:$0xff] %v275
  %328 = vst [vmem:[#allocation2 + $0xa0] sm:$0xff] %v304
  %329 = vst [vmem:[#allocation2 + $0xa8] sm:$0xff] %v248
  %330 = vst [vmem:[#allocation2 + $0xb0] sm:$0xff] %v277
  %331 = vst [vmem:[#allocation2 + $0xb8] sm:$0xff] %v306
  %v332 = vld [vmem:[%s2] sm:$0xff]
  %v333 = vld [vmem:[%s2 + $0x8] sm:$0xf]
  %v334 = vld [vmem:[%s2 + $0xc] sm:$0xff]
  %v335 = vld [vmem:[%s2 + $0x14] sm:$0xf]
  %v336 = vld [vmem:[%s2 + $0x18] sm:$0xff]
  %v337 = vld [vmem:[%s2 + $0x20] sm:$0xf]
  %v338 = vld [vmem:[%s2 + $0x24] sm:$0xff]
  %v339 = vld [vmem:[%s2 + $0x2c] sm:$0xf]
  %v340 = vld [vmem:[%s2 + $0x30] sm:$0xff]
  %v341 = vld [vmem:[%s2 + $0x38] sm:$0xf]
  %v342 = vld [vmem:[%s2 + $0x3c] sm:$0xff]
  %v343 = vld [vmem:[%s2 + $0x44] sm:$0xf]
  %v344 = vld [vmem:[%s2 + $0x48] sm:$0xff]
  %v345 = vld [vmem:[%s2 + $0x50] sm:$0xf]
  %v346 = vld [vmem:[%s2 + $0x54] sm:$0xff]
  %v347 = vld [vmem:[%s2 + $0x5c] sm:$0xf]
  %v348 = vld [vmem:[%s2 + $0x60] sm:$0xff]
  %v349 = vld [vmem:[%s2 + $0x68] sm:$0xf]
  %v350 = vld [vmem:[%s2 + $0x6c] sm:$0xff]
  %v351 = vld [vmem:[%s2 + $0x74] sm:$0xf]
  %v352 = vld [vmem:[%s2 + $0x78] sm:$0xff]
  %v353 = vld [vmem:[%s2 + $0x80] sm:$0xf]
  %v354 = vld [vmem:[%s2 + $0x84] sm:$0xff]
  %v355 = vld [vmem:[%s2 + $0x8c] sm:$0xf]
  %v356 = vld [vmem:[%s2 + $0x90] sm:$0xff]
  %v357 = vld [vmem:[%s2 + $0x98] sm:$0xf]
  %v358 = vld [vmem:[%s2 + $0x9c] sm:$0xff]
  %v359 = vld [vmem:[%s2 + $0xa4] sm:$0xf]
  %v360 = vld [vmem:[%s2 + $0xa8] sm:$0xff]
  %v361 = vld [vmem:[%s2 + $0xb0] sm:$0xf]
  %v362 = vld [vmem:[%s2 + $0xb4] sm:$0xff]
  %v363 = vld [vmem:[%s2 + $0xbc] sm:$0xf]
  %v364 = vld [vmem:[%s4] sm:$0x7]
  %v366 = vperm.slane %v364, 0
  %v367 = vperm.slane %v364, 1
  %v368 = vperm.slane %v364, 2
  %v404 = vunpack.c.l.b16 %v332
  %v405 = vunpack.c.h.b16 %v332
  %v406 = vunpack.c.l.b16 %v333
  %v407 = vunpack.c.l.b16 %v334
  %v408 = vunpack.c.h.b16 %v334
  %v409 = vunpack.c.l.b16 %v335
  %v410 = vunpack.c.l.b16 %v336
  %v411 = vunpack.c.h.b16 %v336
  %v412 = vunpack.c.l.b16 %v337
  %v413 = vunpack.c.l.b16 %v338
  %v414 = vunpack.c.h.b16 %v338
  %v415 = vunpack.c.l.b16 %v339
  %v416 = vunpack.c.l.b16 %v340
  %v417 = vunpack.c.h.b16 %v340
  %v418 = vunpack.c.l.b16 %v341
  %v419 = vunpack.c.l.b16 %v342
  %v420 = vunpack.c.h.b16 %v342
  %v421 = vunpack.c.l.b16 %v343
  %v422 = vunpack.c.l.b16 %v344
  %v423 = vunpack.c.h.b16 %v344
  %v424 = vunpack.c.l.b16 %v345
  %v425 = vunpack.c.l.b16 %v346
  %v426 = vunpack.c.h.b16 %v346
  %v427 = vunpack.c.l.b16 %v347
  %v428 = vunpack.c.l.b16 %v348
  %v429 = vunpack.c.h.b16 %v348
  %v430 = vunpack.c.l.b16 %v349
  %v431 = vunpack.c.l.b16 %v350
  %v432 = vunpack.c.h.b16 %v350
  %v433 = vunpack.c.l.b16 %v351
  %v434 = vunpack.c.l.b16 %v352
  %v435 = vunpack.c.h.b16 %v352
  %v436 = vunpack.c.l.b16 %v353
  %v437 = vunpack.c.l.b16 %v354
  %v438 = vunpack.c.h.b16 %v354
  %v439 = vunpack.c.l.b16 %v355
  %v440 = vunpack.c.l.b16 %v356
  %v441 = vunpack.c.h.b16 %v356
  %v442 = vunpack.c.l.b16 %v357
  %v443 = vunpack.c.l.b16 %v358
  %v444 = vunpack.c.h.b16 %v358
  %v445 = vunpack.c.l.b16 %v359
  %v446 = vunpack.c.l.b16 %v360
  %v447 = vunpack.c.h.b16 %v360
  %v448 = vunpack.c.l.b16 %v361
  %v449 = vunpack.c.l.b16 %v362
  %v450 = vunpack.c.h.b16 %v362
  %v451 = vunpack.c.l.b16 %v363
  %v452 = vpack.c.b16 %v407, %v404
  %v453 = vpack.c.b16 %v408, %v405
  %v454 = vpack.c.b16 %v409, %v406
  %v455 = vpack.c.b16 %v413, %v410
  %v456 = vpack.c.b16 %v414, %v411
  %v457 = vpack.c.b16 %v415, %v412
  %v458 = vpack.c.b16 %v419, %v416
  %v459 = vpack.c.b16 %v420, %v417
  %v460 = vpack.c.b16 %v421, %v418
  %v461 = vpack.c.b16 %v425, %v422
  %v462 = vpack.c.b16 %v426, %v423
  %v463 = vpack.c.b16 %v427, %v424
  %v464 = vpack.c.b16 %v431, %v428
  %v465 = vpack.c.b16 %v432, %v429
  %v466 = vpack.c.b16 %v433, %v430
  %v467 = vpack.c.b16 %v437, %v434
  %v468 = vpack.c.b16 %v438, %v435
  %v469 = vpack.c.b16 %v439, %v436
  %v470 = vpack.c.b16 %v443, %v440
  %v471 = vpack.c.b16 %v444, %v441
  %v472 = vpack.c.b16 %v445, %v442
  %v473 = vpack.c.b16 %v449, %v446
  %v474 = vpack.c.b16 %v450, %v447
  %v475 = vpack.c.b16 %v451, %v448
  %500 = vmatpush.bf16.msra.mxu0 %v473
  %501 = vmatpush.bf16.msra.mxu0 %v470
  %502 = vmatpush.bf16.msra.mxu0 %v467
  %503 = vmatpush.bf16.msra.mxu0 %v464
  %504 = vmatpush.bf16.msra.mxu0 %v461
  %505 = vmatpush.bf16.msra.mxu0 %v458
  %506 = vmatpush.bf16.msra.mxu0 %v455
  %507 = vmatpush.bf16.msra.mxu0 %v452
  %508 = vmatmul.bf16.gmra.mxu0 0
  %v509 = vpop.f32.mrf.mxu0
  %v510 = vadd.f32 %v366, %v509
  %v511 = vpop.f32.mrf.mxu0
  %512 = vdwg.mxu0
  %513 = vmatpush.bf16.msra.mxu0 %v474
  %514 = vmatpush.bf16.msra.mxu0 %v471
  %515 = vmatpush.bf16.msra.mxu0 %v468
  %516 = vmatpush.bf16.msra.mxu0 %v465
  %517 = vmatpush.bf16.msra.mxu0 %v462
  %518 = vmatpush.bf16.msra.mxu0 %v459
  %519 = vmatpush.bf16.msra.mxu0 %v456
  %520 = vmatpush.bf16.msra.mxu0 %v453
  %521 = vmatmul.bf16.gmra.mxu0 0
  %v522 = vpop.f32.mrf.mxu0
  %v523 = vadd.f32 %v367, %v522
  %v524 = vpop.f32.mrf.mxu0
  %525 = vdwg.mxu0
  %526 = vmatpush.bf16.msra.mxu0 %v475
  %527 = vmatpush.bf16.msra.mxu0 %v472
  %528 = vmatpush.bf16.msra.mxu0 %v469
  %529 = vmatpush.bf16.msra.mxu0 %v466
  %530 = vmatpush.bf16.msra.mxu0 %v463
  %531 = vmatpush.bf16.msra.mxu0 %v460
  %532 = vmatpush.bf16.msra.mxu0 %v457
  %533 = vmatpush.bf16.msra.mxu0 %v454
  %534 = vmatmul.bf16.gmra.mxu0 0
  %v535 = vpop.f32.mrf.mxu0
  %v536 = vadd.f32 %v368, %v535
  %v537 = vpop.f32.mrf.mxu0
  %538 = vdwg.mxu0
  %v539 = vld [vmem:[#allocation2] sm:$0xff]
  %v540 = vld [vmem:[#allocation2 + $0x8] sm:$0xff]
  %v541 = vld [vmem:[#allocation2 + $0x10] sm:$0xff]
  %v542 = vadd.f32 %v539, %v510
  %v543 = vxor.u32 %v542, 2147483648
  %v544 = vmul.f32 %v543, 1.442695
  %v545 = vpow.pop %v544
  %v546 = vadd.f32 %v545, 1.0
  %v547 = vrcp.pop %v546
  %v548 = vmul.f32 %v546, %v547
  %v549 = vsub.f32 1.0, %v548
  %v550 = vmul.f32 %v547, %v549
  %v551 = vadd.f32 %v547, %v550
  %vm552 = vweird.f32 %v546
  %vm553 = vweird.f32 %v547
  %vm554 = vmor %vm552, %vm553
  %v555 = vsel %vm554, %v547, %v551
  %v556 = vand.u32 2147483647, %v546
  %vm557 = vcmp.eq.f32.partialorder %v556, 8.507059e+37
  %v558 = vand.u32 %v546, 2147483648
  %v559 = vor.u32 1.1754944e-38, %v558
  %v560 = vsel %vm557, %v559, %v555
  %v561 = vmul.f32 1.0, %v560
  %v562 = vadd.f32 %v540, %v523
  %v563 = vxor.u32 %v562, 2147483648
  %v564 = vmul.f32 %v563, 1.442695
  %v565 = vpow.pop %v564
  %v566 = vadd.f32 %v565, 1.0
  %v567 = vrcp.pop %v566
  %v568 = vmul.f32 %v566, %v567
  %v569 = vsub.f32 1.0, %v568
  %v570 = vmul.f32 %v567, %v569
  %v571 = vadd.f32 %v567, %v570
  %vm572 = vweird.f32 %v566
  %vm573 = vweird.f32 %v567
  %vm574 = vmor %vm572, %vm573
  %v575 = vsel %vm574, %v567, %v571
  %v576 = vand.u32 2147483647, %v566
  %vm577 = vcmp.eq.f32.partialorder %v576, 8.507059e+37
  %v578 = vand.u32 %v566, 2147483648
  %v579 = vor.u32 1.1754944e-38, %v578
  %v580 = vsel %vm577, %v579, %v575
  %v581 = vmul.f32 1.0, %v580
  %v582 = vmul.f32 %v561, %v536
  %v583 = vadd.f32 %v541, %v582
  %v584 = vtanh.pop %v583
  %v585 = vsub.f32 1.0, %v581
  %v586 = vmul.f32 %v585, %v584
  %v587 = vmul.f32 %v581, 0.0
  %v588 = vadd.f32 %v586, %v587
  %v589 = vpack.c.bf16 %v588, %v588
  %590 = vmatpush.bf16.msra.mxu0 %v473
  %591 = vmatpush.bf16.msra.mxu0 %v470
  %592 = vmatpush.bf16.msra.mxu0 %v467
  %593 = vmatpush.bf16.msra.mxu0 %v464
  %594 = vmatpush.bf16.msra.mxu0 %v461
  %595 = vmatpush.bf16.msra.mxu0 %v458
  %596 = vmatpush.bf16.msra.mxu0 %v455
  %597 = vmatpush.bf16.msra.mxu0 %v452
  %598 = vmatmul.bf16.gmra.mxu0 %v589
  %v599 = vpop.f32.mrf.mxu0
  %v600 = vadd.f32 %v366, %v599
  %v601 = vpop.f32.mrf.mxu0
  %602 = vdwg.mxu0
  %603 = vmatpush.bf16.msra.mxu0 %v474
  %604 = vmatpush.bf16.msra.mxu0 %v471
  %605 = vmatpush.bf16.msra.mxu0 %v468
  %606 = vmatpush.bf16.msra.mxu0 %v465
  %607 = vmatpush.bf16.msra.mxu0 %v462
  %608 = vmatpush.bf16.msra.mxu0 %v459
  %609 = vmatpush.bf16.msra.mxu0 %v456
  %610 = vmatpush.bf16.msra.mxu0 %v453
  %611 = vmatmul.bf16.gmra.mxu0 %v589
  %v612 = vpop.f32.mrf.mxu0
  %v613 = vadd.f32 %v367, %v612
  %v614 = vpop.f32.mrf.mxu0
  %615 = vdwg.mxu0
  %616 = vmatpush.bf16.msra.mxu0 %v475
  %617 = vmatpush.bf16.msra.mxu0 %v472
  %618 = vmatpush.bf16.msra.mxu0 %v469
  %619 = vmatpush.bf16.msra.mxu0 %v466
  %620 = vmatpush.bf16.msra.mxu0 %v463
  %621 = vmatpush.bf16.msra.mxu0 %v460
  %622 = vmatpush.bf16.msra.mxu0 %v457
  %623 = vmatpush.bf16.msra.mxu0 %v454
  %624 = vmatmul.bf16.gmra.mxu0 %v589
  %v625 = vpop.f32.mrf.mxu0
  %v626 = vadd.f32 %v368, %v625
  %v627 = vpop.f32.mrf.mxu0
  %628 = vdwg.mxu0
  %s629 = scalar_lea.vmem [#allocation2], 24
  %v630 = vld [vmem:[%s629] sm:$0xff]
  %v631 = vld [vmem:[%s629 + $0x8] sm:$0xff]
  %v632 = vld [vmem:[%s629 + $0x10] sm:$0xff]
  %v633 = vadd.f32 %v630, %v600
  %v634 = vxor.u32 %v633, 2147483648
  %v635 = vmul.f32 %v634, 1.442695
  %v636 = vpow.pop %v635
  %v637 = vadd.f32 %v636, 1.0
  %v638 = vrcp.pop %v637
  %v639 = vmul.f32 %v637, %v638
  %v640 = vsub.f32 1.0, %v639
  %v641 = vmul.f32 %v638, %v640
  %v642 = vadd.f32 %v638, %v641
  %vm643 = vweird.f32 %v637
  %vm644 = vweird.f32 %v638
  %vm645 = vmor %vm643, %vm644
  %v646 = vsel %vm645, %v638, %v642
  %v647 = vand.u32 2147483647, %v637
  %vm648 = vcmp.eq.f32.partialorder %v647, 8.507059e+37
  %v649 = vand.u32 %v637, 2147483648
  %v650 = vor.u32 1.1754944e-38, %v649
  %v651 = vsel %vm648, %v650, %v646
  %v652 = vmul.f32 1.0, %v651
  %v653 = vadd.f32 %v631, %v613
  %v654 = vxor.u32 %v653, 2147483648
  %v655 = vmul.f32 %v654, 1.442695
  %v656 = vpow.pop %v655
  %v657 = vadd.f32 %v656, 1.0
  %v658 = vrcp.pop %v657
  %v659 = vmul.f32 %v657, %v658
  %v660 = vsub.f32 1.0, %v659
  %v661 = vmul.f32 %v658, %v660
  %v662 = vadd.f32 %v658, %v661
  %vm663 = vweird.f32 %v657
  %vm664 = vweird.f32 %v658
  %vm665 = vmor %vm663, %vm664
  %v666 = vsel %vm665, %v658, %v662
  %v667 = vand.u32 2147483647, %v657
  %vm668 = vcmp.eq.f32.partialorder %v667, 8.507059e+37
  %v669 = vand.u32 %v657, 2147483648
  %v670 = vor.u32 1.1754944e-38, %v669
  %v671 = vsel %vm668, %v670, %v666
  %v672 = vmul.f32 1.0, %v671
  %v673 = vmul.f32 %v652, %v626
  %v674 = vadd.f32 %v632, %v673
  %v675 = vtanh.pop %v674
  %v676 = vsub.f32 1.0, %v672
  %v677 = vmul.f32 %v676, %v675
  %v678 = vmul.f32 %v672, %v588
  %v679 = vadd.f32 %v677, %v678
  %v680 = vpack.c.bf16 %v679, %v679
  %681 = vmatpush.bf16.msra.mxu0 %v473
  %682 = vmatpush.bf16.msra.mxu0 %v470
  %683 = vmatpush.bf16.msra.mxu0 %v467
  %684 = vmatpush.bf16.msra.mxu0 %v464
  %685 = vmatpush.bf16.msra.mxu0 %v461
  %686 = vmatpush.bf16.msra.mxu0 %v458
  %687 = vmatpush.bf16.msra.mxu0 %v455
  %688 = vmatpush.bf16.msra.mxu0 %v452
  %689 = vmatmul.bf16.gmra.mxu0 %v680
  %v690 = vpop.f32.mrf.mxu0
  %v691 = vadd.f32 %v366, %v690
  %v692 = vpop.f32.mrf.mxu0
  %693 = vdwg.mxu0
  %694 = vmatpush.bf16.msra.mxu0 %v474
  %695 = vmatpush.bf16.msra.mxu0 %v471
  %696 = vmatpush.bf16.msra.mxu0 %v468
  %697 = vmatpush.bf16.msra.mxu0 %v465
  %698 = vmatpush.bf16.msra.mxu0 %v462
  %699 = vmatpush.bf16.msra.mxu0 %v459
  %700 = vmatpush.bf16.msra.mxu0 %v456
  %701 = vmatpush.bf16.msra.mxu0 %v453
  %702 = vmatmul.bf16.gmra.mxu0 %v680
  %v703 = vpop.f32.mrf.mxu0
  %v704 = vadd.f32 %v367, %v703
  %v705 = vpop.f32.mrf.mxu0
  %706 = vdwg.mxu0
  %707 = vmatpush.bf16.msra.mxu0 %v475
  %708 = vmatpush.bf16.msra.mxu0 %v472
  %709 = vmatpush.bf16.msra.mxu0 %v469
  %710 = vmatpush.bf16.msra.mxu0 %v466
  %711 = vmatpush.bf16.msra.mxu0 %v463
  %712 = vmatpush.bf16.msra.mxu0 %v460
  %713 = vmatpush.bf16.msra.mxu0 %v457
  %714 = vmatpush.bf16.msra.mxu0 %v454
  %715 = vmatmul.bf16.gmra.mxu0 %v680
  %v716 = vpop.f32.mrf.mxu0
  %v717 = vadd.f32 %v368, %v716
  %v718 = vpop.f32.mrf.mxu0
  %719 = vdwg.mxu0
  %s720 = scalar_lea.vmem [#allocation2], 48
  %v721 = vld [vmem:[%s720] sm:$0xff]
  %v722 = vld [vmem:[%s720 + $0x8] sm:$0xff]
  %v723 = vld [vmem:[%s720 + $0x10] sm:$0xff]
  %v724 = vadd.f32 %v721, %v691
  %v725 = vxor.u32 %v724, 2147483648
  %v726 = vmul.f32 %v725, 1.442695
  %v727 = vpow.pop %v726
  %v728 = vadd.f32 %v727, 1.0
  %v729 = vrcp.pop %v728
  %v730 = vmul.f32 %v728, %v729
  %v731 = vsub.f32 1.0, %v730
  %v732 = vmul.f32 %v729, %v731
  %v733 = vadd.f32 %v729, %v732
  %vm734 = vweird.f32 %v728
  %vm735 = vweird.f32 %v729
  %vm736 = vmor %vm734, %vm735
  %v737 = vsel %vm736, %v729, %v733
  %v738 = vand.u32 2147483647, %v728
  %vm739 = vcmp.eq.f32.partialorder %v738, 8.507059e+37
  %v740 = vand.u32 %v728, 2147483648
  %v741 = vor.u32 1.1754944e-38, %v740
  %v742 = vsel %vm739, %v741, %v737
  %v743 = vmul.f32 1.0, %v742
  %v744 = vadd.f32 %v722, %v704
  %v745 = vxor.u32 %v744, 2147483648
  %v746 = vmul.f32 %v745, 1.442695
  %v747 = vpow.pop %v746
  %v748 = vadd.f32 %v747, 1.0
  %v749 = vrcp.pop %v748
  %v750 = vmul.f32 %v748, %v749
  %v751 = vsub.f32 1.0, %v750
  %v752 = vmul.f32 %v749, %v751
  %v753 = vadd.f32 %v749, %v752
  %vm754 = vweird.f32 %v748
  %vm755 = vweird.f32 %v749
  %vm756 = vmor %vm754, %vm755
  %v757 = vsel %vm756, %v749, %v753
  %v758 = vand.u32 2147483647, %v748
  %vm759 = vcmp.eq.f32.partialorder %v758, 8.507059e+37
  %v760 = vand.u32 %v748, 2147483648
  %v761 = vor.u32 1.1754944e-38, %v760
  %v762 = vsel %vm759, %v761, %v757
  %v763 = vmul.f32 1.0, %v762
  %v764 = vmul.f32 %v743, %v717
  %v765 = vadd.f32 %v723, %v764
  %v766 = vtanh.pop %v765
  %v767 = vsub.f32 1.0, %v763
  %v768 = vmul.f32 %v767, %v766
  %v769 = vmul.f32 %v763, %v679
  %v770 = vadd.f32 %v768, %v769
  %v771 = vpack.c.bf16 %v770, %v770
  %772 = vmatpush.bf16.msra.mxu0 %v473
  %773 = vmatpush.bf16.msra.mxu0 %v470
  %774 = vmatpush.bf16.msra.mxu0 %v467
  %775 = vmatpush.bf16.msra.mxu0 %v464
  %776 = vmatpush.bf16.msra.mxu0 %v461
  %777 = vmatpush.bf16.msra.mxu0 %v458
  %778 = vmatpush.bf16.msra.mxu0 %v455
  %779 = vmatpush.bf16.msra.mxu0 %v452
  %780 = vmatmul.bf16.gmra.mxu0 %v771
  %v781 = vpop.f32.mrf.mxu0
  %v782 = vadd.f32 %v366, %v781
  %v783 = vpop.f32.mrf.mxu0
  %784 = vdwg.mxu0
  %785 = vmatpush.bf16.msra.mxu0 %v474
  %786 = vmatpush.bf16.msra.mxu0 %v471
  %787 = vmatpush.bf16.msra.mxu0 %v468
  %788 = vmatpush.bf16.msra.mxu0 %v465
  %789 = vmatpush.bf16.msra.mxu0 %v462
  %790 = vmatpush.bf16.msra.mxu0 %v459
  %791 = vmatpush.bf16.msra.mxu0 %v456
  %792 = vmatpush.bf16.msra.mxu0 %v453
  %793 = vmatmul.bf16.gmra.mxu0 %v771
  %v794 = vpop.f32.mrf.mxu0
  %v795 = vadd.f32 %v367, %v794
  %v796 = vpop.f32.mrf.mxu0
  %797 = vdwg.mxu0
  %798 = vmatpush.bf16.msra.mxu0 %v475
  %799 = vmatpush.bf16.msra.mxu0 %v472
  %800 = vmatpush.bf16.msra.mxu0 %v469
  %801 = vmatpush.bf16.msra.mxu0 %v466
  %802 = vmatpush.bf16.msra.mxu0 %v463
  %803 = vmatpush.bf16.msra.mxu0 %v460
  %804 = vmatpush.bf16.msra.mxu0 %v457
  %805 = vmatpush.bf16.msra.mxu0 %v454
  %806 = vmatmul.bf16.gmra.mxu0 %v771
  %v807 = vpop.f32.mrf.mxu0
  %v808 = vadd.f32 %v368, %v807
  %v809 = vpop.f32.mrf.mxu0
  %810 = vdwg.mxu0
  %s811 = scalar_lea.vmem [#allocation2], 72
  %v812 = vld [vmem:[%s811] sm:$0xff]
  %v813 = vld [vmem:[%s811 + $0x8] sm:$0xff]
  %v814 = vld [vmem:[%s811 + $0x10] sm:$0xff]
  %v815 = vadd.f32 %v812, %v782
  %v816 = vxor.u32 %v815, 2147483648
  %v817 = vmul.f32 %v816, 1.442695
  %v818 = vpow.pop %v817
  %v819 = vadd.f32 %v818, 1.0
  %v820 = vrcp.pop %v819
  %v821 = vmul.f32 %v819, %v820
  %v822 = vsub.f32 1.0, %v821
  %v823 = vmul.f32 %v820, %v822
  %v824 = vadd.f32 %v820, %v823
  %vm825 = vweird.f32 %v819
  %vm826 = vweird.f32 %v820
  %vm827 = vmor %vm825, %vm826
  %v828 = vsel %vm827, %v820, %v824
  %v829 = vand.u32 2147483647, %v819
  %vm830 = vcmp.eq.f32.partialorder %v829, 8.507059e+37
  %v831 = vand.u32 %v819, 2147483648
  %v832 = vor.u32 1.1754944e-38, %v831
  %v833 = vsel %vm830, %v832, %v828
  %v834 = vmul.f32 1.0, %v833
  %v835 = vadd.f32 %v813, %v795
  %v836 = vxor.u32 %v835, 2147483648
  %v837 = vmul.f32 %v836, 1.442695
  %v838 = vpow.pop %v837
  %v839 = vadd.f32 %v838, 1.0
  %v840 = vrcp.pop %v839
  %v841 = vmul.f32 %v839, %v840
  %v842 = vsub.f32 1.0, %v841
  %v843 = vmul.f32 %v840, %v842
  %v844 = vadd.f32 %v840, %v843
  %vm845 = vweird.f32 %v839
  %vm846 = vweird.f32 %v840
  %vm847 = vmor %vm845, %vm846
  %v848 = vsel %vm847, %v840, %v844
  %v849 = vand.u32 2147483647, %v839
  %vm850 = vcmp.eq.f32.partialorder %v849, 8.507059e+37
  %v851 = vand.u32 %v839, 2147483648
  %v852 = vor.u32 1.1754944e-38, %v851
  %v853 = vsel %vm850, %v852, %v848
  %v854 = vmul.f32 1.0, %v853
  %v855 = vmul.f32 %v834, %v808
  %v856 = vadd.f32 %v814, %v855
  %v857 = vtanh.pop %v856
  %v858 = vsub.f32 1.0, %v854
  %v859 = vmul.f32 %v858, %v857
  %v860 = vmul.f32 %v854, %v770
  %v861 = vadd.f32 %v859, %v860
  %v862 = vpack.c.bf16 %v861, %v861
  %863 = vmatpush.bf16.msra.mxu0 %v473
  %864 = vmatpush.bf16.msra.mxu0 %v470
  %865 = vmatpush.bf16.msra.mxu0 %v467
  %866 = vmatpush.bf16.msra.mxu0 %v464
  %867 = vmatpush.bf16.msra.mxu0 %v461
  %868 = vmatpush.bf16.msra.mxu0 %v458
  %869 = vmatpush.bf16.msra.mxu0 %v455
  %870 = vmatpush.bf16.msra.mxu0 %v452
  %871 = vmatmul.bf16.gmra.mxu0 %v862
  %v872 = vpop.f32.mrf.mxu0
  %v873 = vadd.f32 %v366, %v872
  %v874 = vpop.f32.mrf.mxu0
  %875 = vdwg.mxu0
  %876 = vmatpush.bf16.msra.mxu0 %v474
  %877 = vmatpush.bf16.msra.mxu0 %v471
  %878 = vmatpush.bf16.msra.mxu0 %v468
  %879 = vmatpush.bf16.msra.mxu0 %v465
  %880 = vmatpush.bf16.msra.mxu0 %v462
  %881 = vmatpush.bf16.msra.mxu0 %v459
  %882 = vmatpush.bf16.msra.mxu0 %v456
  %883 = vmatpush.bf16.msra.mxu0 %v453
  %884 = vmatmul.bf16.gmra.mxu0 %v862
  %v885 = vpop.f32.mrf.mxu0
  %v886 = vadd.f32 %v367, %v885
  %v887 = vpop.f32.mrf.mxu0
  %888 = vdwg.mxu0
  %889 = vmatpush.bf16.msra.mxu0 %v475
  %890 = vmatpush.bf16.msra.mxu0 %v472
  %891 = vmatpush.bf16.msra.mxu0 %v469
  %892 = vmatpush.bf16.msra.mxu0 %v466
  %893 = vmatpush.bf16.msra.mxu0 %v463
  %894 = vmatpush.bf16.msra.mxu0 %v460
  %895 = vmatpush.bf16.msra.mxu0 %v457
  %896 = vmatpush.bf16.msra.mxu0 %v454
  %897 = vmatmul.bf16.gmra.mxu0 %v862
  %v898 = vpop.f32.mrf.mxu0
  %v899 = vadd.f32 %v368, %v898
  %v900 = vpop.f32.mrf.mxu0
  %901 = vdwg.mxu0
  %s902 = scalar_lea.vmem [#allocation2], 96
  %v903 = vld [vmem:[%s902] sm:$0xff]
  %v904 = vld [vmem:[%s902 + $0x8] sm:$0xff]
  %v905 = vld [vmem:[%s902 + $0x10] sm:$0xff]
  %v906 = vadd.f32 %v903, %v873
  %v907 = vxor.u32 %v906, 2147483648
  %v908 = vmul.f32 %v907, 1.442695
  %v909 = vpow.pop %v908
  %v910 = vadd.f32 %v909, 1.0
  %v911 = vrcp.pop %v910
  %v912 = vmul.f32 %v910, %v911
  %v913 = vsub.f32 1.0, %v912
  %v914 = vmul.f32 %v911, %v913
  %v915 = vadd.f32 %v911, %v914
  %vm916 = vweird.f32 %v910
  %vm917 = vweird.f32 %v911
  %vm918 = vmor %vm916, %vm917
  %v919 = vsel %vm918, %v911, %v915
  %v920 = vand.u32 2147483647, %v910
  %vm921 = vcmp.eq.f32.partialorder %v920, 8.507059e+37
  %v922 = vand.u32 %v910, 2147483648
  %v923 = vor.u32 1.1754944e-38, %v922
  %v924 = vsel %vm921, %v923, %v919
  %v925 = vmul.f32 1.0, %v924
  %v926 = vadd.f32 %v904, %v886
  %v927 = vxor.u32 %v926, 2147483648
  %v928 = vmul.f32 %v927, 1.442695
  %v929 = vpow.pop %v928
  %v930 = vadd.f32 %v929, 1.0
  %v931 = vrcp.pop %v930
  %v932 = vmul.f32 %v930, %v931
  %v933 = vsub.f32 1.0, %v932
  %v934 = vmul.f32 %v931, %v933
  %v935 = vadd.f32 %v931, %v934
  %vm936 = vweird.f32 %v930
  %vm937 = vweird.f32 %v931
  %vm938 = vmor %vm936, %vm937
  %v939 = vsel %vm938, %v931, %v935
  %v940 = vand.u32 2147483647, %v930
  %vm941 = vcmp.eq.f32.partialorder %v940, 8.507059e+37
  %v942 = vand.u32 %v930, 2147483648
  %v943 = vor.u32 1.1754944e-38, %v942
  %v944 = vsel %vm941, %v943, %v939
  %v945 = vmul.f32 1.0, %v944
  %v946 = vmul.f32 %v925, %v899
  %v947 = vadd.f32 %v905, %v946
  %v948 = vtanh.pop %v947
  %v949 = vsub.f32 1.0, %v945
  %v950 = vmul.f32 %v949, %v948
  %v951 = vmul.f32 %v945, %v861
  %v952 = vadd.f32 %v950, %v951
  %v953 = vpack.c.bf16 %v952, %v952
  %954 = vmatpush.bf16.msra.mxu0 %v473
  %955 = vmatpush.bf16.msra.mxu0 %v470
  %956 = vmatpush.bf16.msra.mxu0 %v467
  %957 = vmatpush.bf16.msra.mxu0 %v464
  %958 = vmatpush.bf16.msra.mxu0 %v461
  %959 = vmatpush.bf16.msra.mxu0 %v458
  %960 = vmatpush.bf16.msra.mxu0 %v455
  %961 = vmatpush.bf16.msra.mxu0 %v452
  %962 = vmatmul.bf16.gmra.mxu0 %v953
  %v963 = vpop.f32.mrf.mxu0
  %v964 = vadd.f32 %v366, %v963
  %v965 = vpop.f32.mrf.mxu0
  %966 = vdwg.mxu0
  %967 = vmatpush.bf16.msra.mxu0 %v474
  %968 = vmatpush.bf16.msra.mxu0 %v471
  %969 = vmatpush.bf16.msra.mxu0 %v468
  %970 = vmatpush.bf16.msra.mxu0 %v465
  %971 = vmatpush.bf16.msra.mxu0 %v462
  %972 = vmatpush.bf16.msra.mxu0 %v459
  %973 = vmatpush.bf16.msra.mxu0 %v456
  %974 = vmatpush.bf16.msra.mxu0 %v453
  %975 = vmatmul.bf16.gmra.mxu0 %v953
  %v976 = vpop.f32.mrf.mxu0
  %v977 = vadd.f32 %v367, %v976
  %v978 = vpop.f32.mrf.mxu0
  %979 = vdwg.mxu0
  %980 = vmatpush.bf16.msra.mxu0 %v475
  %981 = vmatpush.bf16.msra.mxu0 %v472
  %982 = vmatpush.bf16.msra.mxu0 %v469
  %983 = vmatpush.bf16.msra.mxu0 %v466
  %984 = vmatpush.bf16.msra.mxu0 %v463
  %985 = vmatpush.bf16.msra.mxu0 %v460
  %986 = vmatpush.bf16.msra.mxu0 %v457
  %987 = vmatpush.bf16.msra.mxu0 %v454
  %988 = vmatmul.bf16.gmra.mxu0 %v953
  %v989 = vpop.f32.mrf.mxu0
  %v990 = vadd.f32 %v368, %v989
  %v991 = vpop.f32.mrf.mxu0
  %992 = vdwg.mxu0
  %s993 = scalar_lea.vmem [#allocation2], 120
  %v994 = vld [vmem:[%s993] sm:$0xff]
  %v995 = vld [vmem:[%s993 + $0x8] sm:$0xff]
  %v996 = vld [vmem:[%s993 + $0x10] sm:$0xff]
  %v997 = vadd.f32 %v994, %v964
  %v998 = vxor.u32 %v997, 2147483648
  %v999 = vmul.f32 %v998, 1.442695
  %v1000 = vpow.pop %v999
  %v1001 = vadd.f32 %v1000, 1.0
  %v1002 = vrcp.pop %v1001
  %v1003 = vmul.f32 %v1001, %v1002
  %v1004 = vsub.f32 1.0, %v1003
  %v1005 = vmul.f32 %v1002, %v1004
  %v1006 = vadd.f32 %v1002, %v1005
  %vm1007 = vweird.f32 %v1001
  %vm1008 = vweird.f32 %v1002
  %vm1009 = vmor %vm1007, %vm1008
  %v1010 = vsel %vm1009, %v1002, %v1006
  %v1011 = vand.u32 2147483647, %v1001
  %vm1012 = vcmp.eq.f32.partialorder %v1011, 8.507059e+37
  %v1013 = vand.u32 %v1001, 2147483648
  %v1014 = vor.u32 1.1754944e-38, %v1013
  %v1015 = vsel %vm1012, %v1014, %v1010
  %v1016 = vmul.f32 1.0, %v1015
  %v1017 = vadd.f32 %v995, %v977
  %v1018 = vxor.u32 %v1017, 2147483648
  %v1019 = vmul.f32 %v1018, 1.442695
  %v1020 = vpow.pop %v1019
  %v1021 = vadd.f32 %v1020, 1.0
  %v1022 = vrcp.pop %v1021
  %v1023 = vmul.f32 %v1021, %v1022
  %v1024 = vsub.f32 1.0, %v1023
  %v1025 = vmul.f32 %v1022, %v1024
  %v1026 = vadd.f32 %v1022, %v1025
  %vm1027 = vweird.f32 %v1021
  %vm1028 = vweird.f32 %v1022
  %vm1029 = vmor %vm1027, %vm1028
  %v1030 = vsel %vm1029, %v1022, %v1026
  %v1031 = vand.u32 2147483647, %v1021
  %vm1032 = vcmp.eq.f32.partialorder %v1031, 8.507059e+37
  %v1033 = vand.u32 %v1021, 2147483648
  %v1034 = vor.u32 1.1754944e-38, %v1033
  %v1035 = vsel %vm1032, %v1034, %v1030
  %v1036 = vmul.f32 1.0, %v1035
  %v1037 = vmul.f32 %v1016, %v990
  %v1038 = vadd.f32 %v996, %v1037
  %v1039 = vtanh.pop %v1038
  %v1040 = vsub.f32 1.0, %v1036
  %v1041 = vmul.f32 %v1040, %v1039
  %v1042 = vmul.f32 %v1036, %v952
  %v1043 = vadd.f32 %v1041, %v1042
  %v1044 = vpack.c.bf16 %v1043, %v1043
  %1045 = vmatpush.bf16.msra.mxu0 %v473
  %1046 = vmatpush.bf16.msra.mxu0 %v470
  %1047 = vmatpush.bf16.msra.mxu0 %v467
  %1048 = vmatpush.bf16.msra.mxu0 %v464
  %1049 = vmatpush.bf16.msra.mxu0 %v461
  %1050 = vmatpush.bf16.msra.mxu0 %v458
  %1051 = vmatpush.bf16.msra.mxu0 %v455
  %1052 = vmatpush.bf16.msra.mxu0 %v452
  %1053 = vmatmul.bf16.gmra.mxu0 %v1044
  %v1054 = vpop.f32.mrf.mxu0
  %v1055 = vadd.f32 %v366, %v1054
  %v1056 = vpop.f32.mrf.mxu0
  %1057 = vdwg.mxu0
  %1058 = vmatpush.bf16.msra.mxu0 %v474
  %1059 = vmatpush.bf16.msra.mxu0 %v471
  %1060 = vmatpush.bf16.msra.mxu0 %v468
  %1061 = vmatpush.bf16.msra.mxu0 %v465
  %1062 = vmatpush.bf16.msra.mxu0 %v462
  %1063 = vmatpush.bf16.msra.mxu0 %v459
  %1064 = vmatpush.bf16.msra.mxu0 %v456
  %1065 = vmatpush.bf16.msra.mxu0 %v453
  %1066 = vmatmul.bf16.gmra.mxu0 %v1044
  %v1067 = vpop.f32.mrf.mxu0
  %v1068 = vadd.f32 %v367, %v1067
  %v1069 = vpop.f32.mrf.mxu0
  %1070 = vdwg.mxu0
  %1071 = vmatpush.bf16.msra.mxu0 %v475
  %1072 = vmatpush.bf16.msra.mxu0 %v472
  %1073 = vmatpush.bf16.msra.mxu0 %v469
  %1074 = vmatpush.bf16.msra.mxu0 %v466
  %1075 = vmatpush.bf16.msra.mxu0 %v463
  %1076 = vmatpush.bf16.msra.mxu0 %v460
  %1077 = vmatpush.bf16.msra.mxu0 %v457
  %1078 = vmatpush.bf16.msra.mxu0 %v454
  %1079 = vmatmul.bf16.gmra.mxu0 %v1044
  %v1080 = vpop.f32.mrf.mxu0
  %v1081 = vadd.f32 %v368, %v1080
  %v1082 = vpop.f32.mrf.mxu0
  %1083 = vdwg.mxu0
  %s1084 = scalar_lea.vmem [#allocation2], 144
  %v1085 = vld [vmem:[%s1084] sm:$0xff]
  %v1086 = vld [vmem:[%s1084 + $0x8] sm:$0xff]
  %v1087 = vld [vmem:[%s1084 + $0x10] sm:$0xff]
  %v1088 = vadd.f32 %v1085, %v1055
  %v1089 = vxor.u32 %v1088, 2147483648
  %v1090 = vmul.f32 %v1089, 1.442695
  %v1091 = vpow.pop %v1090
  %v1092 = vadd.f32 %v1091, 1.0
  %v1093 = vrcp.pop %v1092
  %v1094 = vmul.f32 %v1092, %v1093
  %v1095 = vsub.f32 1.0, %v1094
  %v1096 = vmul.f32 %v1093, %v1095
  %v1097 = vadd.f32 %v1093, %v1096
  %vm1098 = vweird.f32 %v1092
  %vm1099 = vweird.f32 %v1093
  %vm1100 = vmor %vm1098, %vm1099
  %v1101 = vsel %vm1100, %v1093, %v1097
  %v1102 = vand.u32 2147483647, %v1092
  %vm1103 = vcmp.eq.f32.partialorder %v1102, 8.507059e+37
  %v1104 = vand.u32 %v1092, 2147483648
  %v1105 = vor.u32 1.1754944e-38, %v1104
  %v1106 = vsel %vm1103, %v1105, %v1101
  %v1107 = vmul.f32 1.0, %v1106
  %v1108 = vadd.f32 %v1086, %v1068
  %v1109 = vxor.u32 %v1108, 2147483648
  %v1110 = vmul.f32 %v1109, 1.442695
  %v1111 = vpow.pop %v1110
  %v1112 = vadd.f32 %v1111, 1.0
  %v1113 = vrcp.pop %v1112
  %v1114 = vmul.f32 %v1112, %v1113
  %v1115 = vsub.f32 1.0, %v1114
  %v1116 = vmul.f32 %v1113, %v1115
  %v1117 = vadd.f32 %v1113, %v1116
  %vm1118 = vweird.f32 %v1112
  %vm1119 = vweird.f32 %v1113
  %vm1120 = vmor %vm1118, %vm1119
  %v1121 = vsel %vm1120, %v1113, %v1117
  %v1122 = vand.u32 2147483647, %v1112
  %vm1123 = vcmp.eq.f32.partialorder %v1122, 8.507059e+37
  %v1124 = vand.u32 %v1112, 2147483648
  %v1125 = vor.u32 1.1754944e-38, %v1124
  %v1126 = vsel %vm1123, %v1125, %v1121
  %v1127 = vmul.f32 1.0, %v1126
  %v1128 = vmul.f32 %v1107, %v1081
  %v1129 = vadd.f32 %v1087, %v1128
  %v1130 = vtanh.pop %v1129
  %v1131 = vsub.f32 1.0, %v1127
  %v1132 = vmul.f32 %v1131, %v1130
  %v1133 = vmul.f32 %v1127, %v1043
  %v1134 = vadd.f32 %v1132, %v1133
  %v1135 = vpack.c.bf16 %v1134, %v1134
  %1136 = vmatpush.bf16.msra.mxu0 %v473
  %1137 = vmatpush.bf16.msra.mxu0 %v470
  %1138 = vmatpush.bf16.msra.mxu0 %v467
  %1139 = vmatpush.bf16.msra.mxu0 %v464
  %1140 = vmatpush.bf16.msra.mxu0 %v461
  %1141 = vmatpush.bf16.msra.mxu0 %v458
  %1142 = vmatpush.bf16.msra.mxu0 %v455
  %1143 = vmatpush.bf16.msra.mxu0 %v452
  %1144 = vmatmul.bf16.gmra.mxu0 %v1135
  %v1145 = vpop.f32.mrf.mxu0
  %v1146 = vadd.f32 %v366, %v1145
  %v1147 = vpop.f32.mrf.mxu0
  %1148 = vdwg.mxu0
  %1149 = vmatpush.bf16.msra.mxu0 %v474
  %1150 = vmatpush.bf16.msra.mxu0 %v471
  %1151 = vmatpush.bf16.msra.mxu0 %v468
  %1152 = vmatpush.bf16.msra.mxu0 %v465
  %1153 = vmatpush.bf16.msra.mxu0 %v462
  %1154 = vmatpush.bf16.msra.mxu0 %v459
  %1155 = vmatpush.bf16.msra.mxu0 %v456
  %1156 = vmatpush.bf16.msra.mxu0 %v453
  %1157 = vmatmul.bf16.gmra.mxu0 %v1135
  %v1158 = vpop.f32.mrf.mxu0
  %v1159 = vadd.f32 %v367, %v1158
  %v1160 = vpop.f32.mrf.mxu0
  %1161 = vdwg.mxu0
  %1162 = vmatpush.bf16.msra.mxu0 %v475
  %1163 = vmatpush.bf16.msra.mxu0 %v472
  %1164 = vmatpush.bf16.msra.mxu0 %v469
  %1165 = vmatpush.bf16.msra.mxu0 %v466
  %1166 = vmatpush.bf16.msra.mxu0 %v463
  %1167 = vmatpush.bf16.msra.mxu0 %v460
  %1168 = vmatpush.bf16.msra.mxu0 %v457
  %1169 = vmatpush.bf16.msra.mxu0 %v454
  %1170 = vmatmul.bf16.gmra.mxu0 %v1135
  %v1171 = vpop.f32.mrf.mxu0
  %v1172 = vadd.f32 %v368, %v1171
  %v1173 = vpop.f32.mrf.mxu0
  %1174 = vdwg.mxu0
  %s1175 = scalar_lea.vmem [#allocation2], 168
  %v1176 = vld [vmem:[%s1175] sm:$0xff]
  %v1177 = vld [vmem:[%s1175 + $0x8] sm:$0xff]
  %v1178 = vld [vmem:[%s1175 + $0x10] sm:$0xff]
  %v1179 = vadd.f32 %v1176, %v1146
  %v1180 = vxor.u32 %v1179, 2147483648
  %v1181 = vmul.f32 %v1180, 1.442695
  %v1182 = vpow.pop %v1181
  %v1183 = vadd.f32 %v1182, 1.0
  %v1184 = vrcp.pop %v1183
  %v1185 = vmul.f32 %v1183, %v1184
  %v1186 = vsub.f32 1.0, %v1185
  %v1187 = vmul.f32 %v1184, %v1186
  %v1188 = vadd.f32 %v1184, %v1187
  %vm1189 = vweird.f32 %v1183
  %vm1190 = vweird.f32 %v1184
  %vm1191 = vmor %vm1189, %vm1190
  %v1192 = vsel %vm1191, %v1184, %v1188
  %v1193 = vand.u32 2147483647, %v1183
  %vm1194 = vcmp.eq.f32.partialorder %v1193, 8.507059e+37
  %v1195 = vand.u32 %v1183, 2147483648
  %v1196 = vor.u32 1.1754944e-38, %v1195
  %v1197 = vsel %vm1194, %v1196, %v1192
  %v1198 = vmul.f32 1.0, %v1197
  %v1199 = vadd.f32 %v1177, %v1159
  %v1200 = vxor.u32 %v1199, 2147483648
  %v1201 = vmul.f32 %v1200, 1.442695
  %v1202 = vpow.pop %v1201
  %v1203 = vadd.f32 %v1202, 1.0
  %v1204 = vrcp.pop %v1203
  %v1205 = vmul.f32 %v1203, %v1204
  %v1206 = vsub.f32 1.0, %v1205
  %v1207 = vmul.f32 %v1204, %v1206
  %v1208 = vadd.f32 %v1204, %v1207
  %vm1209 = vweird.f32 %v1203
  %vm1210 = vweird.f32 %v1204
  %vm1211 = vmor %vm1209, %vm1210
  %v1212 = vsel %vm1211, %v1204, %v1208
  %v1213 = vand.u32 2147483647, %v1203
  %vm1214 = vcmp.eq.f32.partialorder %v1213, 8.507059e+37
  %v1215 = vand.u32 %v1203, 2147483648
  %v1216 = vor.u32 1.1754944e-38, %v1215
  %v1217 = vsel %vm1214, %v1216, %v1212
  %v1218 = vmul.f32 1.0, %v1217
  %v1219 = vmul.f32 %v1198, %v1172
  %v1220 = vadd.f32 %v1178, %v1219
  %v1221 = vtanh.pop %v1220
  %v1222 = vsub.f32 1.0, %v1218
  %v1223 = vmul.f32 %v1222, %v1221
  %v1224 = vmul.f32 %v1218, %v1134
  %v1225 = vadd.f32 %v1223, %v1224
  %1226 = vst [vmem:[%s5] sm:$0xff] %v1225
  // Predicated region
  $region22: #{encoder_decoder_forward.3} parent=0 // pred_check
    _
  $region23: #{encoder_decoder_forward.3} parent=0 // pred_check_branch
    %1228 = sbr.rel (0) target = $region25
  $region24: #{encoder_decoder_forward.3} parent=0 // pred_region
    _
  $region25: #{encoder_decoder_forward.3} parent=0 // pred_fallthru
    _
  // Predicated region
  $region26: #{encoder_decoder_forward.3} parent=0 // pred_check
    _
  $region27: #{encoder_decoder_forward.3} parent=0 // pred_check_branch
    %1230 = sbr.rel (0) target = $region29
  $region28: #{encoder_decoder_forward.3} parent=0 // pred_region
    _
  $region29: #{encoder_decoder_forward.3} parent=0 // pred_fallthru
    _

// kernel: encoder_decoder_forward.4
$region0: #{encoder_decoder_forward.4}
  #allocation0 [shape = 'u32[]', space=smem, size = 0x4, offset = 0x4, fixed_abs, tag = 'smem constant byte address 0x4 - core index']
  #allocation1 [shape = 'u32[72,128]{1,0:T(1,128)}', space=vmem, size = 0x9000, scoped, tag = 'internal scratch']
  #allocation2 [shape = 'f32[8,8,384]{2,1,0:T(8,128)}', space=vmem, size = 0x18000, scoped, tag = 'scratch operand']
  %s0 = inlined_call_operand.vmem [shape: bf16[8,8,128], index: 0, kind: input, shape index: {}]
  %s1 = inlined_call_operand.vmem [shape: f32[8,128], index: 1, kind: input, shape index: {}]
  %s2 = inlined_call_operand.vmem [shape: bf16[128,384], index: 2, kind: input, shape index: {}]
  %s3 = inlined_call_operand.vmem [shape: bf16[128,384], index: 3, kind: input, shape index: {}]
  %s4 = inlined_call_operand.hbm [shape: bf16[128,384], index: 4, kind: input, shape index: {}]
  %s5 = inlined_call_operand.vmem [shape: f32[1,384], index: 5, kind: input, shape index: {}]
  %s6 = inlined_call_operand.hbm [shape: f32[1,384], index: 6, kind: input, shape index: {}]
  %s7 = inlined_call_operand.vmem [shape: bf16[8,8,128], index: 7, kind: output, shape index: {0}]
  %s8 = inlined_call_operand.vmem [shape: f32[8,128], index: 8, kind: output, shape index: {1}]
  %9 = xla_tuple %s7, %s8
  %s10 = sld [smem:[#allocation0]]
  $region54: #{encoder_decoder_forward.4} parent=0
    _
  %s12 = ssub.s32 1, %s10
  %s13 = scalar_select 0, %s12, %s10
  $region1: #{encoder_decoder_forward.4} parent=0
    #allocation3 [shape = 'u8[98304]{0}', space=vmem, size = 0x18000, scoped, tag = 'input window, operand 4, single buffered']
    #allocation4 [shape = 's32[1]{0}', space=sflag, size = 0x4, scoped, tag = 'scoped memory for encoder_decoder_forward.4']
    #allocation5 [shape = 'u8[1536]{0}', space=vmem, size = 0x800, scoped, tag = 'input window, operand 6, single buffered']
    #allocation6 [shape = 's32[1]{0}', space=sflag, size = 0x4, scoped, tag = 'scoped memory for encoder_decoder_forward.4']
    %14 = vsyncpa [#allocation4], 0
    %15 = vsyncpa [#allocation6], 0
    // Predicated region
    $region2: #{encoder_decoder_forward.4} parent=1 // pred_check
      _
    $region3: #{encoder_decoder_forward.4} parent=1 // pred_check_branch
      %17 = sbr.rel (0) target = $region5
    $region4: #{encoder_decoder_forward.4} parent=1 // pred_region
      _
    $region5: #{encoder_decoder_forward.4} parent=1 // pred_fallthru
      _
    // Predicated region
    $region6: #{encoder_decoder_forward.4} parent=1 // pred_check
      _
    $region7: #{encoder_decoder_forward.4} parent=1 // pred_check_branch
      %19 = sbr.rel (0) target = $region9
    $region8: #{encoder_decoder_forward.4} parent=1 // pred_region
      _
    $region9: #{encoder_decoder_forward.4} parent=1 // pred_fallthru
      _
    // Predicated region
    $region10: #{encoder_decoder_forward.4} parent=1 // pred_check
      _
    $region11: #{encoder_decoder_forward.4} parent=1 // pred_check_branch
      %21 = sbr.rel (0) target = $region13
    $region12: #{encoder_decoder_forward.4} parent=1 // pred_region
      _
    $region13: #{encoder_decoder_forward.4} parent=1 // pred_fallthru
      _
    // Predicated region
    $region14: #{encoder_decoder_forward.4} parent=1 // pred_check
      _
    $region15: #{encoder_decoder_forward.4} parent=1 // pred_check_branch
      %23 = sbr.rel (0) target = $region17
    $region16: #{encoder_decoder_forward.4} parent=1 // pred_region
      _
    $region17: #{encoder_decoder_forward.4} parent=1 // pred_fallthru
      _
    // Predicated region
    $region18: #{encoder_decoder_forward.4} parent=1 // pred_check
      _
    $region19: #{encoder_decoder_forward.4} parent=1 // pred_check_branch
      %25 = sbr.rel (0) target = $region21
    $region20: #{encoder_decoder_forward.4} parent=1 // pred_region
      %27 = vsyncadd [#allocation4], 0
      %s28 = sshll.u32 %s4, 4
      %s29 = int_to_ptr.hbm [resolvable:$true] %s28
      %s30 = sshll.u32 [#allocation3], 4
      %s31 = int_to_ptr.vmem [resolvable:$true] %s30
      %36 = dma.hbm_to_vmem [thread:$0]  %s29, 3072, %s31, [#allocation4], 192, 192, 12
    $region21: #{encoder_decoder_forward.4} parent=1 // pred_fallthru
      _
    // Predicated region
    $region22: #{encoder_decoder_forward.4} parent=1 // pred_check
      _
    $region23: #{encoder_decoder_forward.4} parent=1 // pred_check_branch
      %38 = sbr.rel (0) target = $region25
    $region24: #{encoder_decoder_forward.4} parent=1 // pred_region
      _
    $region25: #{encoder_decoder_forward.4} parent=1 // pred_fallthru
      _
    // Predicated region
    $region26: #{encoder_decoder_forward.4} parent=1 // pred_check
      _
    $region27: #{encoder_decoder_forward.4} parent=1 // pred_check_branch
      %40 = sbr.rel (0) target = $region29
    $region28: #{encoder_decoder_forward.4} parent=1 // pred_region
      %42 = vsyncadd [#allocation6], 0
      %s44 = sshll.u32 %s6, 4
      %s45 = int_to_ptr.hbm [resolvable:$true] %s44
      %s46 = sshll.u32 [#allocation5], 4
      %s47 = int_to_ptr.vmem [resolvable:$true] %s46
      %49 = dma.hbm_to_vmem [thread:$0]  %s45, 48, %s47, [#allocation6]
    $region29: #{encoder_decoder_forward.4} parent=1 // pred_fallthru
      _
    // Predicated region
    $region30: #{encoder_decoder_forward.4} parent=1 // pred_check
      _
    $region31: #{encoder_decoder_forward.4} parent=1 // pred_check_branch
      %51 = sbr.rel (0) target = $region33
    $region32: #{encoder_decoder_forward.4} parent=1 // pred_region
      %53 = dma.done [#allocation4], 3072
    $region33: #{encoder_decoder_forward.4} parent=1 // pred_fallthru
      _
    // Predicated region
    $region34: #{encoder_decoder_forward.4} parent=1 // pred_check
      _
    $region35: #{encoder_decoder_forward.4} parent=1 // pred_check_branch
      %55 = sbr.rel (0) target = $region37
    $region36: #{encoder_decoder_forward.4} parent=1 // pred_region
      %57 = dma.done [#allocation6], 48
    $region37: #{encoder_decoder_forward.4} parent=1 // pred_fallthru
      _
    %v58 = vld [vmem:[%s1] sm:$0xff]
    %v59 = vpack.c.bf16 %v58, %v58
    %v60 = vld [vmem:[%s3] sm:$0xff]
    %v61 = vld [vmem:[%s3 + $0x8] sm:$0xf]
    %v62 = vld [vmem:[%s3 + $0xc] sm:$0xff]
    %v63 = vld [vmem:[%s3 + $0x14] sm:$0xf]
    %v64 = vld [vmem:[%s3 + $0x18] sm:$0xff]
    %v65 = vld [vmem:[%s3 + $0x20] sm:$0xf]
    %v66 = vld [vmem:[%s3 + $0x24] sm:$0xff]
    %v67 = vld [vmem:[%s3 + $0x2c] sm:$0xf]
    %v68 = vld [vmem:[%s3 + $0x30] sm:$0xff]
    %v69 = vld [vmem:[%s3 + $0x38] sm:$0xf]
    %v70 = vld [vmem:[%s3 + $0x3c] sm:$0xff]
    %v71 = vld [vmem:[%s3 + $0x44] sm:$0xf]
    %v72 = vld [vmem:[%s3 + $0x48] sm:$0xff]
    %v73 = vld [vmem:[%s3 + $0x50] sm:$0xf]
    %v74 = vld [vmem:[%s3 + $0x54] sm:$0xff]
    %v75 = vld [vmem:[%s3 + $0x5c] sm:$0xf]
    %v76 = vld [vmem:[%s3 + $0x60] sm:$0xff]
    %v77 = vld [vmem:[%s3 + $0x68] sm:$0xf]
    %v78 = vld [vmem:[%s3 + $0x6c] sm:$0xff]
    %v79 = vld [vmem:[%s3 + $0x74] sm:$0xf]
    %v80 = vld [vmem:[%s3 + $0x78] sm:$0xff]
    %v81 = vld [vmem:[%s3 + $0x80] sm:$0xf]
    %v82 = vld [vmem:[%s3 + $0x84] sm:$0xff]
    %v83 = vld [vmem:[%s3 + $0x8c] sm:$0xf]
    %v84 = vld [vmem:[%s3 + $0x90] sm:$0xff]
    %v85 = vld [vmem:[%s3 + $0x98] sm:$0xf]
    %v86 = vld [vmem:[%s3 + $0x9c] sm:$0xff]
    %v87 = vld [vmem:[%s3 + $0xa4] sm:$0xf]
    %v88 = vld [vmem:[%s3 + $0xa8] sm:$0xff]
    %v89 = vld [vmem:[%s3 + $0xb0] sm:$0xf]
    %v90 = vld [vmem:[%s3 + $0xb4] sm:$0xff]
    %v91 = vld [vmem:[%s3 + $0xbc] sm:$0xf]
    %v92 = vld [vmem:[%s0] sm:$0xf]
    %v93 = vld [vmem:[%s0 + $0x4] sm:$0xf]
    %v94 = vld [vmem:[%s0 + $0x8] sm:$0xf]
    %v95 = vld [vmem:[%s0 + $0xc] sm:$0xf]
    %v96 = vld [vmem:[%s0 + $0x10] sm:$0xf]
    %v97 = vld [vmem:[%s0 + $0x14] sm:$0xf]
    %v98 = vld [vmem:[%s0 + $0x18] sm:$0xf]
    %v99 = vld [vmem:[%s0 + $0x1c] sm:$0xf]
    %v100 = vld [vmem:[%s2] sm:$0xff]
    %v101 = vld [vmem:[%s2 + $0x8] sm:$0xf]
    %v102 = vld [vmem:[%s2 + $0xc] sm:$0xff]
    %v103 = vld [vmem:[%s2 + $0x14] sm:$0xf]
    %v104 = vld [vmem:[%s2 + $0x18] sm:$0xff]
    %v105 = vld [vmem:[%s2 + $0x20] sm:$0xf]
    %v106 = vld [vmem:[%s2 + $0x24] sm:$0xff]
    %v107 = vld [vmem:[%s2 + $0x2c] sm:$0xf]
    %v108 = vld [vmem:[%s2 + $0x30] sm:$0xff]
    %v109 = vld [vmem:[%s2 + $0x38] sm:$0xf]
    %v110 = vld [vmem:[%s2 + $0x3c] sm:$0xff]
    %v111 = vld [vmem:[%s2 + $0x44] sm:$0xf]
    %v112 = vld [vmem:[%s2 + $0x48] sm:$0xff]
    %v113 = vld [vmem:[%s2 + $0x50] sm:$0xf]
    %v114 = vld [vmem:[%s2 + $0x54] sm:$0xff]
    %v115 = vld [vmem:[%s2 + $0x5c] sm:$0xf]
    %v116 = vld [vmem:[%s2 + $0x60] sm:$0xff]
    %v117 = vld [vmem:[%s2 + $0x68] sm:$0xf]
    %v118 = vld [vmem:[%s2 + $0x6c] sm:$0xff]
    %v119 = vld [vmem:[%s2 + $0x74] sm:$0xf]
    %v120 = vld [vmem:[%s2 + $0x78] sm:$0xff]
    %v121 = vld [vmem:[%s2 + $0x80] sm:$0xf]
    %v122 = vld [vmem:[%s2 + $0x84] sm:$0xff]
    %v123 = vld [vmem:[%s2 + $0x8c] sm:$0xf]
    %v124 = vld [vmem:[%s2 + $0x90] sm:$0xff]
    %v125 = vld [vmem:[%s2 + $0x98] sm:$0xf]
    %v126 = vld [vmem:[%s2 + $0x9c] sm:$0xff]
    %v127 = vld [vmem:[%s2 + $0xa4] sm:$0xf]
    %v128 = vld [vmem:[%s2 + $0xa8] sm:$0xff]
    %v129 = vld [vmem:[%s2 + $0xb0] sm:$0xf]
    %v130 = vld [vmem:[%s2 + $0xb4] sm:$0xff]
    %v131 = vld [vmem:[%s2 + $0xbc] sm:$0xf]
    %v140 = vunpack.c.l.b16 %v92
    %v141 = vunpack.c.l.b16 %v93
    %v142 = vunpack.c.l.b16 %v94
    %v143 = vunpack.c.l.b16 %v95
    %v144 = vunpack.c.l.b16 %v96
    %v145 = vunpack.c.l.b16 %v97
    %v146 = vunpack.c.l.b16 %v98
    %v147 = vunpack.c.l.b16 %v99
    %v148 = vpack.c.b16 %v141, %v140
    %v149 = vpack.c.b16 %v143, %v142
    %v150 = vpack.c.b16 %v145, %v144
    %v151 = vpack.c.b16 %v147, %v146
    %v188 = vunpack.c.l.b16 %v100
    %v189 = vunpack.c.h.b16 %v100
    %v190 = vunpack.c.l.b16 %v101
    %v191 = vunpack.c.l.b16 %v102
    %v192 = vunpack.c.h.b16 %v102
    %v193 = vunpack.c.l.b16 %v103
    %v194 = vunpack.c.l.b16 %v104
    %v195 = vunpack.c.h.b16 %v104
    %v196 = vunpack.c.l.b16 %v105
    %v197 = vunpack.c.l.b16 %v106
    %v198 = vunpack.c.h.b16 %v106
    %v199 = vunpack.c.l.b16 %v107
    %v200 = vunpack.c.l.b16 %v108
    %v201 = vunpack.c.h.b16 %v108
    %v202 = vunpack.c.l.b16 %v109
    %v203 = vunpack.c.l.b16 %v110
    %v204 = vunpack.c.h.b16 %v110
    %v205 = vunpack.c.l.b16 %v111
    %v206 = vunpack.c.l.b16 %v112
    %v207 = vunpack.c.h.b16 %v112
    %v208 = vunpack.c.l.b16 %v113
    %v209 = vunpack.c.l.b16 %v114
    %v210 = vunpack.c.h.b16 %v114
    %v211 = vunpack.c.l.b16 %v115
    %v212 = vunpack.c.l.b16 %v116
    %v213 = vunpack.c.h.b16 %v116
    %v214 = vunpack.c.l.b16 %v117
    %v215 = vunpack.c.l.b16 %v118
    %v216 = vunpack.c.h.b16 %v118
    %v217 = vunpack.c.l.b16 %v119
    %v218 = vunpack.c.l.b16 %v120
    %v219 = vunpack.c.h.b16 %v120
    %v220 = vunpack.c.l.b16 %v121
    %v221 = vunpack.c.l.b16 %v122
    %v222 = vunpack.c.h.b16 %v122
    %v223 = vunpack.c.l.b16 %v123
    %v224 = vunpack.c.l.b16 %v124
    %v225 = vunpack.c.h.b16 %v124
    %v226 = vunpack.c.l.b16 %v125
    %v227 = vunpack.c.l.b16 %v126
    %v228 = vunpack.c.h.b16 %v126
    %v229 = vunpack.c.l.b16 %v127
    %v230 = vunpack.c.l.b16 %v128
    %v231 = vunpack.c.h.b16 %v128
    %v232 = vunpack.c.l.b16 %v129
    %v233 = vunpack.c.l.b16 %v130
    %v234 = vunpack.c.h.b16 %v130
    %v235 = vunpack.c.l.b16 %v131
    %v236 = vpack.c.b16 %v191, %v188
    %v237 = vpack.c.b16 %v192, %v189
    %v238 = vpack.c.b16 %v193, %v190
    %v239 = vpack.c.b16 %v197, %v194
    %v240 = vpack.c.b16 %v198, %v195
    %v241 = vpack.c.b16 %v199, %v196
    %v242 = vpack.c.b16 %v203, %v200
    %v243 = vpack.c.b16 %v204, %v201
    %v244 = vpack.c.b16 %v205, %v202
    %v245 = vpack.c.b16 %v209, %v206
    %v246 = vpack.c.b16 %v210, %v207
    %v247 = vpack.c.b16 %v211, %v208
    %v248 = vpack.c.b16 %v215, %v212
    %v249 = vpack.c.b16 %v216, %v213
    %v250 = vpack.c.b16 %v217, %v214
    %v251 = vpack.c.b16 %v221, %v218
    %v252 = vpack.c.b16 %v222, %v219
    %v253 = vpack.c.b16 %v223, %v220
    %v254 = vpack.c.b16 %v227, %v224
    %v255 = vpack.c.b16 %v228, %v225
    %v256 = vpack.c.b16 %v229, %v226
    %v257 = vpack.c.b16 %v233, %v230
    %v258 = vpack.c.b16 %v234, %v231
    %v259 = vpack.c.b16 %v235, %v232
    %284 = vmatpush.bf16.msra.mxu0 %v257
    %285 = vmatpush.bf16.msra.mxu0 %v254
    %286 = vmatpush.bf16.msra.mxu0 %v251
    %287 = vmatpush.bf16.msra.mxu0 %v248
    %288 = vmatpush.bf16.msra.mxu0 %v245
    %289 = vmatpush.bf16.msra.mxu0 %v242
    %290 = vmatpush.bf16.msra.mxu0 %v239
    %291 = vmatpush.bf16.msra.mxu0 %v236
    %292 = vmatmul.bf16.gmra.mxu0 %v148
    %v293 = vpop.f32.mrf.mxu0
    %v294 = vadd.f32 0.0, %v293
    %v295 = vpop.f32.mrf.mxu0
    %v296 = vadd.f32 0.0, %v295
    %297 = vmatmul.bf16.gmra.mxu0 %v149
    %v298 = vpop.f32.mrf.mxu0
    %v299 = vadd.f32 0.0, %v298
    %v300 = vpop.f32.mrf.mxu0
    %v301 = vadd.f32 0.0, %v300
    %302 = vmatmul.bf16.gmra.mxu0 %v150
    %v303 = vpop.f32.mrf.mxu0
    %v304 = vadd.f32 0.0, %v303
    %v305 = vpop.f32.mrf.mxu0
    %v306 = vadd.f32 0.0, %v305
    %307 = vmatmul.bf16.gmra.mxu0 %v151
    %v308 = vpop.f32.mrf.mxu0
    %v309 = vadd.f32 0.0, %v308
    %v310 = vpop.f32.mrf.mxu0
    %v311 = vadd.f32 0.0, %v310
    %312 = vdwg.mxu0
    %313 = vmatpush.bf16.msra.mxu0 %v258
    %314 = vmatpush.bf16.msra.mxu0 %v255
    %315 = vmatpush.bf16.msra.mxu0 %v252
    %316 = vmatpush.bf16.msra.mxu0 %v249
    %317 = vmatpush.bf16.msra.mxu0 %v246
    %318 = vmatpush.bf16.msra.mxu0 %v243
    %319 = vmatpush.bf16.msra.mxu0 %v240
    %320 = vmatpush.bf16.msra.mxu0 %v237
    %321 = vmatmul.bf16.gmra.mxu0 %v148
    %v322 = vpop.f32.mrf.mxu0
    %v323 = vadd.f32 0.0, %v322
    %v324 = vpop.f32.mrf.mxu0
    %v325 = vadd.f32 0.0, %v324
    %326 = vmatmul.bf16.gmra.mxu0 %v149
    %v327 = vpop.f32.mrf.mxu0
    %v328 = vadd.f32 0.0, %v327
    %v329 = vpop.f32.mrf.mxu0
    %v330 = vadd.f32 0.0, %v329
    %331 = vmatmul.bf16.gmra.mxu0 %v150
    %v332 = vpop.f32.mrf.mxu0
    %v333 = vadd.f32 0.0, %v332
    %v334 = vpop.f32.mrf.mxu0
    %v335 = vadd.f32 0.0, %v334
    %336 = vmatmul.bf16.gmra.mxu0 %v151
    %v337 = vpop.f32.mrf.mxu0
    %v338 = vadd.f32 0.0, %v337
    %v339 = vpop.f32.mrf.mxu0
    %v340 = vadd.f32 0.0, %v339
    %341 = vdwg.mxu0
    %342 = vmatpush.bf16.msra.mxu0 %v259
    %343 = vmatpush.bf16.msra.mxu0 %v256
    %344 = vmatpush.bf16.msra.mxu0 %v253
    %345 = vmatpush.bf16.msra.mxu0 %v250
    %346 = vmatpush.bf16.msra.mxu0 %v247
    %347 = vmatpush.bf16.msra.mxu0 %v244
    %348 = vmatpush.bf16.msra.mxu0 %v241
    %349 = vmatpush.bf16.msra.mxu0 %v238
    %350 = vmatmul.bf16.gmra.mxu0 %v148
    %v351 = vpop.f32.mrf.mxu0
    %v352 = vadd.f32 0.0, %v351
    %v353 = vpop.f32.mrf.mxu0
    %v354 = vadd.f32 0.0, %v353
    %355 = vmatmul.bf16.gmra.mxu0 %v149
    %v356 = vpop.f32.mrf.mxu0
    %v357 = vadd.f32 0.0, %v356
    %v358 = vpop.f32.mrf.mxu0
    %v359 = vadd.f32 0.0, %v358
    %360 = vmatmul.bf16.gmra.mxu0 %v150
    %v361 = vpop.f32.mrf.mxu0
    %v362 = vadd.f32 0.0, %v361
    %v363 = vpop.f32.mrf.mxu0
    %v364 = vadd.f32 0.0, %v363
    %365 = vmatmul.bf16.gmra.mxu0 %v151
    %v366 = vpop.f32.mrf.mxu0
    %v367 = vadd.f32 0.0, %v366
    %v368 = vpop.f32.mrf.mxu0
    %v369 = vadd.f32 0.0, %v368
    %370 = vdwg.mxu0
    %v371 = vld [vmem:[%s5] sm:$0x7]
    %v373 = vperm.slane %v371, 0
    %v374 = vperm.slane %v371, 1
    %v375 = vperm.slane %v371, 2
    %v411 = vunpack.c.l.b16 %v60
    %v412 = vunpack.c.h.b16 %v60
    %v413 = vunpack.c.l.b16 %v61
    %v414 = vunpack.c.l.b16 %v62
    %v415 = vunpack.c.h.b16 %v62
    %v416 = vunpack.c.l.b16 %v63
    %v417 = vunpack.c.l.b16 %v64
    %v418 = vunpack.c.h.b16 %v64
    %v419 = vunpack.c.l.b16 %v65
    %v420 = vunpack.c.l.b16 %v66
    %v421 = vunpack.c.h.b16 %v66
    %v422 = vunpack.c.l.b16 %v67
    %v423 = vunpack.c.l.b16 %v68
    %v424 = vunpack.c.h.b16 %v68
    %v425 = vunpack.c.l.b16 %v69
    %v426 = vunpack.c.l.b16 %v70
    %v427 = vunpack.c.h.b16 %v70
    %v428 = vunpack.c.l.b16 %v71
    %v429 = vunpack.c.l.b16 %v72
    %v430 = vunpack.c.h.b16 %v72
    %v431 = vunpack.c.l.b16 %v73
    %v432 = vunpack.c.l.b16 %v74
    %v433 = vunpack.c.h.b16 %v74
    %v434 = vunpack.c.l.b16 %v75
    %v435 = vunpack.c.l.b16 %v76
    %v436 = vunpack.c.h.b16 %v76
    %v437 = vunpack.c.l.b16 %v77
    %v438 = vunpack.c.l.b16 %v78
    %v439 = vunpack.c.h.b16 %v78
    %v440 = vunpack.c.l.b16 %v79
    %v441 = vunpack.c.l.b16 %v80
    %v442 = vunpack.c.h.b16 %v80
    %v443 = vunpack.c.l.b16 %v81
    %v444 = vunpack.c.l.b16 %v82
    %v445 = vunpack.c.h.b16 %v82
    %v446 = vunpack.c.l.b16 %v83
    %v447 = vunpack.c.l.b16 %v84
    %v448 = vunpack.c.h.b16 %v84
    %v449 = vunpack.c.l.b16 %v85
    %v450 = vunpack.c.l.b16 %v86
    %v451 = vunpack.c.h.b16 %v86
    %v452 = vunpack.c.l.b16 %v87
    %v453 = vunpack.c.l.b16 %v88
    %v454 = vunpack.c.h.b16 %v88
    %v455 = vunpack.c.l.b16 %v89
    %v456 = vunpack.c.l.b16 %v90
    %v457 = vunpack.c.h.b16 %v90
    %v458 = vunpack.c.l.b16 %v91
    %v459 = vpack.c.b16 %v414, %v411
    %v460 = vpack.c.b16 %v415, %v412
    %v461 = vpack.c.b16 %v416, %v413
    %v462 = vpack.c.b16 %v420, %v417
    %v463 = vpack.c.b16 %v421, %v418
    %v464 = vpack.c.b16 %v422, %v419
    %v465 = vpack.c.b16 %v426, %v423
    %v466 = vpack.c.b16 %v427, %v424
    %v467 = vpack.c.b16 %v428, %v425
    %v468 = vpack.c.b16 %v432, %v429
    %v469 = vpack.c.b16 %v433, %v430
    %v470 = vpack.c.b16 %v434, %v431
    %v471 = vpack.c.b16 %v438, %v435
    %v472 = vpack.c.b16 %v439, %v436
    %v473 = vpack.c.b16 %v440, %v437
    %v474 = vpack.c.b16 %v444, %v441
    %v475 = vpack.c.b16 %v445, %v442
    %v476 = vpack.c.b16 %v446, %v443
    %v477 = vpack.c.b16 %v450, %v447
    %v478 = vpack.c.b16 %v451, %v448
    %v479 = vpack.c.b16 %v452, %v449
    %v480 = vpack.c.b16 %v456, %v453
    %v481 = vpack.c.b16 %v457, %v454
    %v482 = vpack.c.b16 %v458, %v455
    %507 = vmatpush.bf16.msra.mxu0 %v480
    %508 = vmatpush.bf16.msra.mxu0 %v477
    %509 = vmatpush.bf16.msra.mxu0 %v474
    %510 = vmatpush.bf16.msra.mxu0 %v471
    %511 = vmatpush.bf16.msra.mxu0 %v468
    %512 = vmatpush.bf16.msra.mxu0 %v465
    %513 = vmatpush.bf16.msra.mxu0 %v462
    %514 = vmatpush.bf16.msra.mxu0 %v459
    %515 = vmatmul.bf16.gmra.mxu0 %v59
    %v516 = vpop.f32.mrf.mxu0
    %v517 = vadd.f32 %v373, %v516
    %v518 = vpop.f32.mrf.mxu0
    %519 = vdwg.mxu0
    %520 = vmatpush.bf16.msra.mxu0 %v481
    %521 = vmatpush.bf16.msra.mxu0 %v478
    %522 = vmatpush.bf16.msra.mxu0 %v475
    %523 = vmatpush.bf16.msra.mxu0 %v472
    %524 = vmatpush.bf16.msra.mxu0 %v469
    %525 = vmatpush.bf16.msra.mxu0 %v466
    %526 = vmatpush.bf16.msra.mxu0 %v463
    %527 = vmatpush.bf16.msra.mxu0 %v460
    %528 = vmatmul.bf16.gmra.mxu0 %v59
    %v529 = vpop.f32.mrf.mxu0
    %v530 = vadd.f32 %v374, %v529
    %v531 = vpop.f32.mrf.mxu0
    %532 = vdwg.mxu0
    %533 = vmatpush.bf16.msra.mxu0 %v482
    %534 = vmatpush.bf16.msra.mxu0 %v479
    %535 = vmatpush.bf16.msra.mxu0 %v476
    %536 = vmatpush.bf16.msra.mxu0 %v473
    %537 = vmatpush.bf16.msra.mxu0 %v470
    %538 = vmatpush.bf16.msra.mxu0 %v467
    %539 = vmatpush.bf16.msra.mxu0 %v464
    %540 = vmatpush.bf16.msra.mxu0 %v461
    %541 = vmatmul.bf16.gmra.mxu0 %v59
    %v542 = vpop.f32.mrf.mxu0
    %v543 = vadd.f32 %v375, %v542
    %v544 = vpop.f32.mrf.mxu0
    %545 = vdwg.mxu0
    %v546 = vadd.f32 %v294, %v517
    %v547 = vadd.f32 %v323, %v530
    %v548 = vadd.f32 %v352, %v543
    %v549 = vadd.f32 %v296, %v517
    %v550 = vadd.f32 %v325, %v530
    %v551 = vadd.f32 %v354, %v543
    %v552 = vadd.f32 %v299, %v517
    %v553 = vadd.f32 %v328, %v530
    %v554 = vadd.f32 %v357, %v543
    %v555 = vadd.f32 %v301, %v517
    %v556 = vadd.f32 %v330, %v530
    %v557 = vadd.f32 %v359, %v543
    %v558 = vadd.f32 %v304, %v517
    %v559 = vadd.f32 %v333, %v530
    %v560 = vadd.f32 %v362, %v543
    %v561 = vadd.f32 %v306, %v517
    %v562 = vadd.f32 %v335, %v530
    %v563 = vadd.f32 %v364, %v543
    %v564 = vadd.f32 %v309, %v517
    %v565 = vadd.f32 %v338, %v530
    %v566 = vadd.f32 %v367, %v543
    %v567 = vadd.f32 %v311, %v517
    %v568 = vadd.f32 %v340, %v530
    %v569 = vadd.f32 %v369, %v543
    %570 = vst [vmem:[#allocation2] sm:$0xff] %v546
    %571 = vst [vmem:[#allocation2 + $0x8] sm:$0xff] %v547
    %572 = vst [vmem:[#allocation2 + $0x10] sm:$0xff] %v548
    %573 = vst [vmem:[#allocation2 + $0x18] sm:$0xff] %v549
    %574 = vst [vmem:[#allocation2 + $0x20] sm:$0xff] %v550
    %575 = vst [vmem:[#allocation2 + $0x28] sm:$0xff] %v551
    %576 = vst [vmem:[#allocation2 + $0x30] sm:$0xff] %v552
    %577 = vst [vmem:[#allocation2 + $0x38] sm:$0xff] %v553
    %578 = vst [vmem:[#allocation2 + $0x40] sm:$0xff] %v554
    %579 = vst [vmem:[#allocation2 + $0x48] sm:$0xff] %v555
    %580 = vst [vmem:[#allocation2 + $0x50] sm:$0xff] %v556
    %581 = vst [vmem:[#allocation2 + $0x58] sm:$0xff] %v557
    %582 = vst [vmem:[#allocation2 + $0x60] sm:$0xff] %v558
    %583 = vst [vmem:[#allocation2 + $0x68] sm:$0xff] %v559
    %584 = vst [vmem:[#allocation2 + $0x70] sm:$0xff] %v560
    %585 = vst [vmem:[#allocation2 + $0x78] sm:$0xff] %v561
    %586 = vst [vmem:[#allocation2 + $0x80] sm:$0xff] %v562
    %587 = vst [vmem:[#allocation2 + $0x88] sm:$0xff] %v563
    %588 = vst [vmem:[#allocation2 + $0x90] sm:$0xff] %v564
    %589 = vst [vmem:[#allocation2 + $0x98] sm:$0xff] %v565
    %590 = vst [vmem:[#allocation2 + $0xa0] sm:$0xff] %v566
    %591 = vst [vmem:[#allocation2 + $0xa8] sm:$0xff] %v567
    %592 = vst [vmem:[#allocation2 + $0xb0] sm:$0xff] %v568
    %593 = vst [vmem:[#allocation2 + $0xb8] sm:$0xff] %v569
    %v594 = vld [vmem:[#allocation3] sm:$0xff]
    %v595 = vld [vmem:[#allocation3 + $0x8] sm:$0xf]
    %v596 = vld [vmem:[#allocation3 + $0xc] sm:$0xff]
    %v597 = vld [vmem:[#allocation3 + $0x14] sm:$0xf]
    %v598 = vld [vmem:[#allocation3 + $0x18] sm:$0xff]
    %v599 = vld [vmem:[#allocation3 + $0x20] sm:$0xf]
    %v600 = vld [vmem:[#allocation3 + $0x24] sm:$0xff]
    %v601 = vld [vmem:[#allocation3 + $0x2c] sm:$0xf]
    %v602 = vld [vmem:[#allocation3 + $0x30] sm:$0xff]
    %v603 = vld [vmem:[#allocation3 + $0x38] sm:$0xf]
    %v604 = vld [vmem:[#allocation3 + $0x3c] sm:$0xff]
    %v605 = vld [vmem:[#allocation3 + $0x44] sm:$0xf]
    %v606 = vld [vmem:[#allocation3 + $0x48] sm:$0xff]
    %v607 = vld [vmem:[#allocation3 + $0x50] sm:$0xf]
    %v608 = vld [vmem:[#allocation3 + $0x54] sm:$0xff]
    %v609 = vld [vmem:[#allocation3 + $0x5c] sm:$0xf]
    %v610 = vld [vmem:[#allocation3 + $0x60] sm:$0xff]
    %v611 = vld [vmem:[#allocation3 + $0x68] sm:$0xf]
    %v612 = vld [vmem:[#allocation3 + $0x6c] sm:$0xff]
    %v613 = vld [vmem:[#allocation3 + $0x74] sm:$0xf]
    %v614 = vld [vmem:[#allocation3 + $0x78] sm:$0xff]
    %v615 = vld [vmem:[#allocation3 + $0x80] sm:$0xf]
    %v616 = vld [vmem:[#allocation3 + $0x84] sm:$0xff]
    %v617 = vld [vmem:[#allocation3 + $0x8c] sm:$0xf]
    %v618 = vld [vmem:[#allocation3 + $0x90] sm:$0xff]
    %v619 = vld [vmem:[#allocation3 + $0x98] sm:$0xf]
    %v620 = vld [vmem:[#allocation3 + $0x9c] sm:$0xff]
    %v621 = vld [vmem:[#allocation3 + $0xa4] sm:$0xf]
    %v622 = vld [vmem:[#allocation3 + $0xa8] sm:$0xff]
    %v623 = vld [vmem:[#allocation3 + $0xb0] sm:$0xf]
    %v624 = vld [vmem:[#allocation3 + $0xb4] sm:$0xff]
    %v625 = vld [vmem:[#allocation3 + $0xbc] sm:$0xf]
    %v626 = vld [vmem:[#allocation5] sm:$0x7]
    %v628 = vperm.slane %v626, 0
    %v629 = vperm.slane %v626, 1
    %v630 = vperm.slane %v626, 2
    %v666 = vunpack.c.l.b16 %v594
    %v667 = vunpack.c.h.b16 %v594
    %v668 = vunpack.c.l.b16 %v595
    %v669 = vunpack.c.l.b16 %v596
    %v670 = vunpack.c.h.b16 %v596
    %v671 = vunpack.c.l.b16 %v597
    %v672 = vunpack.c.l.b16 %v598
    %v673 = vunpack.c.h.b16 %v598
    %v674 = vunpack.c.l.b16 %v599
    %v675 = vunpack.c.l.b16 %v600
    %v676 = vunpack.c.h.b16 %v600
    %v677 = vunpack.c.l.b16 %v601
    %v678 = vunpack.c.l.b16 %v602
    %v679 = vunpack.c.h.b16 %v602
    %v680 = vunpack.c.l.b16 %v603
    %v681 = vunpack.c.l.b16 %v604
    %v682 = vunpack.c.h.b16 %v604
    %v683 = vunpack.c.l.b16 %v605
    %v684 = vunpack.c.l.b16 %v606
    %v685 = vunpack.c.h.b16 %v606
    %v686 = vunpack.c.l.b16 %v607
    %v687 = vunpack.c.l.b16 %v608
    %v688 = vunpack.c.h.b16 %v608
    %v689 = vunpack.c.l.b16 %v609
    %v690 = vunpack.c.l.b16 %v610
    %v691 = vunpack.c.h.b16 %v610
    %v692 = vunpack.c.l.b16 %v611
    %v693 = vunpack.c.l.b16 %v612
    %v694 = vunpack.c.h.b16 %v612
    %v695 = vunpack.c.l.b16 %v613
    %v696 = vunpack.c.l.b16 %v614
    %v697 = vunpack.c.h.b16 %v614
    %v698 = vunpack.c.l.b16 %v615
    %v699 = vunpack.c.l.b16 %v616
    %v700 = vunpack.c.h.b16 %v616
    %v701 = vunpack.c.l.b16 %v617
    %v702 = vunpack.c.l.b16 %v618
    %v703 = vunpack.c.h.b16 %v618
    %v704 = vunpack.c.l.b16 %v619
    %v705 = vunpack.c.l.b16 %v620
    %v706 = vunpack.c.h.b16 %v620
    %v707 = vunpack.c.l.b16 %v621
    %v708 = vunpack.c.l.b16 %v622
    %v709 = vunpack.c.h.b16 %v622
    %v710 = vunpack.c.l.b16 %v623
    %v711 = vunpack.c.l.b16 %v624
    %v712 = vunpack.c.h.b16 %v624
    %v713 = vunpack.c.l.b16 %v625
    %v714 = vpack.c.b16 %v669, %v666
    %v715 = vpack.c.b16 %v670, %v667
    %v716 = vpack.c.b16 %v671, %v668
    %v717 = vpack.c.b16 %v675, %v672
    %v718 = vpack.c.b16 %v676, %v673
    %v719 = vpack.c.b16 %v677, %v674
    %v720 = vpack.c.b16 %v681, %v678
    %v721 = vpack.c.b16 %v682, %v679
    %v722 = vpack.c.b16 %v683, %v680
    %v723 = vpack.c.b16 %v687, %v684
    %v724 = vpack.c.b16 %v688, %v685
    %v725 = vpack.c.b16 %v689, %v686
    %v726 = vpack.c.b16 %v693, %v690
    %v727 = vpack.c.b16 %v694, %v691
    %v728 = vpack.c.b16 %v695, %v692
    %v729 = vpack.c.b16 %v699, %v696
    %v730 = vpack.c.b16 %v700, %v697
    %v731 = vpack.c.b16 %v701, %v698
    %v732 = vpack.c.b16 %v705, %v702
    %v733 = vpack.c.b16 %v706, %v703
    %v734 = vpack.c.b16 %v707, %v704
    %v735 = vpack.c.b16 %v711, %v708
    %v736 = vpack.c.b16 %v712, %v709
    %v737 = vpack.c.b16 %v713, %v710
    %762 = vmatpush.bf16.msra.mxu0 %v735
    %763 = vmatpush.bf16.msra.mxu0 %v732
    %764 = vmatpush.bf16.msra.mxu0 %v729
    %765 = vmatpush.bf16.msra.mxu0 %v726
    %766 = vmatpush.bf16.msra.mxu0 %v723
    %767 = vmatpush.bf16.msra.mxu0 %v720
    %768 = vmatpush.bf16.msra.mxu0 %v717
    %769 = vmatpush.bf16.msra.mxu0 %v714
    %770 = vmatmul.bf16.gmra.mxu0 %v59
    %v771 = vpop.f32.mrf.mxu0
    %v772 = vadd.f32 %v628, %v771
    %v773 = vpop.f32.mrf.mxu0
    %774 = vdwg.mxu0
    %775 = vmatpush.bf16.msra.mxu0 %v736
    %776 = vmatpush.bf16.msra.mxu0 %v733
    %777 = vmatpush.bf16.msra.mxu0 %v730
    %778 = vmatpush.bf16.msra.mxu0 %v727
    %779 = vmatpush.bf16.msra.mxu0 %v724
    %780 = vmatpush.bf16.msra.mxu0 %v721
    %781 = vmatpush.bf16.msra.mxu0 %v718
    %782 = vmatpush.bf16.msra.mxu0 %v715
    %783 = vmatmul.bf16.gmra.mxu0 %v59
    %v784 = vpop.f32.mrf.mxu0
    %v785 = vadd.f32 %v629, %v784
    %v786 = vpop.f32.mrf.mxu0
    %787 = vdwg.mxu0
    %788 = vmatpush.bf16.msra.mxu0 %v737
    %789 = vmatpush.bf16.msra.mxu0 %v734
    %790 = vmatpush.bf16.msra.mxu0 %v731
    %791 = vmatpush.bf16.msra.mxu0 %v728
    %792 = vmatpush.bf16.msra.mxu0 %v725
    %793 = vmatpush.bf16.msra.mxu0 %v722
    %794 = vmatpush.bf16.msra.mxu0 %v719
    %795 = vmatpush.bf16.msra.mxu0 %v716
    %796 = vmatmul.bf16.gmra.mxu0 %v59
    %v797 = vpop.f32.mrf.mxu0
    %v798 = vadd.f32 %v630, %v797
    %v799 = vpop.f32.mrf.mxu0
    %800 = vdwg.mxu0
    %v801 = vld [vmem:[#allocation2] sm:$0xff]
    %v802 = vld [vmem:[#allocation2 + $0x8] sm:$0xff]
    %v803 = vld [vmem:[#allocation2 + $0x10] sm:$0xff]
    %v804 = vadd.f32 %v801, %v772
    %v805 = vxor.u32 %v804, 2147483648
    %v806 = vmul.f32 %v805, 1.442695
    %v807 = vpow.pop %v806
    %v808 = vadd.f32 %v807, 1.0
    %v809 = vrcp.pop %v808
    %v810 = vmul.f32 %v808, %v809
    %v811 = vsub.f32 1.0, %v810
    %v812 = vmul.f32 %v809, %v811
    %v813 = vadd.f32 %v809, %v812
    %vm814 = vweird.f32 %v808
    %vm815 = vweird.f32 %v809
    %vm816 = vmor %vm814, %vm815
    %v817 = vsel %vm816, %v809, %v813
    %v818 = vand.u32 2147483647, %v808
    %vm819 = vcmp.eq.f32.partialorder %v818, 8.507059e+37
    %v820 = vand.u32 %v808, 2147483648
    %v821 = vor.u32 1.1754944e-38, %v820
    %v822 = vsel %vm819, %v821, %v817
    %v823 = vmul.f32 1.0, %v822
    %v824 = vadd.f32 %v802, %v785
    %v825 = vxor.u32 %v824, 2147483648
    %v826 = vmul.f32 %v825, 1.442695
    %v827 = vpow.pop %v826
    %v828 = vadd.f32 %v827, 1.0
    %v829 = vrcp.pop %v828
    %v830 = vmul.f32 %v828, %v829
    %v831 = vsub.f32 1.0, %v830
    %v832 = vmul.f32 %v829, %v831
    %v833 = vadd.f32 %v829, %v832
    %vm834 = vweird.f32 %v828
    %vm835 = vweird.f32 %v829
    %vm836 = vmor %vm834, %vm835
    %v837 = vsel %vm836, %v829, %v833
    %v838 = vand.u32 2147483647, %v828
    %vm839 = vcmp.eq.f32.partialorder %v838, 8.507059e+37
    %v840 = vand.u32 %v828, 2147483648
    %v841 = vor.u32 1.1754944e-38, %v840
    %v842 = vsel %vm839, %v841, %v837
    %v843 = vmul.f32 1.0, %v842
    %v844 = vmul.f32 %v823, %v798
    %v845 = vadd.f32 %v803, %v844
    %v846 = vtanh.pop %v845
    %v847 = vsub.f32 1.0, %v843
    %v848 = vmul.f32 %v847, %v846
    %v849 = vmul.f32 %v843, %v58
    %v850 = vadd.f32 %v848, %v849
    %v851 = vpack.c.bf16 %v850, %v850
    %852 = vst [vmem:[%s7] sm:$0xf] %v851
    %853 = vmatpush.bf16.msra.mxu0 %v735
    %854 = vmatpush.bf16.msra.mxu0 %v732
    %855 = vmatpush.bf16.msra.mxu0 %v729
    %856 = vmatpush.bf16.msra.mxu0 %v726
    %857 = vmatpush.bf16.msra.mxu0 %v723
    %858 = vmatpush.bf16.msra.mxu0 %v720
    %859 = vmatpush.bf16.msra.mxu0 %v717
    %860 = vmatpush.bf16.msra.mxu0 %v714
    %861 = vmatmul.bf16.gmra.mxu0 %v851
    %v862 = vpop.f32.mrf.mxu0
    %v863 = vadd.f32 %v628, %v862
    %v864 = vpop.f32.mrf.mxu0
    %865 = vdwg.mxu0
    %866 = vmatpush.bf16.msra.mxu0 %v736
    %867 = vmatpush.bf16.msra.mxu0 %v733
    %868 = vmatpush.bf16.msra.mxu0 %v730
    %869 = vmatpush.bf16.msra.mxu0 %v727
    %870 = vmatpush.bf16.msra.mxu0 %v724
    %871 = vmatpush.bf16.msra.mxu0 %v721
    %872 = vmatpush.bf16.msra.mxu0 %v718
    %873 = vmatpush.bf16.msra.mxu0 %v715
    %874 = vmatmul.bf16.gmra.mxu0 %v851
    %v875 = vpop.f32.mrf.mxu0
    %v876 = vadd.f32 %v629, %v875
    %v877 = vpop.f32.mrf.mxu0
    %878 = vdwg.mxu0
    %879 = vmatpush.bf16.msra.mxu0 %v737
    %880 = vmatpush.bf16.msra.mxu0 %v734
    %881 = vmatpush.bf16.msra.mxu0 %v731
    %882 = vmatpush.bf16.msra.mxu0 %v728
    %883 = vmatpush.bf16.msra.mxu0 %v725
    %884 = vmatpush.bf16.msra.mxu0 %v722
    %885 = vmatpush.bf16.msra.mxu0 %v719
    %886 = vmatpush.bf16.msra.mxu0 %v716
    %887 = vmatmul.bf16.gmra.mxu0 %v851
    %v888 = vpop.f32.mrf.mxu0
    %v889 = vadd.f32 %v630, %v888
    %v890 = vpop.f32.mrf.mxu0
    %891 = vdwg.mxu0
    %s892 = scalar_lea.vmem [#allocation2], 24
    %v893 = vld [vmem:[%s892] sm:$0xff]
    %v894 = vld [vmem:[%s892 + $0x8] sm:$0xff]
    %v895 = vld [vmem:[%s892 + $0x10] sm:$0xff]
    %v896 = vadd.f32 %v893, %v863
    %v897 = vxor.u32 %v896, 2147483648
    %v898 = vmul.f32 %v897, 1.442695
    %v899 = vpow.pop %v898
    %v900 = vadd.f32 %v899, 1.0
    %v901 = vrcp.pop %v900
    %v902 = vmul.f32 %v900, %v901
    %v903 = vsub.f32 1.0, %v902
    %v904 = vmul.f32 %v901, %v903
    %v905 = vadd.f32 %v901, %v904
    %vm906 = vweird.f32 %v900
    %vm907 = vweird.f32 %v901
    %vm908 = vmor %vm906, %vm907
    %v909 = vsel %vm908, %v901, %v905
    %v910 = vand.u32 2147483647, %v900
    %vm911 = vcmp.eq.f32.partialorder %v910, 8.507059e+37
    %v912 = vand.u32 %v900, 2147483648
    %v913 = vor.u32 1.1754944e-38, %v912
    %v914 = vsel %vm911, %v913, %v909
    %v915 = vmul.f32 1.0, %v914
    %v916 = vadd.f32 %v894, %v876
    %v917 = vxor.u32 %v916, 2147483648
    %v918 = vmul.f32 %v917, 1.442695
    %v919 = vpow.pop %v918
    %v920 = vadd.f32 %v919, 1.0
    %v921 = vrcp.pop %v920
    %v922 = vmul.f32 %v920, %v921
    %v923 = vsub.f32 1.0, %v922
    %v924 = vmul.f32 %v921, %v923
    %v925 = vadd.f32 %v921, %v924
    %vm926 = vweird.f32 %v920
    %vm927 = vweird.f32 %v921
    %vm928 = vmor %vm926, %vm927
    %v929 = vsel %vm928, %v921, %v925
    %v930 = vand.u32 2147483647, %v920
    %vm931 = vcmp.eq.f32.partialorder %v930, 8.507059e+37
    %v932 = vand.u32 %v920, 2147483648
    %v933 = vor.u32 1.1754944e-38, %v932
    %v934 = vsel %vm931, %v933, %v929
    %v935 = vmul.f32 1.0, %v934
    %v936 = vmul.f32 %v915, %v889
    %v937 = vadd.f32 %v895, %v936
    %v938 = vtanh.pop %v937
    %v939 = vsub.f32 1.0, %v935
    %v940 = vmul.f32 %v939, %v938
    %v941 = vmul.f32 %v935, %v850
    %v942 = vadd.f32 %v940, %v941
    %v943 = vpack.c.bf16 %v942, %v942
    %s944 = scalar_lea.vmem %s7, 4
    %945 = vst [vmem:[%s944] sm:$0xf] %v943
    %946 = vmatpush.bf16.msra.mxu0 %v735
    %947 = vmatpush.bf16.msra.mxu0 %v732
    %948 = vmatpush.bf16.msra.mxu0 %v729
    %949 = vmatpush.bf16.msra.mxu0 %v726
    %950 = vmatpush.bf16.msra.mxu0 %v723
    %951 = vmatpush.bf16.msra.mxu0 %v720
    %952 = vmatpush.bf16.msra.mxu0 %v717
    %953 = vmatpush.bf16.msra.mxu0 %v714
    %954 = vmatmul.bf16.gmra.mxu0 %v943
    %v955 = vpop.f32.mrf.mxu0
    %v956 = vadd.f32 %v628, %v955
    %v957 = vpop.f32.mrf.mxu0
    %958 = vdwg.mxu0
    %959 = vmatpush.bf16.msra.mxu0 %v736
    %960 = vmatpush.bf16.msra.mxu0 %v733
    %961 = vmatpush.bf16.msra.mxu0 %v730
    %962 = vmatpush.bf16.msra.mxu0 %v727
    %963 = vmatpush.bf16.msra.mxu0 %v724
    %964 = vmatpush.bf16.msra.mxu0 %v721
    %965 = vmatpush.bf16.msra.mxu0 %v718
    %966 = vmatpush.bf16.msra.mxu0 %v715
    %967 = vmatmul.bf16.gmra.mxu0 %v943
    %v968 = vpop.f32.mrf.mxu0
    %v969 = vadd.f32 %v629, %v968
    %v970 = vpop.f32.mrf.mxu0
    %971 = vdwg.mxu0
    %972 = vmatpush.bf16.msra.mxu0 %v737
    %973 = vmatpush.bf16.msra.mxu0 %v734
    %974 = vmatpush.bf16.msra.mxu0 %v731
    %975 = vmatpush.bf16.msra.mxu0 %v728
    %976 = vmatpush.bf16.msra.mxu0 %v725
    %977 = vmatpush.bf16.msra.mxu0 %v722
    %978 = vmatpush.bf16.msra.mxu0 %v719
    %979 = vmatpush.bf16.msra.mxu0 %v716
    %980 = vmatmul.bf16.gmra.mxu0 %v943
    %v981 = vpop.f32.mrf.mxu0
    %v982 = vadd.f32 %v630, %v981
    %v983 = vpop.f32.mrf.mxu0
    %984 = vdwg.mxu0
    %s985 = scalar_lea.vmem [#allocation2], 48
    %v986 = vld [vmem:[%s985] sm:$0xff]
    %v987 = vld [vmem:[%s985 + $0x8] sm:$0xff]
    %v988 = vld [vmem:[%s985 + $0x10] sm:$0xff]
    %v989 = vadd.f32 %v986, %v956
    %v990 = vxor.u32 %v989, 2147483648
    %v991 = vmul.f32 %v990, 1.442695
    %v992 = vpow.pop %v991
    %v993 = vadd.f32 %v992, 1.0
    %v994 = vrcp.pop %v993
    %v995 = vmul.f32 %v993, %v994
    %v996 = vsub.f32 1.0, %v995
    %v997 = vmul.f32 %v994, %v996
    %v998 = vadd.f32 %v994, %v997
    %vm999 = vweird.f32 %v993
    %vm1000 = vweird.f32 %v994
    %vm1001 = vmor %vm999, %vm1000
    %v1002 = vsel %vm1001, %v994, %v998
    %v1003 = vand.u32 2147483647, %v993
    %vm1004 = vcmp.eq.f32.partialorder %v1003, 8.507059e+37
    %v1005 = vand.u32 %v993, 2147483648
    %v1006 = vor.u32 1.1754944e-38, %v1005
    %v1007 = vsel %vm1004, %v1006, %v1002
    %v1008 = vmul.f32 1.0, %v1007
    %v1009 = vadd.f32 %v987, %v969
    %v1010 = vxor.u32 %v1009, 2147483648
    %v1011 = vmul.f32 %v1010, 1.442695
    %v1012 = vpow.pop %v1011
    %v1013 = vadd.f32 %v1012, 1.0
    %v1014 = vrcp.pop %v1013
    %v1015 = vmul.f32 %v1013, %v1014
    %v1016 = vsub.f32 1.0, %v1015
    %v1017 = vmul.f32 %v1014, %v1016
    %v1018 = vadd.f32 %v1014, %v1017
    %vm1019 = vweird.f32 %v1013
    %vm1020 = vweird.f32 %v1014
    %vm1021 = vmor %vm1019, %vm1020
    %v1022 = vsel %vm1021, %v1014, %v1018
    %v1023 = vand.u32 2147483647, %v1013
    %vm1024 = vcmp.eq.f32.partialorder %v1023, 8.507059e+37
    %v1025 = vand.u32 %v1013, 2147483648
    %v1026 = vor.u32 1.1754944e-38, %v1025
    %v1027 = vsel %vm1024, %v1026, %v1022
    %v1028 = vmul.f32 1.0, %v1027
    %v1029 = vmul.f32 %v1008, %v982
    %v1030 = vadd.f32 %v988, %v1029
    %v1031 = vtanh.pop %v1030
    %v1032 = vsub.f32 1.0, %v1028
    %v1033 = vmul.f32 %v1032, %v1031
    %v1034 = vmul.f32 %v1028, %v942
    %v1035 = vadd.f32 %v1033, %v1034
    %v1036 = vpack.c.bf16 %v1035, %v1035
    %s1037 = scalar_lea.vmem %s7, 8
    %1038 = vst [vmem:[%s1037] sm:$0xf] %v1036
    %1039 = vmatpush.bf16.msra.mxu0 %v735
    %1040 = vmatpush.bf16.msra.mxu0 %v732
    %1041 = vmatpush.bf16.msra.mxu0 %v729
    %1042 = vmatpush.bf16.msra.mxu0 %v726
    %1043 = vmatpush.bf16.msra.mxu0 %v723
    %1044 = vmatpush.bf16.msra.mxu0 %v720
    %1045 = vmatpush.bf16.msra.mxu0 %v717
    %1046 = vmatpush.bf16.msra.mxu0 %v714
    %1047 = vmatmul.bf16.gmra.mxu0 %v1036
    %v1048 = vpop.f32.mrf.mxu0
    %v1049 = vadd.f32 %v628, %v1048
    %v1050 = vpop.f32.mrf.mxu0
    %1051 = vdwg.mxu0
    %1052 = vmatpush.bf16.msra.mxu0 %v736
    %1053 = vmatpush.bf16.msra.mxu0 %v733
    %1054 = vmatpush.bf16.msra.mxu0 %v730
    %1055 = vmatpush.bf16.msra.mxu0 %v727
    %1056 = vmatpush.bf16.msra.mxu0 %v724
    %1057 = vmatpush.bf16.msra.mxu0 %v721
    %1058 = vmatpush.bf16.msra.mxu0 %v718
    %1059 = vmatpush.bf16.msra.mxu0 %v715
    %1060 = vmatmul.bf16.gmra.mxu0 %v1036
    %v1061 = vpop.f32.mrf.mxu0
    %v1062 = vadd.f32 %v629, %v1061
    %v1063 = vpop.f32.mrf.mxu0
    %1064 = vdwg.mxu0
    %1065 = vmatpush.bf16.msra.mxu0 %v737
    %1066 = vmatpush.bf16.msra.mxu0 %v734
    %1067 = vmatpush.bf16.msra.mxu0 %v731
    %1068 = vmatpush.bf16.msra.mxu0 %v728
    %1069 = vmatpush.bf16.msra.mxu0 %v725
    %1070 = vmatpush.bf16.msra.mxu0 %v722
    %1071 = vmatpush.bf16.msra.mxu0 %v719
    %1072 = vmatpush.bf16.msra.mxu0 %v716
    %1073 = vmatmul.bf16.gmra.mxu0 %v1036
    %v1074 = vpop.f32.mrf.mxu0
    %v1075 = vadd.f32 %v630, %v1074
    %v1076 = vpop.f32.mrf.mxu0
    %1077 = vdwg.mxu0
    %s1078 = scalar_lea.vmem [#allocation2], 72
    %v1079 = vld [vmem:[%s1078] sm:$0xff]
    %v1080 = vld [vmem:[%s1078 + $0x8] sm:$0xff]
    %v1081 = vld [vmem:[%s1078 + $0x10] sm:$0xff]
    %v1082 = vadd.f32 %v1079, %v1049
    %v1083 = vxor.u32 %v1082, 2147483648
    %v1084 = vmul.f32 %v1083, 1.442695
    %v1085 = vpow.pop %v1084
    %v1086 = vadd.f32 %v1085, 1.0
    %v1087 = vrcp.pop %v1086
    %v1088 = vmul.f32 %v1086, %v1087
    %v1089 = vsub.f32 1.0, %v1088
    %v1090 = vmul.f32 %v1087, %v1089
    %v1091 = vadd.f32 %v1087, %v1090
    %vm1092 = vweird.f32 %v1086
    %vm1093 = vweird.f32 %v1087
    %vm1094 = vmor %vm1092, %vm1093
    %v1095 = vsel %vm1094, %v1087, %v1091
    %v1096 = vand.u32 2147483647, %v1086
    %vm1097 = vcmp.eq.f32.partialorder %v1096, 8.507059e+37
    %v1098 = vand.u32 %v1086, 2147483648
    %v1099 = vor.u32 1.1754944e-38, %v1098
    %v1100 = vsel %vm1097, %v1099, %v1095
    %v1101 = vmul.f32 1.0, %v1100
    %v1102 = vadd.f32 %v1080, %v1062
    %v1103 = vxor.u32 %v1102, 2147483648
    %v1104 = vmul.f32 %v1103, 1.442695
    %v1105 = vpow.pop %v1104
    %v1106 = vadd.f32 %v1105, 1.0
    %v1107 = vrcp.pop %v1106
    %v1108 = vmul.f32 %v1106, %v1107
    %v1109 = vsub.f32 1.0, %v1108
    %v1110 = vmul.f32 %v1107, %v1109
    %v1111 = vadd.f32 %v1107, %v1110
    %vm1112 = vweird.f32 %v1106
    %vm1113 = vweird.f32 %v1107
    %vm1114 = vmor %vm1112, %vm1113
    %v1115 = vsel %vm1114, %v1107, %v1111
    %v1116 = vand.u32 2147483647, %v1106
    %vm1117 = vcmp.eq.f32.partialorder %v1116, 8.507059e+37
    %v1118 = vand.u32 %v1106, 2147483648
    %v1119 = vor.u32 1.1754944e-38, %v1118
    %v1120 = vsel %vm1117, %v1119, %v1115
    %v1121 = vmul.f32 1.0, %v1120
    %v1122 = vmul.f32 %v1101, %v1075
    %v1123 = vadd.f32 %v1081, %v1122
    %v1124 = vtanh.pop %v1123
    %v1125 = vsub.f32 1.0, %v1121
    %v1126 = vmul.f32 %v1125, %v1124
    %v1127 = vmul.f32 %v1121, %v1035
    %v1128 = vadd.f32 %v1126, %v1127
    %v1129 = vpack.c.bf16 %v1128, %v1128
    %s1130 = scalar_lea.vmem %s7, 12
    %1131 = vst [vmem:[%s1130] sm:$0xf] %v1129
    %1132 = vmatpush.bf16.msra.mxu0 %v735
    %1133 = vmatpush.bf16.msra.mxu0 %v732
    %1134 = vmatpush.bf16.msra.mxu0 %v729
    %1135 = vmatpush.bf16.msra.mxu0 %v726
    %1136 = vmatpush.bf16.msra.mxu0 %v723
    %1137 = vmatpush.bf16.msra.mxu0 %v720
    %1138 = vmatpush.bf16.msra.mxu0 %v717
    %1139 = vmatpush.bf16.msra.mxu0 %v714
    %1140 = vmatmul.bf16.gmra.mxu0 %v1129
    %v1141 = vpop.f32.mrf.mxu0
    %v1142 = vadd.f32 %v628, %v1141
    %v1143 = vpop.f32.mrf.mxu0
    %1144 = vdwg.mxu0
    %1145 = vmatpush.bf16.msra.mxu0 %v736
    %1146 = vmatpush.bf16.msra.mxu0 %v733
    %1147 = vmatpush.bf16.msra.mxu0 %v730
    %1148 = vmatpush.bf16.msra.mxu0 %v727
    %1149 = vmatpush.bf16.msra.mxu0 %v724
    %1150 = vmatpush.bf16.msra.mxu0 %v721
    %1151 = vmatpush.bf16.msra.mxu0 %v718
    %1152 = vmatpush.bf16.msra.mxu0 %v715
    %1153 = vmatmul.bf16.gmra.mxu0 %v1129
    %v1154 = vpop.f32.mrf.mxu0
    %v1155 = vadd.f32 %v629, %v1154
    %v1156 = vpop.f32.mrf.mxu0
    %1157 = vdwg.mxu0
    %1158 = vmatpush.bf16.msra.mxu0 %v737
    %1159 = vmatpush.bf16.msra.mxu0 %v734
    %1160 = vmatpush.bf16.msra.mxu0 %v731
    %1161 = vmatpush.bf16.msra.mxu0 %v728
    %1162 = vmatpush.bf16.msra.mxu0 %v725
    %1163 = vmatpush.bf16.msra.mxu0 %v722
    %1164 = vmatpush.bf16.msra.mxu0 %v719
    %1165 = vmatpush.bf16.msra.mxu0 %v716
    %1166 = vmatmul.bf16.gmra.mxu0 %v1129
    %v1167 = vpop.f32.mrf.mxu0
    %v1168 = vadd.f32 %v630, %v1167
    %v1169 = vpop.f32.mrf.mxu0
    %1170 = vdwg.mxu0
    %s1171 = scalar_lea.vmem [#allocation2], 96
    %v1172 = vld [vmem:[%s1171] sm:$0xff]
    %v1173 = vld [vmem:[%s1171 + $0x8] sm:$0xff]
    %v1174 = vld [vmem:[%s1171 + $0x10] sm:$0xff]
    %v1175 = vadd.f32 %v1172, %v1142
    %v1176 = vxor.u32 %v1175, 2147483648
    %v1177 = vmul.f32 %v1176, 1.442695
    %v1178 = vpow.pop %v1177
    %v1179 = vadd.f32 %v1178, 1.0
    %v1180 = vrcp.pop %v1179
    %v1181 = vmul.f32 %v1179, %v1180
    %v1182 = vsub.f32 1.0, %v1181
    %v1183 = vmul.f32 %v1180, %v1182
    %v1184 = vadd.f32 %v1180, %v1183
    %vm1185 = vweird.f32 %v1179
    %vm1186 = vweird.f32 %v1180
    %vm1187 = vmor %vm1185, %vm1186
    %v1188 = vsel %vm1187, %v1180, %v1184
    %v1189 = vand.u32 2147483647, %v1179
    %vm1190 = vcmp.eq.f32.partialorder %v1189, 8.507059e+37
    %v1191 = vand.u32 %v1179, 2147483648
    %v1192 = vor.u32 1.1754944e-38, %v1191
    %v1193 = vsel %vm1190, %v1192, %v1188
    %v1194 = vmul.f32 1.0, %v1193
    %v1195 = vadd.f32 %v1173, %v1155
    %v1196 = vxor.u32 %v1195, 2147483648
    %v1197 = vmul.f32 %v1196, 1.442695
    %v1198 = vpow.pop %v1197
    %v1199 = vadd.f32 %v1198, 1.0
    %v1200 = vrcp.pop %v1199
    %v1201 = vmul.f32 %v1199, %v1200
    %v1202 = vsub.f32 1.0, %v1201
    %v1203 = vmul.f32 %v1200, %v1202
    %v1204 = vadd.f32 %v1200, %v1203
    %vm1205 = vweird.f32 %v1199
    %vm1206 = vweird.f32 %v1200
    %vm1207 = vmor %vm1205, %vm1206
    %v1208 = vsel %vm1207, %v1200, %v1204
    %v1209 = vand.u32 2147483647, %v1199
    %vm1210 = vcmp.eq.f32.partialorder %v1209, 8.507059e+37
    %v1211 = vand.u32 %v1199, 2147483648
    %v1212 = vor.u32 1.1754944e-38, %v1211
    %v1213 = vsel %vm1210, %v1212, %v1208
    %v1214 = vmul.f32 1.0, %v1213
    %v1215 = vmul.f32 %v1194, %v1168
    %v1216 = vadd.f32 %v1174, %v1215
    %v1217 = vtanh.pop %v1216
    %v1218 = vsub.f32 1.0, %v1214
    %v1219 = vmul.f32 %v1218, %v1217
    %v1220 = vmul.f32 %v1214, %v1128
    %v1221 = vadd.f32 %v1219, %v1220
    %v1222 = vpack.c.bf16 %v1221, %v1221
    %s1223 = scalar_lea.vmem %s7, 16
    %1224 = vst [vmem:[%s1223] sm:$0xf] %v1222
    %1225 = vmatpush.bf16.msra.mxu0 %v735
    %1226 = vmatpush.bf16.msra.mxu0 %v732
    %1227 = vmatpush.bf16.msra.mxu0 %v729
    %1228 = vmatpush.bf16.msra.mxu0 %v726
    %1229 = vmatpush.bf16.msra.mxu0 %v723
    %1230 = vmatpush.bf16.msra.mxu0 %v720
    %1231 = vmatpush.bf16.msra.mxu0 %v717
    %1232 = vmatpush.bf16.msra.mxu0 %v714
    %1233 = vmatmul.bf16.gmra.mxu0 %v1222
    %v1234 = vpop.f32.mrf.mxu0
    %v1235 = vadd.f32 %v628, %v1234
    %v1236 = vpop.f32.mrf.mxu0
    %1237 = vdwg.mxu0
    %1238 = vmatpush.bf16.msra.mxu0 %v736
    %1239 = vmatpush.bf16.msra.mxu0 %v733
    %1240 = vmatpush.bf16.msra.mxu0 %v730
    %1241 = vmatpush.bf16.msra.mxu0 %v727
    %1242 = vmatpush.bf16.msra.mxu0 %v724
    %1243 = vmatpush.bf16.msra.mxu0 %v721
    %1244 = vmatpush.bf16.msra.mxu0 %v718
    %1245 = vmatpush.bf16.msra.mxu0 %v715
    %1246 = vmatmul.bf16.gmra.mxu0 %v1222
    %v1247 = vpop.f32.mrf.mxu0
    %v1248 = vadd.f32 %v629, %v1247
    %v1249 = vpop.f32.mrf.mxu0
    %1250 = vdwg.mxu0
    %1251 = vmatpush.bf16.msra.mxu0 %v737
    %1252 = vmatpush.bf16.msra.mxu0 %v734
    %1253 = vmatpush.bf16.msra.mxu0 %v731
    %1254 = vmatpush.bf16.msra.mxu0 %v728
    %1255 = vmatpush.bf16.msra.mxu0 %v725
    %1256 = vmatpush.bf16.msra.mxu0 %v722
    %1257 = vmatpush.bf16.msra.mxu0 %v719
    %1258 = vmatpush.bf16.msra.mxu0 %v716
    %1259 = vmatmul.bf16.gmra.mxu0 %v1222
    %v1260 = vpop.f32.mrf.mxu0
    %v1261 = vadd.f32 %v630, %v1260
    %v1262 = vpop.f32.mrf.mxu0
    %1263 = vdwg.mxu0
    %s1264 = scalar_lea.vmem [#allocation2], 120
    %v1265 = vld [vmem:[%s1264] sm:$0xff]
    %v1266 = vld [vmem:[%s1264 + $0x8] sm:$0xff]
    %v1267 = vld [vmem:[%s1264 + $0x10] sm:$0xff]
    %v1268 = vadd.f32 %v1265, %v1235
    %v1269 = vxor.u32 %v1268, 2147483648
    %v1270 = vmul.f32 %v1269, 1.442695
    %v1271 = vpow.pop %v1270
    %v1272 = vadd.f32 %v1271, 1.0
    %v1273 = vrcp.pop %v1272
    %v1274 = vmul.f32 %v1272, %v1273
    %v1275 = vsub.f32 1.0, %v1274
    %v1276 = vmul.f32 %v1273, %v1275
    %v1277 = vadd.f32 %v1273, %v1276
    %vm1278 = vweird.f32 %v1272
    %vm1279 = vweird.f32 %v1273
    %vm1280 = vmor %vm1278, %vm1279
    %v1281 = vsel %vm1280, %v1273, %v1277
    %v1282 = vand.u32 2147483647, %v1272
    %vm1283 = vcmp.eq.f32.partialorder %v1282, 8.507059e+37
    %v1284 = vand.u32 %v1272, 2147483648
    %v1285 = vor.u32 1.1754944e-38, %v1284
    %v1286 = vsel %vm1283, %v1285, %v1281
    %v1287 = vmul.f32 1.0, %v1286
    %v1288 = vadd.f32 %v1266, %v1248
    %v1289 = vxor.u32 %v1288, 2147483648
    %v1290 = vmul.f32 %v1289, 1.442695
    %v1291 = vpow.pop %v1290
    %v1292 = vadd.f32 %v1291, 1.0
    %v1293 = vrcp.pop %v1292
    %v1294 = vmul.f32 %v1292, %v1293
    %v1295 = vsub.f32 1.0, %v1294
    %v1296 = vmul.f32 %v1293, %v1295
    %v1297 = vadd.f32 %v1293, %v1296
    %vm1298 = vweird.f32 %v1292
    %vm1299 = vweird.f32 %v1293
    %vm1300 = vmor %vm1298, %vm1299
    %v1301 = vsel %vm1300, %v1293, %v1297
    %v1302 = vand.u32 2147483647, %v1292
    %vm1303 = vcmp.eq.f32.partialorder %v1302, 8.507059e+37
    %v1304 = vand.u32 %v1292, 2147483648
    %v1305 = vor.u32 1.1754944e-38, %v1304
    %v1306 = vsel %vm1303, %v1305, %v1301
    %v1307 = vmul.f32 1.0, %v1306
    %v1308 = vmul.f32 %v1287, %v1261
    %v1309 = vadd.f32 %v1267, %v1308
    %v1310 = vtanh.pop %v1309
    %v1311 = vsub.f32 1.0, %v1307
    %v1312 = vmul.f32 %v1311, %v1310
    %v1313 = vmul.f32 %v1307, %v1221
    %v1314 = vadd.f32 %v1312, %v1313
    %v1315 = vpack.c.bf16 %v1314, %v1314
    %s1316 = scalar_lea.vmem %s7, 20
    %1317 = vst [vmem:[%s1316] sm:$0xf] %v1315
    %1318 = vmatpush.bf16.msra.mxu0 %v735
    %1319 = vmatpush.bf16.msra.mxu0 %v732
    %1320 = vmatpush.bf16.msra.mxu0 %v729
    %1321 = vmatpush.bf16.msra.mxu0 %v726
    %1322 = vmatpush.bf16.msra.mxu0 %v723
    %1323 = vmatpush.bf16.msra.mxu0 %v720
    %1324 = vmatpush.bf16.msra.mxu0 %v717
    %1325 = vmatpush.bf16.msra.mxu0 %v714
    %1326 = vmatmul.bf16.gmra.mxu0 %v1315
    %v1327 = vpop.f32.mrf.mxu0
    %v1328 = vadd.f32 %v628, %v1327
    %v1329 = vpop.f32.mrf.mxu0
    %1330 = vdwg.mxu0
    %1331 = vmatpush.bf16.msra.mxu0 %v736
    %1332 = vmatpush.bf16.msra.mxu0 %v733
    %1333 = vmatpush.bf16.msra.mxu0 %v730
    %1334 = vmatpush.bf16.msra.mxu0 %v727
    %1335 = vmatpush.bf16.msra.mxu0 %v724
    %1336 = vmatpush.bf16.msra.mxu0 %v721
    %1337 = vmatpush.bf16.msra.mxu0 %v718
    %1338 = vmatpush.bf16.msra.mxu0 %v715
    %1339 = vmatmul.bf16.gmra.mxu0 %v1315
    %v1340 = vpop.f32.mrf.mxu0
    %v1341 = vadd.f32 %v629, %v1340
    %v1342 = vpop.f32.mrf.mxu0
    %1343 = vdwg.mxu0
    %1344 = vmatpush.bf16.msra.mxu0 %v737
    %1345 = vmatpush.bf16.msra.mxu0 %v734
    %1346 = vmatpush.bf16.msra.mxu0 %v731
    %1347 = vmatpush.bf16.msra.mxu0 %v728
    %1348 = vmatpush.bf16.msra.mxu0 %v725
    %1349 = vmatpush.bf16.msra.mxu0 %v722
    %1350 = vmatpush.bf16.msra.mxu0 %v719
    %1351 = vmatpush.bf16.msra.mxu0 %v716
    %1352 = vmatmul.bf16.gmra.mxu0 %v1315
    %v1353 = vpop.f32.mrf.mxu0
    %v1354 = vadd.f32 %v630, %v1353
    %v1355 = vpop.f32.mrf.mxu0
    %1356 = vdwg.mxu0
    %s1357 = scalar_lea.vmem [#allocation2], 144
    %v1358 = vld [vmem:[%s1357] sm:$0xff]
    %v1359 = vld [vmem:[%s1357 + $0x8] sm:$0xff]
    %v1360 = vld [vmem:[%s1357 + $0x10] sm:$0xff]
    %v1361 = vadd.f32 %v1358, %v1328
    %v1362 = vxor.u32 %v1361, 2147483648
    %v1363 = vmul.f32 %v1362, 1.442695
    %v1364 = vpow.pop %v1363
    %v1365 = vadd.f32 %v1364, 1.0
    %v1366 = vrcp.pop %v1365
    %v1367 = vmul.f32 %v1365, %v1366
    %v1368 = vsub.f32 1.0, %v1367
    %v1369 = vmul.f32 %v1366, %v1368
    %v1370 = vadd.f32 %v1366, %v1369
    %vm1371 = vweird.f32 %v1365
    %vm1372 = vweird.f32 %v1366
    %vm1373 = vmor %vm1371, %vm1372
    %v1374 = vsel %vm1373, %v1366, %v1370
    %v1375 = vand.u32 2147483647, %v1365
    %vm1376 = vcmp.eq.f32.partialorder %v1375, 8.507059e+37
    %v1377 = vand.u32 %v1365, 2147483648
    %v1378 = vor.u32 1.1754944e-38, %v1377
    %v1379 = vsel %vm1376, %v1378, %v1374
    %v1380 = vmul.f32 1.0, %v1379
    %v1381 = vadd.f32 %v1359, %v1341
    %v1382 = vxor.u32 %v1381, 2147483648
    %v1383 = vmul.f32 %v1382, 1.442695
    %v1384 = vpow.pop %v1383
    %v1385 = vadd.f32 %v1384, 1.0
    %v1386 = vrcp.pop %v1385
    %v1387 = vmul.f32 %v1385, %v1386
    %v1388 = vsub.f32 1.0, %v1387
    %v1389 = vmul.f32 %v1386, %v1388
    %v1390 = vadd.f32 %v1386, %v1389
    %vm1391 = vweird.f32 %v1385
    %vm1392 = vweird.f32 %v1386
    %vm1393 = vmor %vm1391, %vm1392
    %v1394 = vsel %vm1393, %v1386, %v1390
    %v1395 = vand.u32 2147483647, %v1385
    %vm1396 = vcmp.eq.f32.partialorder %v1395, 8.507059e+37
    %v1397 = vand.u32 %v1385, 2147483648
    %v1398 = vor.u32 1.1754944e-38, %v1397
    %v1399 = vsel %vm1396, %v1398, %v1394
    %v1400 = vmul.f32 1.0, %v1399
    %v1401 = vmul.f32 %v1380, %v1354
    %v1402 = vadd.f32 %v1360, %v1401
    %v1403 = vtanh.pop %v1402
    %v1404 = vsub.f32 1.0, %v1400
    %v1405 = vmul.f32 %v1404, %v1403
    %v1406 = vmul.f32 %v1400, %v1314
    %v1407 = vadd.f32 %v1405, %v1406
    %v1408 = vpack.c.bf16 %v1407, %v1407
    %s1409 = scalar_lea.vmem %s7, 24
    %1410 = vst [vmem:[%s1409] sm:$0xf] %v1408
    %1411 = vmatpush.bf16.msra.mxu0 %v735
    %1412 = vmatpush.bf16.msra.mxu0 %v732
    %1413 = vmatpush.bf16.msra.mxu0 %v729
    %1414 = vmatpush.bf16.msra.mxu0 %v726
    %1415 = vmatpush.bf16.msra.mxu0 %v723
    %1416 = vmatpush.bf16.msra.mxu0 %v720
    %1417 = vmatpush.bf16.msra.mxu0 %v717
    %1418 = vmatpush.bf16.msra.mxu0 %v714
    %1419 = vmatmul.bf16.gmra.mxu0 %v1408
    %v1420 = vpop.f32.mrf.mxu0
    %v1421 = vadd.f32 %v628, %v1420
    %v1422 = vpop.f32.mrf.mxu0
    %1423 = vdwg.mxu0
    %1424 = vmatpush.bf16.msra.mxu0 %v736
    %1425 = vmatpush.bf16.msra.mxu0 %v733
    %1426 = vmatpush.bf16.msra.mxu0 %v730
    %1427 = vmatpush.bf16.msra.mxu0 %v727
    %1428 = vmatpush.bf16.msra.mxu0 %v724
    %1429 = vmatpush.bf16.msra.mxu0 %v721
    %1430 = vmatpush.bf16.msra.mxu0 %v718
    %1431 = vmatpush.bf16.msra.mxu0 %v715
    %1432 = vmatmul.bf16.gmra.mxu0 %v1408
    %v1433 = vpop.f32.mrf.mxu0
    %v1434 = vadd.f32 %v629, %v1433
    %v1435 = vpop.f32.mrf.mxu0
    %1436 = vdwg.mxu0
    %1437 = vmatpush.bf16.msra.mxu0 %v737
    %1438 = vmatpush.bf16.msra.mxu0 %v734
    %1439 = vmatpush.bf16.msra.mxu0 %v731
    %1440 = vmatpush.bf16.msra.mxu0 %v728
    %1441 = vmatpush.bf16.msra.mxu0 %v725
    %1442 = vmatpush.bf16.msra.mxu0 %v722
    %1443 = vmatpush.bf16.msra.mxu0 %v719
    %1444 = vmatpush.bf16.msra.mxu0 %v716
    %1445 = vmatmul.bf16.gmra.mxu0 %v1408
    %v1446 = vpop.f32.mrf.mxu0
    %v1447 = vadd.f32 %v630, %v1446
    %v1448 = vpop.f32.mrf.mxu0
    %1449 = vdwg.mxu0
    %s1450 = scalar_lea.vmem [#allocation2], 168
    %v1451 = vld [vmem:[%s1450] sm:$0xff]
    %v1452 = vld [vmem:[%s1450 + $0x8] sm:$0xff]
    %v1453 = vld [vmem:[%s1450 + $0x10] sm:$0xff]
    %v1454 = vadd.f32 %v1451, %v1421
    %v1455 = vxor.u32 %v1454, 2147483648
    %v1456 = vmul.f32 %v1455, 1.442695
    %v1457 = vpow.pop %v1456
    %v1458 = vadd.f32 %v1457, 1.0
    %v1459 = vrcp.pop %v1458
    %v1460 = vmul.f32 %v1458, %v1459
    %v1461 = vsub.f32 1.0, %v1460
    %v1462 = vmul.f32 %v1459, %v1461
    %v1463 = vadd.f32 %v1459, %v1462
    %vm1464 = vweird.f32 %v1458
    %vm1465 = vweird.f32 %v1459
    %vm1466 = vmor %vm1464, %vm1465
    %v1467 = vsel %vm1466, %v1459, %v1463
    %v1468 = vand.u32 2147483647, %v1458
    %vm1469 = vcmp.eq.f32.partialorder %v1468, 8.507059e+37
    %v1470 = vand.u32 %v1458, 2147483648
    %v1471 = vor.u32 1.1754944e-38, %v1470
    %v1472 = vsel %vm1469, %v1471, %v1467
    %v1473 = vmul.f32 1.0, %v1472
    %v1474 = vadd.f32 %v1452, %v1434
    %v1475 = vxor.u32 %v1474, 2147483648
    %v1476 = vmul.f32 %v1475, 1.442695
    %v1477 = vpow.pop %v1476
    %v1478 = vadd.f32 %v1477, 1.0
    %v1479 = vrcp.pop %v1478
    %v1480 = vmul.f32 %v1478, %v1479
    %v1481 = vsub.f32 1.0, %v1480
    %v1482 = vmul.f32 %v1479, %v1481
    %v1483 = vadd.f32 %v1479, %v1482
    %vm1484 = vweird.f32 %v1478
    %vm1485 = vweird.f32 %v1479
    %vm1486 = vmor %vm1484, %vm1485
    %v1487 = vsel %vm1486, %v1479, %v1483
    %v1488 = vand.u32 2147483647, %v1478
    %vm1489 = vcmp.eq.f32.partialorder %v1488, 8.507059e+37
    %v1490 = vand.u32 %v1478, 2147483648
    %v1491 = vor.u32 1.1754944e-38, %v1490
    %v1492 = vsel %vm1489, %v1491, %v1487
    %v1493 = vmul.f32 1.0, %v1492
    %v1494 = vmul.f32 %v1473, %v1447
    %v1495 = vadd.f32 %v1453, %v1494
    %v1496 = vtanh.pop %v1495
    %v1497 = vsub.f32 1.0, %v1493
    %v1498 = vmul.f32 %v1497, %v1496
    %v1499 = vmul.f32 %v1493, %v1407
    %v1500 = vadd.f32 %v1498, %v1499
    %v1501 = vpack.c.bf16 %v1500, %v1500
    %s1502 = scalar_lea.vmem %s7, 28
    %1503 = vst [vmem:[%s1502] sm:$0xf] %v1501
    %1504 = vst [vmem:[%s8] sm:$0xff] %v1500
    // Predicated region
    $region38: #{encoder_decoder_forward.4} parent=1 // pred_check
      _
    $region39: #{encoder_decoder_forward.4} parent=1 // pred_check_branch
      %1506 = sbr.rel (0) target = $region41
    $region40: #{encoder_decoder_forward.4} parent=1 // pred_region
      _
    $region41: #{encoder_decoder_forward.4} parent=1 // pred_fallthru
      _
    // Predicated region
    $region42: #{encoder_decoder_forward.4} parent=1 // pred_check
      _
    $region43: #{encoder_decoder_forward.4} parent=1 // pred_check_branch
      %1508 = sbr.rel (0) target = $region45
    $region44: #{encoder_decoder_forward.4} parent=1 // pred_region
      _
    $region45: #{encoder_decoder_forward.4} parent=1 // pred_fallthru
      _
    // Predicated region
    $region46: #{encoder_decoder_forward.4} parent=1 // pred_check
      _
    $region47: #{encoder_decoder_forward.4} parent=1 // pred_check_branch
      %1510 = sbr.rel (0) target = $region49
    $region48: #{encoder_decoder_forward.4} parent=1 // pred_region
      _
    $region49: #{encoder_decoder_forward.4} parent=1 // pred_fallthru
      _
    // Predicated region
    $region50: #{encoder_decoder_forward.4} parent=1 // pred_check
      _
    $region51: #{encoder_decoder_forward.4} parent=1 // pred_check_branch
      %1512 = sbr.rel (0) target = $region53
    $region52: #{encoder_decoder_forward.4} parent=1 // pred_region
      _
    $region53: #{encoder_decoder_forward.4} parent=1 // pred_fallthru
      _
    %1513 = vsyncpa [#allocation4], 1
    %1514 = vsyncpa [#allocation6], 1

</llo_original>
